<compile_context>
chip_gen: v6e
topology: v6e:2x2x1
jax: 0.10.0
libtpu: 0.0.40
codegen_flags: <defaults>
</compile_context>

<pallas_src>
import jax
import jax.numpy as jnp
from jax import lax
from jax.experimental import pallas as pl
from jax.experimental.pallas import tpu as pltpu

LANE = 128
SUBLANE = 8


def _round_up(x, m):
    return (x + m - 1) // m * m


# ------------------------------ fused kernel -------------------------------- #

def _make_fused_gru_kernel(num_layers, T, BB, Hp, Cp):
    """Multi-layer GRU over the full sequence + fc head, one batch block per grid step.

    Ref order: x, [wih_l, whh_l, bih_l, bhh_n_l] * num_layers, wfc, bfc, out,
               gi_scratch, seq_scratch.
    Shapes (gate order [r, z, n] along the padded 3*Hp axis):
      x      : (T, BB, Fp)     time-major batch block (f32)
      wih_l  : (Fin_l, 3*Hp)   input->hidden weights, transposed + gate-padded
      whh_l  : (Hp, 3*Hp)      hidden->hidden weights, transposed + gate-padded
      bih_l  : (1, 3*Hp)       b_ih with b_hh[r], b_hh[z] folded in (f32)
      bhh_n_l: (1, Hp)         n-gate hidden bias (added inside r * (.) per PyTorch)
      wfc    : (Hp, Cp), bfc: (1, Cp)
      out    : (BB, Cp)        lane-dense output block (sliced outside)
    """
    H3 = 3 * Hp

    def kernel(*refs):
        x_ref = refs[0]
        pos = 1
        layer_refs = []
        for _ in range(num_layers):
            layer_refs.append(refs[pos:pos + 4])
            pos += 4
        wfc_ref, bfc_ref = refs[pos], refs[pos + 1]
        out_ref = refs[pos + 2]
        gi_ref, seq_ref = refs[pos + 3], refs[pos + 4]

        h_last = None
        for l, (wih_ref, whh_ref, bih_ref, bhhn_ref) in enumerate(layer_refs):
            last_layer = (l == num_layers - 1)

            # ---- hoisted input projection: one big MXU matmul for the whole seq ----
            xin = x_ref[...] if l == 0 else seq_ref[...]        # (T, BB, Fin)
            fin = xin.shape[-1]
            wih = wih_ref[...]
            gi_all = (
                jnp.dot(xin.reshape(T * BB, fin).astype(wih.dtype), wih,
                        preferred_element_type=jnp.float32)
                + bih_ref[...]
            )
            # Split of the sublane dim by BB=8 is tile-aligned -> cheap reshape.
            gi_ref[...] = gi_all.reshape(T, BB, H3)

            # ---- hoisted out of the time loop: weight load + bias broadcast ----
            whh = whh_ref[...]                                   # (Hp, 3*Hp)
            bhh_n = jnp.broadcast_to(bhhn_ref[...], (BB, Hp))    # built once

            def step(t, h):
                gi = gi_ref[t]                                   # (BB, 3Hp), aligned
                gh = jnp.dot(h.astype(whh.dtype), whh,
                             preferred_element_type=jnp.float32)
                r = jax.nn.sigmoid(gi[:, 0:Hp] + gh[:, 0:Hp])
                z = jax.nn.sigmoid(gi[:, Hp:2 * Hp] + gh[:, Hp:2 * Hp])
                n = jnp.tanh(gi[:, 2 * Hp:H3] + r * (gh[:, 2 * Hp:H3] + bhh_n))
                h_new = (1.0 - z) * n + z * h
                if not last_layer:
                    # Only intermediate layers need the full sequence (feeds next layer).
                    seq_ref[t] = h_new
                return h_new

            h0 = jnp.zeros((BB, Hp), jnp.float32)
            # h is carried in vregs; small T -> full unroll, large T -> partial unroll.
            h_last = lax.fori_loop(0, T, step, h0,
                                   unroll=True if T <= 16 else 8)

        # ---- fused fc1 head on the final hidden state of the last layer ----
        wfc = wfc_ref[...]
        out_ref[...] = (
            jnp.dot(h_last.astype(wfc.dtype), wfc,
                    preferred_element_type=jnp.float32)
            + bfc_ref[...]
        )

    return kernel


# ----------------------------- parameter prep ------------------------------- #

def init_params(key, n_feature, hidden, num_layers, num_classes):
    """PyTorch-shaped params: W_ih (3H, Fin), W_hh (3H, H), biases (3H,); U(-k, k)."""
    k = 1.0 / jnp.sqrt(jnp.float32(hidden))
    gru_params = []
    for layer in range(num_layers):
        in_size = n_feature if layer == 0 else hidden
        key, k1, k2, k3, k4 = jax.random.split(key, 5)
        w_ih = jax.random.uniform(k1, (3 * hidden, in_size), jnp.float32, -k, k)
        w_hh = jax.random.uniform(k2, (3 * hidden, hidden), jnp.float32, -k, k)
        b_ih = jax.random.uniform(k3, (3 * hidden,), jnp.float32, -k, k)
        b_hh = jax.random.uniform(k4, (3 * hidden,), jnp.float32, -k, k)
        gru_params.append((w_ih, w_hh, b_ih, b_hh))
    key, k5, k6 = jax.random.split(key, 3)
    fc_w = jax.random.uniform(k5, (num_classes, hidden), jnp.float32, -k, k)
    fc_b = jax.random.uniform(k6, (num_classes,), jnp.float32, -k, k)
    return {"gru": gru_params, "fc_w": fc_w, "fc_b": fc_b}


def prepare_params(params, n_feature, hidden, num_classes, mm_dtype=jnp.float32):
    """One-time layout prep: transpose, pad gates to 128 lanes, fold r/z hidden biases,
    cast matmul operands (weights) to mm_dtype (biases / accumulation stay f32)."""
    Hp = _round_up(hidden, LANE)
    Cp = _round_up(num_classes, LANE)
    Fp = _round_up(n_feature, SUBLANE)      # only sublane-pad layer-0 features
    layers = []
    in_p = Fp
    for (w_ih, w_hh, b_ih, b_hh) in params["gru"]:
        in_size = w_ih.shape[1]
        H = w_hh.shape[1]
        wih_p = jnp.zeros((in_p, 3 * Hp), jnp.float32)
        whh_p = jnp.zeros((Hp, 3 * Hp), jnp.float32)
        bih_p = jnp.zeros((1, 3 * Hp), jnp.float32)
        bhhn_p = jnp.zeros((1, Hp), jnp.float32)
        for g in range(3):  # gate order [r, z, n]
            wih_p = wih_p.at[:in_size, g * Hp:g * Hp + H].set(
                w_ih[g * H:(g + 1) * H, :].T.astype(jnp.float32))
            whh_p = whh_p.at[:H, g * Hp:g * Hp + H].set(
                w_hh[g * H:(g + 1) * H, :].T.astype(jnp.float32))
            b = b_ih[g * H:(g + 1) * H].astype(jnp.float32)
            if g < 2:  # fold hidden r/z biases into the hoisted input bias
                b = b + b_hh[g * H:(g + 1) * H].astype(jnp.float32)
            bih_p = bih_p.at[0, g * Hp:g * Hp + H].set(b)
        bhhn_p = bhhn_p.at[0, :H].set(b_hh[2 * H:3 * H].astype(jnp.float32))
        layers.append((wih_p.astype(mm_dtype), whh_p.astype(mm_dtype), bih_p, bhhn_p))
        in_p = Hp
    wfc_p = jnp.zeros((Hp, Cp), jnp.float32).at[:hidden, :num_classes].set(
        params["fc_w"].T.astype(jnp.float32)).astype(mm_dtype)
    bfc_p = jnp.zeros((1, Cp), jnp.float32).at[0, :num_classes].set(
        params["fc_b"].astype(jnp.float32))
    return {"Hp": Hp, "Cp": Cp, "Fp": Fp, "layers": layers, "fc": (wfc_p, bfc_p)}


# --------------------------------- forward ---------------------------------- #

def gru_model_forward(x, prepped, num_classes, batch_first=True):
    """Mirrors GRU.forward: multi-layer GRU, last timestep, fc1. x: (B, T, F) if batch_first."""
    Hp, Cp, Fp = prepped["Hp"], prepped["Cp"], prepped["Fp"]
    layers = prepped["layers"]
    wfc_p, bfc_p = prepped["fc"]
    num_layers = len(layers)

    x_tbf = jnp.transpose(x, (1, 0, 2)) if batch_first else x
    T, B, F = x_tbf.shape

    # Pad batch to a sublane multiple; split into blocks of <=128 rows for the grid.
    Bp = _round_up(B, SUBLANE)
    BB = Bp if Bp <= 128 else 128
    Bp = _round_up(Bp, BB)
    nb = Bp // BB

    x_pad = jnp.zeros((T, Bp, Fp), jnp.float32)
    x_pad = x_pad.at[:, :B, :F].set(x_tbf.astype(jnp.float32))

    kernel = _make_fused_gru_kernel(num_layers, T, BB, Hp, Cp)

    flat_inputs = [x_pad]
    in_specs = [pl.BlockSpec((T, BB, Fp), lambda b: (0, b, 0))]
    for lw in layers:
        for w in lw:
            flat_inputs.append(w)
            in_specs.append(pl.BlockSpec(w.shape, lambda b: (0, 0)))
    flat_inputs += [wfc_p, bfc_p]
    in_specs += [pl.BlockSpec(wfc_p.shape, lambda b: (0, 0)),
                 pl.BlockSpec(bfc_p.shape, lambda b: (0, 0))]

    # Explicit VMEM budget (scoped defaults: 16 MiB v5e / 32 MiB v6e,v7x).
    est = sum(int(a.size) * a.dtype.itemsize for a in flat_inputs)
    est += T * BB * (3 * Hp + Hp) * 4 + 2 * BB * Cp * 4
    vmem_limit = int(min(96 * 2 ** 20, max(16 * 2 ** 20, 3 * est)))

    out_padded = pl.pallas_call(
        kernel,
        grid=(nb,),
        out_shape=jax.ShapeDtypeStruct((Bp, Cp), jnp.float32),
        in_specs=in_specs,
        out_specs=pl.BlockSpec((BB, Cp), lambda b: (b, 0)),
        scratch_shapes=[
            pltpu.VMEM((T, BB, 3 * Hp), jnp.float32),   # hoisted input projections
            pltpu.VMEM((T, BB, Hp), jnp.float32),       # intermediate layer sequence
        ],
        compiler_params=pltpu.CompilerParams(
            dimension_semantics=("parallel",),          # megacore on v7x
            vmem_limit_bytes=vmem_limit,
        ),
    )(*flat_inputs)
    return out_padded[:B, :num_classes]


# ----------------------------- pure-JAX reference --------------------------- #

def _reference_forward(x, params):
    hp = lax.Precision.HIGHEST
    x_tbf = jnp.transpose(x, (1, 0, 2)).astype(jnp.float32)
    T, B, _ = x_tbf.shape
    h_seq = x_tbf
    for (w_ih, w_hh, b_ih, b_hh) in params["gru"]:
        H = w_hh.shape[1]
        h = jnp.zeros((B, H), jnp.float32)
        outs = []
        for t in range(T):
            gi = jnp.dot(h_seq[t], w_ih.T, precision=hp) + b_ih
            gh = jnp.dot(h, w_hh.T, precision=hp) + b_hh
            r = jax.nn.sigmoid(gi[:, :H] + gh[:, :H])
            z = jax.nn.sigmoid(gi[:, H:2 * H] + gh[:, H:2 * H])
            n = jnp.tanh(gi[:, 2 * H:] + r * gh[:, 2 * H:])
            h = (1.0 - z) * n + z * h
            outs.append(h)
        h_seq = jnp.stack(outs, axis=0)
    return jnp.dot(h_seq[-1], params["fc_w"].T, precision=hp) + params["fc_b"]


# ----------------------------------- main ----------------------------------- #

if __name__ == "__main__":
    # Small shapes consistent with the module (batch_first=True GRU).
    batch, seq, n_feature = 2, 8, 4
    hidden, num_layers, num_classes = 32, 2, 5

    key = jax.random.PRNGKey(0)
    key, kx, kp = jax.random.split(key, 3)
    x = jax.random.normal(kx, (batch, seq, n_feature), jnp.float32)
    params = init_params(kp, n_feature, hidden, num_layers, num_classes)

    ref = jax.block_until_ready(_reference_forward(x, params))

    # f32 matmul-operand path.
    prepped = prepare_params(params, n_feature, hidden, num_classes)
    out = jax.block_until_ready(gru_model_forward(x, prepped, num_classes, batch_first=True))
    assert out.shape == (batch, num_classes)
    err = float(jnp.max(jnp.abs(out - ref)))
    # Tolerance covers MXU f32-pass numerics; structural bugs show up as >>1e-1 errors.
    assert err < 1e-2, f"Pallas GRU (f32) mismatch vs reference: max abs err {err}"

    # bf16 matmul-operand path (weights bf16, h carry / gate math / accumulation f32).
    prepped_bf16 = prepare_params(params, n_feature, hidden, num_classes,
                                  mm_dtype=jnp.bfloat16)
    out_bf16 = jax.block_until_ready(
        gru_model_forward(x, prepped_bf16, num_classes, batch_first=True))
    err_bf16 = float(jnp.max(jnp.abs(out_bf16 - ref)))
    assert err_bf16 < 1e-1, f"Pallas GRU (bf16) mismatch vs reference: max abs err {err_bf16}"

    print("KERNEL_OK")
</pallas_src>

<mosaic_0001>
module attributes {stable_mosaic.version = 11 : i64} {
  func.func @kernel(%arg0: i32, %arg1: memref<8x8x8xf32, #tpu.memory_space<vmem>>, %arg2: memref<8x384xf32, #tpu.memory_space<vmem>>, %arg3: memref<128x384xf32, #tpu.memory_space<vmem>>, %arg4: memref<1x384xf32, #tpu.memory_space<vmem>>, %arg5: memref<1x128xf32, #tpu.memory_space<vmem>>, %arg6: memref<128x384xf32, #tpu.memory_space<vmem>>, %arg7: memref<128x384xf32, #tpu.memory_space<vmem>>, %arg8: memref<1x384xf32, #tpu.memory_space<vmem>>, %arg9: memref<1x128xf32, #tpu.memory_space<vmem>>, %arg10: memref<128x128xf32, #tpu.memory_space<vmem>>, %arg11: memref<1x128xf32, #tpu.memory_space<vmem>>, %arg12: memref<8x128xf32, #tpu.memory_space<vmem>>, %arg13: memref<8x8x384xf32, #tpu.memory_space<vmem>>, %arg14: memref<8x8x128xf32, #tpu.memory_space<vmem>>) attributes {dimension_semantics = [#tpu.dimension_semantics<parallel>], iteration_bounds = array<i64: 1>, scalar_prefetch = 0 : i64, scratch_operands = 2 : i64, tpu.core_type = #tpu.core_type<tc>, window_params = [{transform_indices = @transform_0, window_bounds = array<i64: 8, 8, 8>}, {pipeline_mode = #tpu.pipeline_mode<synchronous>, transform_indices = @transform_1, window_bounds = array<i64: 8, 384>}, {pipeline_mode = #tpu.pipeline_mode<synchronous>, transform_indices = @transform_2, window_bounds = array<i64: 128, 384>}, {pipeline_mode = #tpu.pipeline_mode<synchronous>, transform_indices = @transform_3, window_bounds = array<i64: 1, 384>}, {pipeline_mode = #tpu.pipeline_mode<synchronous>, transform_indices = @transform_4, window_bounds = array<i64: 1, 128>}, {pipeline_mode = #tpu.pipeline_mode<synchronous>, transform_indices = @transform_5, window_bounds = array<i64: 128, 384>}, {pipeline_mode = #tpu.pipeline_mode<synchronous>, transform_indices = @transform_6, window_bounds = array<i64: 128, 384>}, {pipeline_mode = #tpu.pipeline_mode<synchronous>, transform_indices = @transform_7, window_bounds = array<i64: 1, 384>}, {pipeline_mode = #tpu.pipeline_mode<synchronous>, transform_indices = @transform_8, window_bounds = array<i64: 1, 128>}, {pipeline_mode = #tpu.pipeline_mode<synchronous>, transform_indices = @transform_9, window_bounds = array<i64: 128, 128>}, {pipeline_mode = #tpu.pipeline_mode<synchronous>, transform_indices = @transform_10, window_bounds = array<i64: 1, 128>}, {transform_indices = @transform_11, window_bounds = array<i64: 8, 128>}]} {
    %c0 = arith.constant 0 : index
    %c0_0 = arith.constant 0 : index
    %c0_1 = arith.constant 0 : index
    %0 = vector.load %arg1[%c0, %c0_0, %c0_1] : memref<8x8x8xf32, #tpu.memory_space<vmem>>, vector<8x8x8xf32>
    %c0_2 = arith.constant 0 : index
    %c0_3 = arith.constant 0 : index
    %1 = vector.load %arg2[%c0_2, %c0_3] : memref<8x384xf32, #tpu.memory_space<vmem>>, vector<8x384xf32>
    %2 = vector.shape_cast %0 : vector<8x8x8xf32> to vector<64x8xf32>
    %cst = arith.constant dense<0.000000e+00> : vector<64x384xf32>
    %3 = tpu.matmul %2, %1, %cst {dimension_numbers = #tpu.dot_dimension_numbers<[1], [0], [0], [1], [0, 0, 1, 1], [], []>} : vector<64x8xf32>, vector<8x384xf32>, vector<64x384xf32> -> vector<64x384xf32>
    %c0_4 = arith.constant 0 : index
    %c0_5 = arith.constant 0 : index
    %4 = vector.load %arg4[%c0_4, %c0_5] : memref<1x384xf32, #tpu.memory_space<vmem>>, vector<1x384xf32>
    %5 = vector.broadcast %4 : vector<1x384xf32> to vector<64x384xf32>
    %6 = arith.addf %3, %5 : vector<64x384xf32>
    %7 = vector.shape_cast %6 : vector<64x384xf32> to vector<8x8x384xf32>
    %c0_6 = arith.constant 0 : index
    %c0_7 = arith.constant 0 : index
    %c0_8 = arith.constant 0 : index
    %8 = vector.load %arg13[%c0_6, %c0_7, %c0_8] : memref<8x8x384xf32, #tpu.memory_space<vmem>>, vector<8x8x384xf32>
    tpu.vector_store %arg13[%c0_6, %c0_7, %c0_8], %7 {strides = array<i32>} : memref<8x8x384xf32, #tpu.memory_space<vmem>>, vector<8x8x384xf32>,
    %c0_9 = arith.constant 0 : index
    %c0_10 = arith.constant 0 : index
    %9 = vector.load %arg3[%c0_9, %c0_10] : memref<128x384xf32, #tpu.memory_space<vmem>>, vector<128x384xf32>
    %c0_11 = arith.constant 0 : index
    %c0_12 = arith.constant 0 : index
    %10 = vector.load %arg5[%c0_11, %c0_12] : memref<1x128xf32, #tpu.memory_space<vmem>>, vector<1x128xf32>
    %11 = vector.shape_cast %10 : vector<1x128xf32> to vector<1x128xf32>
    %12 = vector.broadcast %11 : vector<1x128xf32> to vector<8x128xf32>
    %cst_13 = arith.constant 0.000000e+00 : f32
    %13 = vector.broadcast %cst_13 : f32 to vector<8x128xf32>
    %c0_i32 = arith.constant 0 : i32
    %14 = arith.index_cast %c0_i32 : i32 to index
    %c0_14 = arith.constant 0 : index
    %c0_15 = arith.constant 0 : index
    %15 = vector.load %arg13[%14, %c0_14, %c0_15] : memref<8x8x384xf32, #tpu.memory_space<vmem>>, vector<1x8x384xf32>
    %16 = vector.shape_cast %15 : vector<1x8x384xf32> to vector<8x384xf32>
    %cst_16 = arith.constant dense<0.000000e+00> : vector<8x384xf32>
    %17 = tpu.matmul %13, %9, %cst_16 {dimension_numbers = #tpu.dot_dimension_numbers<[1], [0], [0], [1], [0, 0, 1, 1], [], []>} : vector<8x128xf32>, vector<128x384xf32>, vector<8x384xf32> -> vector<8x384xf32>
    %18 = vector.extract_strided_slice %16 {offsets = [0, 0], sizes = [8, 128], strides = [1, 1]} : vector<8x384xf32> to vector<8x128xf32>
    %19 = vector.extract_strided_slice %17 {offsets = [0, 0], sizes = [8, 128], strides = [1, 1]} : vector<8x384xf32> to vector<8x128xf32>
    %20 = arith.addf %18, %19 : vector<8x128xf32>
    %21 = arith.negf %20 : vector<8x128xf32>
    %22 = math.exp %21 : vector<8x128xf32>
    %cst_17 = arith.constant 1.000000e+00 : f32
    %23 = vector.broadcast %cst_17 : f32 to vector<8x128xf32>
    %24 = arith.addf %23, %22 : vector<8x128xf32>
    %25 = arith.divf %23, %24 : vector<8x128xf32>
    %26 = vector.extract_strided_slice %16 {offsets = [0, 128], sizes = [8, 128], strides = [1, 1]} : vector<8x384xf32> to vector<8x128xf32>
    %27 = vector.extract_strided_slice %17 {offsets = [0, 128], sizes = [8, 128], strides = [1, 1]} : vector<8x384xf32> to vector<8x128xf32>
    %28 = arith.addf %26, %27 : vector<8x128xf32>
    %29 = arith.negf %28 : vector<8x128xf32>
    %30 = math.exp %29 : vector<8x128xf32>
    %cst_18 = arith.constant 1.000000e+00 : f32
    %31 = vector.broadcast %cst_18 : f32 to vector<8x128xf32>
    %32 = arith.addf %31, %30 : vector<8x128xf32>
    %33 = arith.divf %31, %32 : vector<8x128xf32>
    %34 = vector.extract_strided_slice %16 {offsets = [0, 256], sizes = [8, 128], strides = [1, 1]} : vector<8x384xf32> to vector<8x128xf32>
    %35 = vector.extract_strided_slice %17 {offsets = [0, 256], sizes = [8, 128], strides = [1, 1]} : vector<8x384xf32> to vector<8x128xf32>
    %36 = arith.addf %35, %12 : vector<8x128xf32>
    %37 = arith.mulf %25, %36 : vector<8x128xf32>
    %38 = arith.addf %34, %37 : vector<8x128xf32>
    %39 = math.tanh %38 : vector<8x128xf32>
    %cst_19 = arith.constant 1.000000e+00 : f32
    %40 = vector.broadcast %cst_19 : f32 to vector<8x128xf32>
    %41 = arith.subf %40, %33 : vector<8x128xf32>
    %42 = arith.mulf %41, %39 : vector<8x128xf32>
    %43 = arith.mulf %33, %13 : vector<8x128xf32>
    %44 = arith.addf %42, %43 : vector<8x128xf32>
    %45 = arith.index_cast %c0_i32 : i32 to index
    %c0_20 = arith.constant 0 : index
    %c0_21 = arith.constant 0 : index
    %46 = vector.load %arg14[%45, %c0_20, %c0_21] : memref<8x8x128xf32, #tpu.memory_space<vmem>>, vector<1x8x128xf32>
    %47 = vector.shape_cast %46 : vector<1x8x128xf32> to vector<8x128xf32>
    %48 = vector.shape_cast %44 : vector<8x128xf32> to vector<1x8x128xf32>
    tpu.vector_store %arg14[%45, %c0_20, %c0_21], %48 {strides = array<i32>} : memref<8x8x128xf32, #tpu.memory_space<vmem>>, vector<1x8x128xf32>,
    %c1_i32 = arith.constant 1 : i32
    %49 = arith.index_cast %c1_i32 : i32 to index
    %c0_22 = arith.constant 0 : index
    %c0_23 = arith.constant 0 : index
    %50 = vector.load %arg13[%49, %c0_22, %c0_23] : memref<8x8x384xf32, #tpu.memory_space<vmem>>, vector<1x8x384xf32>
    %51 = vector.shape_cast %50 : vector<1x8x384xf32> to vector<8x384xf32>
    %cst_24 = arith.constant dense<0.000000e+00> : vector<8x384xf32>
    %52 = tpu.matmul %44, %9, %cst_24 {dimension_numbers = #tpu.dot_dimension_numbers<[1], [0], [0], [1], [0, 0, 1, 1], [], []>} : vector<8x128xf32>, vector<128x384xf32>, vector<8x384xf32> -> vector<8x384xf32>
    %53 = vector.extract_strided_slice %51 {offsets = [0, 0], sizes = [8, 128], strides = [1, 1]} : vector<8x384xf32> to vector<8x128xf32>
    %54 = vector.extract_strided_slice %52 {offsets = [0, 0], sizes = [8, 128], strides = [1, 1]} : vector<8x384xf32> to vector<8x128xf32>
    %55 = arith.addf %53, %54 : vector<8x128xf32>
    %56 = arith.negf %55 : vector<8x128xf32>
    %57 = math.exp %56 : vector<8x128xf32>
    %cst_25 = arith.constant 1.000000e+00 : f32
    %58 = vector.broadcast %cst_25 : f32 to vector<8x128xf32>
    %59 = arith.addf %58, %57 : vector<8x128xf32>
    %60 = arith.divf %58, %59 : vector<8x128xf32>
    %61 = vector.extract_strided_slice %51 {offsets = [0, 128], sizes = [8, 128], strides = [1, 1]} : vector<8x384xf32> to vector<8x128xf32>
    %62 = vector.extract_strided_slice %52 {offsets = [0, 128], sizes = [8, 128], strides = [1, 1]} : vector<8x384xf32> to vector<8x128xf32>
    %63 = arith.addf %61, %62 : vector<8x128xf32>
    %64 = arith.negf %63 : vector<8x128xf32>
    %65 = math.exp %64 : vector<8x128xf32>
    %cst_26 = arith.constant 1.000000e+00 : f32
    %66 = vector.broadcast %cst_26 : f32 to vector<8x128xf32>
    %67 = arith.addf %66, %65 : vector<8x128xf32>
    %68 = arith.divf %66, %67 : vector<8x128xf32>
    %69 = vector.extract_strided_slice %51 {offsets = [0, 256], sizes = [8, 128], strides = [1, 1]} : vector<8x384xf32> to vector<8x128xf32>
    %70 = vector.extract_strided_slice %52 {offsets = [0, 256], sizes = [8, 128], strides = [1, 1]} : vector<8x384xf32> to vector<8x128xf32>
    %71 = arith.addf %70, %12 : vector<8x128xf32>
    %72 = arith.mulf %60, %71 : vector<8x128xf32>
    %73 = arith.addf %69, %72 : vector<8x128xf32>
    %74 = math.tanh %73 : vector<8x128xf32>
    %cst_27 = arith.constant 1.000000e+00 : f32
    %75 = vector.broadcast %cst_27 : f32 to vector<8x128xf32>
    %76 = arith.subf %75, %68 : vector<8x128xf32>
    %77 = arith.mulf %76, %74 : vector<8x128xf32>
    %78 = arith.mulf %68, %44 : vector<8x128xf32>
    %79 = arith.addf %77, %78 : vector<8x128xf32>
    %80 = arith.index_cast %c1_i32 : i32 to index
    %c0_28 = arith.constant 0 : index
    %c0_29 = arith.constant 0 : index
    %81 = vector.load %arg14[%80, %c0_28, %c0_29] : memref<8x8x128xf32, #tpu.memory_space<vmem>>, vector<1x8x128xf32>
    %82 = vector.shape_cast %81 : vector<1x8x128xf32> to vector<8x128xf32>
    %83 = vector.shape_cast %79 : vector<8x128xf32> to vector<1x8x128xf32>
    tpu.vector_store %arg14[%80, %c0_28, %c0_29], %83 {strides = array<i32>} : memref<8x8x128xf32, #tpu.memory_space<vmem>>, vector<1x8x128xf32>,
    %c2_i32 = arith.constant 2 : i32
    %84 = arith.index_cast %c2_i32 : i32 to index
    %c0_30 = arith.constant 0 : index
    %c0_31 = arith.constant 0 : index
    %85 = vector.load %arg13[%84, %c0_30, %c0_31] : memref<8x8x384xf32, #tpu.memory_space<vmem>>, vector<1x8x384xf32>
    %86 = vector.shape_cast %85 : vector<1x8x384xf32> to vector<8x384xf32>
    %cst_32 = arith.constant dense<0.000000e+00> : vector<8x384xf32>
    %87 = tpu.matmul %79, %9, %cst_32 {dimension_numbers = #tpu.dot_dimension_numbers<[1], [0], [0], [1], [0, 0, 1, 1], [], []>} : vector<8x128xf32>, vector<128x384xf32>, vector<8x384xf32> -> vector<8x384xf32>
    %88 = vector.extract_strided_slice %86 {offsets = [0, 0], sizes = [8, 128], strides = [1, 1]} : vector<8x384xf32> to vector<8x128xf32>
    %89 = vector.extract_strided_slice %87 {offsets = [0, 0], sizes = [8, 128], strides = [1, 1]} : vector<8x384xf32> to vector<8x128xf32>
    %90 = arith.addf %88, %89 : vector<8x128xf32>
    %91 = arith.negf %90 : vector<8x128xf32>
    %92 = math.exp %91 : vector<8x128xf32>
    %cst_33 = arith.constant 1.000000e+00 : f32
    %93 = vector.broadcast %cst_33 : f32 to vector<8x128xf32>
    %94 = arith.addf %93, %92 : vector<8x128xf32>
    %95 = arith.divf %93, %94 : vector<8x128xf32>
    %96 = vector.extract_strided_slice %86 {offsets = [0, 128], sizes = [8, 128], strides = [1, 1]} : vector<8x384xf32> to vector<8x128xf32>
    %97 = vector.extract_strided_slice %87 {offsets = [0, 128], sizes = [8, 128], strides = [1, 1]} : vector<8x384xf32> to vector<8x128xf32>
    %98 = arith.addf %96, %97 : vector<8x128xf32>
    %99 = arith.negf %98 : vector<8x128xf32>
    %100 = math.exp %99 : vector<8x128xf32>
    %cst_34 = arith.constant 1.000000e+00 : f32
    %101 = vector.broadcast %cst_34 : f32 to vector<8x128xf32>
    %102 = arith.addf %101, %100 : vector<8x128xf32>
    %103 = arith.divf %101, %102 : vector<8x128xf32>
    %104 = vector.extract_strided_slice %86 {offsets = [0, 256], sizes = [8, 128], strides = [1, 1]} : vector<8x384xf32> to vector<8x128xf32>
    %105 = vector.extract_strided_slice %87 {offsets = [0, 256], sizes = [8, 128], strides = [1, 1]} : vector<8x384xf32> to vector<8x128xf32>
    %106 = arith.addf %105, %12 : vector<8x128xf32>
    %107 = arith.mulf %95, %106 : vector<8x128xf32>
    %108 = arith.addf %104, %107 : vector<8x128xf32>
    %109 = math.tanh %108 : vector<8x128xf32>
    %cst_35 = arith.constant 1.000000e+00 : f32
    %110 = vector.broadcast %cst_35 : f32 to vector<8x128xf32>
    %111 = arith.subf %110, %103 : vector<8x128xf32>
    %112 = arith.mulf %111, %109 : vector<8x128xf32>
    %113 = arith.mulf %103, %79 : vector<8x128xf32>
    %114 = arith.addf %112, %113 : vector<8x128xf32>
    %115 = arith.index_cast %c2_i32 : i32 to index
    %c0_36 = arith.constant 0 : index
    %c0_37 = arith.constant 0 : index
    %116 = vector.load %arg14[%115, %c0_36, %c0_37] : memref<8x8x128xf32, #tpu.memory_space<vmem>>, vector<1x8x128xf32>
    %117 = vector.shape_cast %116 : vector<1x8x128xf32> to vector<8x128xf32>
    %118 = vector.shape_cast %114 : vector<8x128xf32> to vector<1x8x128xf32>
    tpu.vector_store %arg14[%115, %c0_36, %c0_37], %118 {strides = array<i32>} : memref<8x8x128xf32, #tpu.memory_space<vmem>>, vector<1x8x128xf32>,
    %c3_i32 = arith.constant 3 : i32
    %119 = arith.index_cast %c3_i32 : i32 to index
    %c0_38 = arith.constant 0 : index
    %c0_39 = arith.constant 0 : index
    %120 = vector.load %arg13[%119, %c0_38, %c0_39] : memref<8x8x384xf32, #tpu.memory_space<vmem>>, vector<1x8x384xf32>
    %121 = vector.shape_cast %120 : vector<1x8x384xf32> to vector<8x384xf32>
    %cst_40 = arith.constant dense<0.000000e+00> : vector<8x384xf32>
    %122 = tpu.matmul %114, %9, %cst_40 {dimension_numbers = #tpu.dot_dimension_numbers<[1], [0], [0], [1], [0, 0, 1, 1], [], []>} : vector<8x128xf32>, vector<128x384xf32>, vector<8x384xf32> -> vector<8x384xf32>
    %123 = vector.extract_strided_slice %121 {offsets = [0, 0], sizes = [8, 128], strides = [1, 1]} : vector<8x384xf32> to vector<8x128xf32>
    %124 = vector.extract_strided_slice %122 {offsets = [0, 0], sizes = [8, 128], strides = [1, 1]} : vector<8x384xf32> to vector<8x128xf32>
    %125 = arith.addf %123, %124 : vector<8x128xf32>
    %126 = arith.negf %125 : vector<8x128xf32>
    %127 = math.exp %126 : vector<8x128xf32>
    %cst_41 = arith.constant 1.000000e+00 : f32
    %128 = vector.broadcast %cst_41 : f32 to vector<8x128xf32>
    %129 = arith.addf %128, %127 : vector<8x128xf32>
    %130 = arith.divf %128, %129 : vector<8x128xf32>
    %131 = vector.extract_strided_slice %121 {offsets = [0, 128], sizes = [8, 128], strides = [1, 1]} : vector<8x384xf32> to vector<8x128xf32>
    %132 = vector.extract_strided_slice %122 {offsets = [0, 128], sizes = [8, 128], strides = [1, 1]} : vector<8x384xf32> to vector<8x128xf32>
    %133 = arith.addf %131, %132 : vector<8x128xf32>
    %134 = arith.negf %133 : vector<8x128xf32>
    %135 = math.exp %134 : vector<8x128xf32>
    %cst_42 = arith.constant 1.000000e+00 : f32
    %136 = vector.broadcast %cst_42 : f32 to vector<8x128xf32>
    %137 = arith.addf %136, %135 : vector<8x128xf32>
    %138 = arith.divf %136, %137 : vector<8x128xf32>
    %139 = vector.extract_strided_slice %121 {offsets = [0, 256], sizes = [8, 128], strides = [1, 1]} : vector<8x384xf32> to vector<8x128xf32>
    %140 = vector.extract_strided_slice %122 {offsets = [0, 256], sizes = [8, 128], strides = [1, 1]} : vector<8x384xf32> to vector<8x128xf32>
    %141 = arith.addf %140, %12 : vector<8x128xf32>
    %142 = arith.mulf %130, %141 : vector<8x128xf32>
    %143 = arith.addf %139, %142 : vector<8x128xf32>
    %144 = math.tanh %143 : vector<8x128xf32>
    %cst_43 = arith.constant 1.000000e+00 : f32
    %145 = vector.broadcast %cst_43 : f32 to vector<8x128xf32>
    %146 = arith.subf %145, %138 : vector<8x128xf32>
    %147 = arith.mulf %146, %144 : vector<8x128xf32>
    %148 = arith.mulf %138, %114 : vector<8x128xf32>
    %149 = arith.addf %147, %148 : vector<8x128xf32>
    %150 = arith.index_cast %c3_i32 : i32 to index
    %c0_44 = arith.constant 0 : index
    %c0_45 = arith.constant 0 : index
    %151 = vector.load %arg14[%150, %c0_44, %c0_45] : memref<8x8x128xf32, #tpu.memory_space<vmem>>, vector<1x8x128xf32>
    %152 = vector.shape_cast %151 : vector<1x8x128xf32> to vector<8x128xf32>
    %153 = vector.shape_cast %149 : vector<8x128xf32> to vector<1x8x128xf32>
    tpu.vector_store %arg14[%150, %c0_44, %c0_45], %153 {strides = array<i32>} : memref<8x8x128xf32, #tpu.memory_space<vmem>>, vector<1x8x128xf32>,
    %c4_i32 = arith.constant 4 : i32
    %154 = arith.index_cast %c4_i32 : i32 to index
    %c0_46 = arith.constant 0 : index
    %c0_47 = arith.constant 0 : index
    %155 = vector.load %arg13[%154, %c0_46, %c0_47] : memref<8x8x384xf32, #tpu.memory_space<vmem>>, vector<1x8x384xf32>
    %156 = vector.shape_cast %155 : vector<1x8x384xf32> to vector<8x384xf32>
    %cst_48 = arith.constant dense<0.000000e+00> : vector<8x384xf32>
    %157 = tpu.matmul %149, %9, %cst_48 {dimension_numbers = #tpu.dot_dimension_numbers<[1], [0], [0], [1], [0, 0, 1, 1], [], []>} : vector<8x128xf32>, vector<128x384xf32>, vector<8x384xf32> -> vector<8x384xf32>
    %158 = vector.extract_strided_slice %156 {offsets = [0, 0], sizes = [8, 128], strides = [1, 1]} : vector<8x384xf32> to vector<8x128xf32>
    %159 = vector.extract_strided_slice %157 {offsets = [0, 0], sizes = [8, 128], strides = [1, 1]} : vector<8x384xf32> to vector<8x128xf32>
    %160 = arith.addf %158, %159 : vector<8x128xf32>
    %161 = arith.negf %160 : vector<8x128xf32>
    %162 = math.exp %161 : vector<8x128xf32>
    %cst_49 = arith.constant 1.000000e+00 : f32
    %163 = vector.broadcast %cst_49 : f32 to vector<8x128xf32>
    %164 = arith.addf %163, %162 : vector<8x128xf32>
    %165 = arith.divf %163, %164 : vector<8x128xf32>
    %166 = vector.extract_strided_slice %156 {offsets = [0, 128], sizes = [8, 128], strides = [1, 1]} : vector<8x384xf32> to vector<8x128xf32>
    %167 = vector.extract_strided_slice %157 {offsets = [0, 128], sizes = [8, 128], strides = [1, 1]} : vector<8x384xf32> to vector<8x128xf32>
    %168 = arith.addf %166, %167 : vector<8x128xf32>
    %169 = arith.negf %168 : vector<8x128xf32>
    %170 = math.exp %169 : vector<8x128xf32>
    %cst_50 = arith.constant 1.000000e+00 : f32
    %171 = vector.broadcast %cst_50 : f32 to vector<8x128xf32>
    %172 = arith.addf %171, %170 : vector<8x128xf32>
    %173 = arith.divf %171, %172 : vector<8x128xf32>
    %174 = vector.extract_strided_slice %156 {offsets = [0, 256], sizes = [8, 128], strides = [1, 1]} : vector<8x384xf32> to vector<8x128xf32>
    %175 = vector.extract_strided_slice %157 {offsets = [0, 256], sizes = [8, 128], strides = [1, 1]} : vector<8x384xf32> to vector<8x128xf32>
    %176 = arith.addf %175, %12 : vector<8x128xf32>
    %177 = arith.mulf %165, %176 : vector<8x128xf32>
    %178 = arith.addf %174, %177 : vector<8x128xf32>
    %179 = math.tanh %178 : vector<8x128xf32>
    %cst_51 = arith.constant 1.000000e+00 : f32
    %180 = vector.broadcast %cst_51 : f32 to vector<8x128xf32>
    %181 = arith.subf %180, %173 : vector<8x128xf32>
    %182 = arith.mulf %181, %179 : vector<8x128xf32>
    %183 = arith.mulf %173, %149 : vector<8x128xf32>
    %184 = arith.addf %182, %183 : vector<8x128xf32>
    %185 = arith.index_cast %c4_i32 : i32 to index
    %c0_52 = arith.constant 0 : index
    %c0_53 = arith.constant 0 : index
    %186 = vector.load %arg14[%185, %c0_52, %c0_53] : memref<8x8x128xf32, #tpu.memory_space<vmem>>, vector<1x8x128xf32>
    %187 = vector.shape_cast %186 : vector<1x8x128xf32> to vector<8x128xf32>
    %188 = vector.shape_cast %184 : vector<8x128xf32> to vector<1x8x128xf32>
    tpu.vector_store %arg14[%185, %c0_52, %c0_53], %188 {strides = array<i32>} : memref<8x8x128xf32, #tpu.memory_space<vmem>>, vector<1x8x128xf32>,
    %c5_i32 = arith.constant 5 : i32
    %189 = arith.index_cast %c5_i32 : i32 to index
    %c0_54 = arith.constant 0 : index
    %c0_55 = arith.constant 0 : index
    %190 = vector.load %arg13[%189, %c0_54, %c0_55] : memref<8x8x384xf32, #tpu.memory_space<vmem>>, vector<1x8x384xf32>
    %191 = vector.shape_cast %190 : vector<1x8x384xf32> to vector<8x384xf32>
    %cst_56 = arith.constant dense<0.000000e+00> : vector<8x384xf32>
    %192 = tpu.matmul %184, %9, %cst_56 {dimension_numbers = #tpu.dot_dimension_numbers<[1], [0], [0], [1], [0, 0, 1, 1], [], []>} : vector<8x128xf32>, vector<128x384xf32>, vector<8x384xf32> -> vector<8x384xf32>
    %193 = vector.extract_strided_slice %191 {offsets = [0, 0], sizes = [8, 128], strides = [1, 1]} : vector<8x384xf32> to vector<8x128xf32>
    %194 = vector.extract_strided_slice %192 {offsets = [0, 0], sizes = [8, 128], strides = [1, 1]} : vector<8x384xf32> to vector<8x128xf32>
    %195 = arith.addf %193, %194 : vector<8x128xf32>
    %196 = arith.negf %195 : vector<8x128xf32>
    %197 = math.exp %196 : vector<8x128xf32>
    %cst_57 = arith.constant 1.000000e+00 : f32
    %198 = vector.broadcast %cst_57 : f32 to vector<8x128xf32>
    %199 = arith.addf %198, %197 : vector<8x128xf32>
    %200 = arith.divf %198, %199 : vector<8x128xf32>
    %201 = vector.extract_strided_slice %191 {offsets = [0, 128], sizes = [8, 128], strides = [1, 1]} : vector<8x384xf32> to vector<8x128xf32>
    %202 = vector.extract_strided_slice %192 {offsets = [0, 128], sizes = [8, 128], strides = [1, 1]} : vector<8x384xf32> to vector<8x128xf32>
    %203 = arith.addf %201, %202 : vector<8x128xf32>
    %204 = arith.negf %203 : vector<8x128xf32>
    %205 = math.exp %204 : vector<8x128xf32>
    %cst_58 = arith.constant 1.000000e+00 : f32
    %206 = vector.broadcast %cst_58 : f32 to vector<8x128xf32>
    %207 = arith.addf %206, %205 : vector<8x128xf32>
    %208 = arith.divf %206, %207 : vector<8x128xf32>
    %209 = vector.extract_strided_slice %191 {offsets = [0, 256], sizes = [8, 128], strides = [1, 1]} : vector<8x384xf32> to vector<8x128xf32>
    %210 = vector.extract_strided_slice %192 {offsets = [0, 256], sizes = [8, 128], strides = [1, 1]} : vector<8x384xf32> to vector<8x128xf32>
    %211 = arith.addf %210, %12 : vector<8x128xf32>
    %212 = arith.mulf %200, %211 : vector<8x128xf32>
    %213 = arith.addf %209, %212 : vector<8x128xf32>
    %214 = math.tanh %213 : vector<8x128xf32>
    %cst_59 = arith.constant 1.000000e+00 : f32
    %215 = vector.broadcast %cst_59 : f32 to vector<8x128xf32>
    %216 = arith.subf %215, %208 : vector<8x128xf32>
    %217 = arith.mulf %216, %214 : vector<8x128xf32>
    %218 = arith.mulf %208, %184 : vector<8x128xf32>
    %219 = arith.addf %217, %218 : vector<8x128xf32>
    %220 = arith.index_cast %c5_i32 : i32 to index
    %c0_60 = arith.constant 0 : index
    %c0_61 = arith.constant 0 : index
    %221 = vector.load %arg14[%220, %c0_60, %c0_61] : memref<8x8x128xf32, #tpu.memory_space<vmem>>, vector<1x8x128xf32>
    %222 = vector.shape_cast %221 : vector<1x8x128xf32> to vector<8x128xf32>
    %223 = vector.shape_cast %219 : vector<8x128xf32> to vector<1x8x128xf32>
    tpu.vector_store %arg14[%220, %c0_60, %c0_61], %223 {strides = array<i32>} : memref<8x8x128xf32, #tpu.memory_space<vmem>>, vector<1x8x128xf32>,
    %c6_i32 = arith.constant 6 : i32
    %224 = arith.index_cast %c6_i32 : i32 to index
    %c0_62 = arith.constant 0 : index
    %c0_63 = arith.constant 0 : index
    %225 = vector.load %arg13[%224, %c0_62, %c0_63] : memref<8x8x384xf32, #tpu.memory_space<vmem>>, vector<1x8x384xf32>
    %226 = vector.shape_cast %225 : vector<1x8x384xf32> to vector<8x384xf32>
    %cst_64 = arith.constant dense<0.000000e+00> : vector<8x384xf32>
    %227 = tpu.matmul %219, %9, %cst_64 {dimension_numbers = #tpu.dot_dimension_numbers<[1], [0], [0], [1], [0, 0, 1, 1], [], []>} : vector<8x128xf32>, vector<128x384xf32>, vector<8x384xf32> -> vector<8x384xf32>
    %228 = vector.extract_strided_slice %226 {offsets = [0, 0], sizes = [8, 128], strides = [1, 1]} : vector<8x384xf32> to vector<8x128xf32>
    %229 = vector.extract_strided_slice %227 {offsets = [0, 0], sizes = [8, 128], strides = [1, 1]} : vector<8x384xf32> to vector<8x128xf32>
    %230 = arith.addf %228, %229 : vector<8x128xf32>
    %231 = arith.negf %230 : vector<8x128xf32>
    %232 = math.exp %231 : vector<8x128xf32>
    %cst_65 = arith.constant 1.000000e+00 : f32
    %233 = vector.broadcast %cst_65 : f32 to vector<8x128xf32>
    %234 = arith.addf %233, %232 : vector<8x128xf32>
    %235 = arith.divf %233, %234 : vector<8x128xf32>
    %236 = vector.extract_strided_slice %226 {offsets = [0, 128], sizes = [8, 128], strides = [1, 1]} : vector<8x384xf32> to vector<8x128xf32>
    %237 = vector.extract_strided_slice %227 {offsets = [0, 128], sizes = [8, 128], strides = [1, 1]} : vector<8x384xf32> to vector<8x128xf32>
    %238 = arith.addf %236, %237 : vector<8x128xf32>
    %239 = arith.negf %238 : vector<8x128xf32>
    %240 = math.exp %239 : vector<8x128xf32>
    %cst_66 = arith.constant 1.000000e+00 : f32
    %241 = vector.broadcast %cst_66 : f32 to vector<8x128xf32>
    %242 = arith.addf %241, %240 : vector<8x128xf32>
    %243 = arith.divf %241, %242 : vector<8x128xf32>
    %244 = vector.extract_strided_slice %226 {offsets = [0, 256], sizes = [8, 128], strides = [1, 1]} : vector<8x384xf32> to vector<8x128xf32>
    %245 = vector.extract_strided_slice %227 {offsets = [0, 256], sizes = [8, 128], strides = [1, 1]} : vector<8x384xf32> to vector<8x128xf32>
    %246 = arith.addf %245, %12 : vector<8x128xf32>
    %247 = arith.mulf %235, %246 : vector<8x128xf32>
    %248 = arith.addf %244, %247 : vector<8x128xf32>
    %249 = math.tanh %248 : vector<8x128xf32>
    %cst_67 = arith.constant 1.000000e+00 : f32
    %250 = vector.broadcast %cst_67 : f32 to vector<8x128xf32>
    %251 = arith.subf %250, %243 : vector<8x128xf32>
    %252 = arith.mulf %251, %249 : vector<8x128xf32>
    %253 = arith.mulf %243, %219 : vector<8x128xf32>
    %254 = arith.addf %252, %253 : vector<8x128xf32>
    %255 = arith.index_cast %c6_i32 : i32 to index
    %c0_68 = arith.constant 0 : index
    %c0_69 = arith.constant 0 : index
    %256 = vector.load %arg14[%255, %c0_68, %c0_69] : memref<8x8x128xf32, #tpu.memory_space<vmem>>, vector<1x8x128xf32>
    %257 = vector.shape_cast %256 : vector<1x8x128xf32> to vector<8x128xf32>
    %258 = vector.shape_cast %254 : vector<8x128xf32> to vector<1x8x128xf32>
    tpu.vector_store %arg14[%255, %c0_68, %c0_69], %258 {strides = array<i32>} : memref<8x8x128xf32, #tpu.memory_space<vmem>>, vector<1x8x128xf32>,
    %c7_i32 = arith.constant 7 : i32
    %259 = arith.index_cast %c7_i32 : i32 to index
    %c0_70 = arith.constant 0 : index
    %c0_71 = arith.constant 0 : index
    %260 = vector.load %arg13[%259, %c0_70, %c0_71] : memref<8x8x384xf32, #tpu.memory_space<vmem>>, vector<1x8x384xf32>
    %261 = vector.shape_cast %260 : vector<1x8x384xf32> to vector<8x384xf32>
    %cst_72 = arith.constant dense<0.000000e+00> : vector<8x384xf32>
    %262 = tpu.matmul %254, %9, %cst_72 {dimension_numbers = #tpu.dot_dimension_numbers<[1], [0], [0], [1], [0, 0, 1, 1], [], []>} : vector<8x128xf32>, vector<128x384xf32>, vector<8x384xf32> -> vector<8x384xf32>
    %263 = vector.extract_strided_slice %261 {offsets = [0, 0], sizes = [8, 128], strides = [1, 1]} : vector<8x384xf32> to vector<8x128xf32>
    %264 = vector.extract_strided_slice %262 {offsets = [0, 0], sizes = [8, 128], strides = [1, 1]} : vector<8x384xf32> to vector<8x128xf32>
    %265 = arith.addf %263, %264 : vector<8x128xf32>
    %266 = arith.negf %265 : vector<8x128xf32>
    %267 = math.exp %266 : vector<8x128xf32>
    %cst_73 = arith.constant 1.000000e+00 : f32
    %268 = vector.broadcast %cst_73 : f32 to vector<8x128xf32>
    %269 = arith.addf %268, %267 : vector<8x128xf32>
    %270 = arith.divf %268, %269 : vector<8x128xf32>
    %271 = vector.extract_strided_slice %261 {offsets = [0, 128], sizes = [8, 128], strides = [1, 1]} : vector<8x384xf32> to vector<8x128xf32>
    %272 = vector.extract_strided_slice %262 {offsets = [0, 128], sizes = [8, 128], strides = [1, 1]} : vector<8x384xf32> to vector<8x128xf32>
    %273 = arith.addf %271, %272 : vector<8x128xf32>
    %274 = arith.negf %273 : vector<8x128xf32>
    %275 = math.exp %274 : vector<8x128xf32>
    %cst_74 = arith.constant 1.000000e+00 : f32
    %276 = vector.broadcast %cst_74 : f32 to vector<8x128xf32>
    %277 = arith.addf %276, %275 : vector<8x128xf32>
    %278 = arith.divf %276, %277 : vector<8x128xf32>
    %279 = vector.extract_strided_slice %261 {offsets = [0, 256], sizes = [8, 128], strides = [1, 1]} : vector<8x384xf32> to vector<8x128xf32>
    %280 = vector.extract_strided_slice %262 {offsets = [0, 256], sizes = [8, 128], strides = [1, 1]} : vector<8x384xf32> to vector<8x128xf32>
    %281 = arith.addf %280, %12 : vector<8x128xf32>
    %282 = arith.mulf %270, %281 : vector<8x128xf32>
    %283 = arith.addf %279, %282 : vector<8x128xf32>
    %284 = math.tanh %283 : vector<8x128xf32>
    %cst_75 = arith.constant 1.000000e+00 : f32
    %285 = vector.broadcast %cst_75 : f32 to vector<8x128xf32>
    %286 = arith.subf %285, %278 : vector<8x128xf32>
    %287 = arith.mulf %286, %284 : vector<8x128xf32>
    %288 = arith.mulf %278, %254 : vector<8x128xf32>
    %289 = arith.addf %287, %288 : vector<8x128xf32>
    %290 = arith.index_cast %c7_i32 : i32 to index
    %c0_76 = arith.constant 0 : index
    %c0_77 = arith.constant 0 : index
    %291 = vector.load %arg14[%290, %c0_76, %c0_77] : memref<8x8x128xf32, #tpu.memory_space<vmem>>, vector<1x8x128xf32>
    %292 = vector.shape_cast %291 : vector<1x8x128xf32> to vector<8x128xf32>
    %293 = vector.shape_cast %289 : vector<8x128xf32> to vector<1x8x128xf32>
    tpu.vector_store %arg14[%290, %c0_76, %c0_77], %293 {strides = array<i32>} : memref<8x8x128xf32, #tpu.memory_space<vmem>>, vector<1x8x128xf32>,
    %c8_i32 = arith.constant 8 : i32
    %c0_78 = arith.constant 0 : index
    %c0_79 = arith.constant 0 : index
    %c0_80 = arith.constant 0 : index
    %294 = vector.load %arg14[%c0_78, %c0_79, %c0_80] : memref<8x8x128xf32, #tpu.memory_space<vmem>>, vector<8x8x128xf32>
    %c0_81 = arith.constant 0 : index
    %c0_82 = arith.constant 0 : index
    %295 = vector.load %arg6[%c0_81, %c0_82] : memref<128x384xf32, #tpu.memory_space<vmem>>, vector<128x384xf32>
    %296 = vector.shape_cast %294 : vector<8x8x128xf32> to vector<64x128xf32>
    %cst_83 = arith.constant dense<0.000000e+00> : vector<64x384xf32>
    %297 = tpu.matmul %296, %295, %cst_83 {dimension_numbers = #tpu.dot_dimension_numbers<[1], [0], [0], [1], [0, 0, 1, 1], [], []>} : vector<64x128xf32>, vector<128x384xf32>, vector<64x384xf32> -> vector<64x384xf32>
    %c0_84 = arith.constant 0 : index
    %c0_85 = arith.constant 0 : index
    %298 = vector.load %arg8[%c0_84, %c0_85] : memref<1x384xf32, #tpu.memory_space<vmem>>, vector<1x384xf32>
    %299 = vector.broadcast %298 : vector<1x384xf32> to vector<64x384xf32>
    %300 = arith.addf %297, %299 : vector<64x384xf32>
    %301 = vector.shape_cast %300 : vector<64x384xf32> to vector<8x8x384xf32>
    %c0_86 = arith.constant 0 : index
    %c0_87 = arith.constant 0 : index
    %c0_88 = arith.constant 0 : index
    %302 = vector.load %arg13[%c0_86, %c0_87, %c0_88] : memref<8x8x384xf32, #tpu.memory_space<vmem>>, vector<8x8x384xf32>
    tpu.vector_store %arg13[%c0_86, %c0_87, %c0_88], %301 {strides = array<i32>} : memref<8x8x384xf32, #tpu.memory_space<vmem>>, vector<8x8x384xf32>,
    %c0_89 = arith.constant 0 : index
    %c0_90 = arith.constant 0 : index
    %303 = vector.load %arg7[%c0_89, %c0_90] : memref<128x384xf32, #tpu.memory_space<vmem>>, vector<128x384xf32>
    %c0_91 = arith.constant 0 : index
    %c0_92 = arith.constant 0 : index
    %304 = vector.load %arg9[%c0_91, %c0_92] : memref<1x128xf32, #tpu.memory_space<vmem>>, vector<1x128xf32>
    %305 = vector.shape_cast %304 : vector<1x128xf32> to vector<1x128xf32>
    %306 = vector.broadcast %305 : vector<1x128xf32> to vector<8x128xf32>
    %cst_93 = arith.constant 0.000000e+00 : f32
    %307 = vector.broadcast %cst_93 : f32 to vector<8x128xf32>
    %c0_i32_94 = arith.constant 0 : i32
    %308 = arith.index_cast %c0_i32_94 : i32 to index
    %c0_95 = arith.constant 0 : index
    %c0_96 = arith.constant 0 : index
    %309 = vector.load %arg13[%308, %c0_95, %c0_96] : memref<8x8x384xf32, #tpu.memory_space<vmem>>, vector<1x8x384xf32>
    %310 = vector.shape_cast %309 : vector<1x8x384xf32> to vector<8x384xf32>
    %cst_97 = arith.constant dense<0.000000e+00> : vector<8x384xf32>
    %311 = tpu.matmul %307, %303, %cst_97 {dimension_numbers = #tpu.dot_dimension_numbers<[1], [0], [0], [1], [0, 0, 1, 1], [], []>} : vector<8x128xf32>, vector<128x384xf32>, vector<8x384xf32> -> vector<8x384xf32>
    %312 = vector.extract_strided_slice %310 {offsets = [0, 0], sizes = [8, 128], strides = [1, 1]} : vector<8x384xf32> to vector<8x128xf32>
    %313 = vector.extract_strided_slice %311 {offsets = [0, 0], sizes = [8, 128], strides = [1, 1]} : vector<8x384xf32> to vector<8x128xf32>
    %314 = arith.addf %312, %313 : vector<8x128xf32>
    %315 = arith.negf %314 : vector<8x128xf32>
    %316 = math.exp %315 : vector<8x128xf32>
    %cst_98 = arith.constant 1.000000e+00 : f32
    %317 = vector.broadcast %cst_98 : f32 to vector<8x128xf32>
    %318 = arith.addf %317, %316 : vector<8x128xf32>
    %319 = arith.divf %317, %318 : vector<8x128xf32>
    %320 = vector.extract_strided_slice %310 {offsets = [0, 128], sizes = [8, 128], strides = [1, 1]} : vector<8x384xf32> to vector<8x128xf32>
    %321 = vector.extract_strided_slice %311 {offsets = [0, 128], sizes = [8, 128], strides = [1, 1]} : vector<8x384xf32> to vector<8x128xf32>
    %322 = arith.addf %320, %321 : vector<8x128xf32>
    %323 = arith.negf %322 : vector<8x128xf32>
    %324 = math.exp %323 : vector<8x128xf32>
    %cst_99 = arith.constant 1.000000e+00 : f32
    %325 = vector.broadcast %cst_99 : f32 to vector<8x128xf32>
    %326 = arith.addf %325, %324 : vector<8x128xf32>
    %327 = arith.divf %325, %326 : vector<8x128xf32>
    %328 = vector.extract_strided_slice %310 {offsets = [0, 256], sizes = [8, 128], strides = [1, 1]} : vector<8x384xf32> to vector<8x128xf32>
    %329 = vector.extract_strided_slice %311 {offsets = [0, 256], sizes = [8, 128], strides = [1, 1]} : vector<8x384xf32> to vector<8x128xf32>
    %330 = arith.addf %329, %306 : vector<8x128xf32>
    %331 = arith.mulf %319, %330 : vector<8x128xf32>
    %332 = arith.addf %328, %331 : vector<8x128xf32>
    %333 = math.tanh %332 : vector<8x128xf32>
    %cst_100 = arith.constant 1.000000e+00 : f32
    %334 = vector.broadcast %cst_100 : f32 to vector<8x128xf32>
    %335 = arith.subf %334, %327 : vector<8x128xf32>
    %336 = arith.mulf %335, %333 : vector<8x128xf32>
    %337 = arith.mulf %327, %307 : vector<8x128xf32>
    %338 = arith.addf %336, %337 : vector<8x128xf32>
    %c1_i32_101 = arith.constant 1 : i32
    %339 = arith.index_cast %c1_i32_101 : i32 to index
    %c0_102 = arith.constant 0 : index
    %c0_103 = arith.constant 0 : index
    %340 = vector.load %arg13[%339, %c0_102, %c0_103] : memref<8x8x384xf32, #tpu.memory_space<vmem>>, vector<1x8x384xf32>
    %341 = vector.shape_cast %340 : vector<1x8x384xf32> to vector<8x384xf32>
    %cst_104 = arith.constant dense<0.000000e+00> : vector<8x384xf32>
    %342 = tpu.matmul %338, %303, %cst_104 {dimension_numbers = #tpu.dot_dimension_numbers<[1], [0], [0], [1], [0, 0, 1, 1], [], []>} : vector<8x128xf32>, vector<128x384xf32>, vector<8x384xf32> -> vector<8x384xf32>
    %343 = vector.extract_strided_slice %341 {offsets = [0, 0], sizes = [8, 128], strides = [1, 1]} : vector<8x384xf32> to vector<8x128xf32>
    %344 = vector.extract_strided_slice %342 {offsets = [0, 0], sizes = [8, 128], strides = [1, 1]} : vector<8x384xf32> to vector<8x128xf32>
    %345 = arith.addf %343, %344 : vector<8x128xf32>
    %346 = arith.negf %345 : vector<8x128xf32>
    %347 = math.exp %346 : vector<8x128xf32>
    %cst_105 = arith.constant 1.000000e+00 : f32
    %348 = vector.broadcast %cst_105 : f32 to vector<8x128xf32>
    %349 = arith.addf %348, %347 : vector<8x128xf32>
    %350 = arith.divf %348, %349 : vector<8x128xf32>
    %351 = vector.extract_strided_slice %341 {offsets = [0, 128], sizes = [8, 128], strides = [1, 1]} : vector<8x384xf32> to vector<8x128xf32>
    %352 = vector.extract_strided_slice %342 {offsets = [0, 128], sizes = [8, 128], strides = [1, 1]} : vector<8x384xf32> to vector<8x128xf32>
    %353 = arith.addf %351, %352 : vector<8x128xf32>
    %354 = arith.negf %353 : vector<8x128xf32>
    %355 = math.exp %354 : vector<8x128xf32>
    %cst_106 = arith.constant 1.000000e+00 : f32
    %356 = vector.broadcast %cst_106 : f32 to vector<8x128xf32>
    %357 = arith.addf %356, %355 : vector<8x128xf32>
    %358 = arith.divf %356, %357 : vector<8x128xf32>
    %359 = vector.extract_strided_slice %341 {offsets = [0, 256], sizes = [8, 128], strides = [1, 1]} : vector<8x384xf32> to vector<8x128xf32>
    %360 = vector.extract_strided_slice %342 {offsets = [0, 256], sizes = [8, 128], strides = [1, 1]} : vector<8x384xf32> to vector<8x128xf32>
    %361 = arith.addf %360, %306 : vector<8x128xf32>
    %362 = arith.mulf %350, %361 : vector<8x128xf32>
    %363 = arith.addf %359, %362 : vector<8x128xf32>
    %364 = math.tanh %363 : vector<8x128xf32>
    %cst_107 = arith.constant 1.000000e+00 : f32
    %365 = vector.broadcast %cst_107 : f32 to vector<8x128xf32>
    %366 = arith.subf %365, %358 : vector<8x128xf32>
    %367 = arith.mulf %366, %364 : vector<8x128xf32>
    %368 = arith.mulf %358, %338 : vector<8x128xf32>
    %369 = arith.addf %367, %368 : vector<8x128xf32>
    %c2_i32_108 = arith.constant 2 : i32
    %370 = arith.index_cast %c2_i32_108 : i32 to index
    %c0_109 = arith.constant 0 : index
    %c0_110 = arith.constant 0 : index
    %371 = vector.load %arg13[%370, %c0_109, %c0_110] : memref<8x8x384xf32, #tpu.memory_space<vmem>>, vector<1x8x384xf32>
    %372 = vector.shape_cast %371 : vector<1x8x384xf32> to vector<8x384xf32>
    %cst_111 = arith.constant dense<0.000000e+00> : vector<8x384xf32>
    %373 = tpu.matmul %369, %303, %cst_111 {dimension_numbers = #tpu.dot_dimension_numbers<[1], [0], [0], [1], [0, 0, 1, 1], [], []>} : vector<8x128xf32>, vector<128x384xf32>, vector<8x384xf32> -> vector<8x384xf32>
    %374 = vector.extract_strided_slice %372 {offsets = [0, 0], sizes = [8, 128], strides = [1, 1]} : vector<8x384xf32> to vector<8x128xf32>
    %375 = vector.extract_strided_slice %373 {offsets = [0, 0], sizes = [8, 128], strides = [1, 1]} : vector<8x384xf32> to vector<8x128xf32>
    %376 = arith.addf %374, %375 : vector<8x128xf32>
    %377 = arith.negf %376 : vector<8x128xf32>
    %378 = math.exp %377 : vector<8x128xf32>
    %cst_112 = arith.constant 1.000000e+00 : f32
    %379 = vector.broadcast %cst_112 : f32 to vector<8x128xf32>
    %380 = arith.addf %379, %378 : vector<8x128xf32>
    %381 = arith.divf %379, %380 : vector<8x128xf32>
    %382 = vector.extract_strided_slice %372 {offsets = [0, 128], sizes = [8, 128], strides = [1, 1]} : vector<8x384xf32> to vector<8x128xf32>
    %383 = vector.extract_strided_slice %373 {offsets = [0, 128], sizes = [8, 128], strides = [1, 1]} : vector<8x384xf32> to vector<8x128xf32>
    %384 = arith.addf %382, %383 : vector<8x128xf32>
    %385 = arith.negf %384 : vector<8x128xf32>
    %386 = math.exp %385 : vector<8x128xf32>
    %cst_113 = arith.constant 1.000000e+00 : f32
    %387 = vector.broadcast %cst_113 : f32 to vector<8x128xf32>
    %388 = arith.addf %387, %386 : vector<8x128xf32>
    %389 = arith.divf %387, %388 : vector<8x128xf32>
    %390 = vector.extract_strided_slice %372 {offsets = [0, 256], sizes = [8, 128], strides = [1, 1]} : vector<8x384xf32> to vector<8x128xf32>
    %391 = vector.extract_strided_slice %373 {offsets = [0, 256], sizes = [8, 128], strides = [1, 1]} : vector<8x384xf32> to vector<8x128xf32>
    %392 = arith.addf %391, %306 : vector<8x128xf32>
    %393 = arith.mulf %381, %392 : vector<8x128xf32>
    %394 = arith.addf %390, %393 : vector<8x128xf32>
    %395 = math.tanh %394 : vector<8x128xf32>
    %cst_114 = arith.constant 1.000000e+00 : f32
    %396 = vector.broadcast %cst_114 : f32 to vector<8x128xf32>
    %397 = arith.subf %396, %389 : vector<8x128xf32>
    %398 = arith.mulf %397, %395 : vector<8x128xf32>
    %399 = arith.mulf %389, %369 : vector<8x128xf32>
    %400 = arith.addf %398, %399 : vector<8x128xf32>
    %c3_i32_115 = arith.constant 3 : i32
    %401 = arith.index_cast %c3_i32_115 : i32 to index
    %c0_116 = arith.constant 0 : index
    %c0_117 = arith.constant 0 : index
    %402 = vector.load %arg13[%401, %c0_116, %c0_117] : memref<8x8x384xf32, #tpu.memory_space<vmem>>, vector<1x8x384xf32>
    %403 = vector.shape_cast %402 : vector<1x8x384xf32> to vector<8x384xf32>
    %cst_118 = arith.constant dense<0.000000e+00> : vector<8x384xf32>
    %404 = tpu.matmul %400, %303, %cst_118 {dimension_numbers = #tpu.dot_dimension_numbers<[1], [0], [0], [1], [0, 0, 1, 1], [], []>} : vector<8x128xf32>, vector<128x384xf32>, vector<8x384xf32> -> vector<8x384xf32>
    %405 = vector.extract_strided_slice %403 {offsets = [0, 0], sizes = [8, 128], strides = [1, 1]} : vector<8x384xf32> to vector<8x128xf32>
    %406 = vector.extract_strided_slice %404 {offsets = [0, 0], sizes = [8, 128], strides = [1, 1]} : vector<8x384xf32> to vector<8x128xf32>
    %407 = arith.addf %405, %406 : vector<8x128xf32>
    %408 = arith.negf %407 : vector<8x128xf32>
    %409 = math.exp %408 : vector<8x128xf32>
    %cst_119 = arith.constant 1.000000e+00 : f32
    %410 = vector.broadcast %cst_119 : f32 to vector<8x128xf32>
    %411 = arith.addf %410, %409 : vector<8x128xf32>
    %412 = arith.divf %410, %411 : vector<8x128xf32>
    %413 = vector.extract_strided_slice %403 {offsets = [0, 128], sizes = [8, 128], strides = [1, 1]} : vector<8x384xf32> to vector<8x128xf32>
    %414 = vector.extract_strided_slice %404 {offsets = [0, 128], sizes = [8, 128], strides = [1, 1]} : vector<8x384xf32> to vector<8x128xf32>
    %415 = arith.addf %413, %414 : vector<8x128xf32>
    %416 = arith.negf %415 : vector<8x128xf32>
    %417 = math.exp %416 : vector<8x128xf32>
    %cst_120 = arith.constant 1.000000e+00 : f32
    %418 = vector.broadcast %cst_120 : f32 to vector<8x128xf32>
    %419 = arith.addf %418, %417 : vector<8x128xf32>
    %420 = arith.divf %418, %419 : vector<8x128xf32>
    %421 = vector.extract_strided_slice %403 {offsets = [0, 256], sizes = [8, 128], strides = [1, 1]} : vector<8x384xf32> to vector<8x128xf32>
    %422 = vector.extract_strided_slice %404 {offsets = [0, 256], sizes = [8, 128], strides = [1, 1]} : vector<8x384xf32> to vector<8x128xf32>
    %423 = arith.addf %422, %306 : vector<8x128xf32>
    %424 = arith.mulf %412, %423 : vector<8x128xf32>
    %425 = arith.addf %421, %424 : vector<8x128xf32>
    %426 = math.tanh %425 : vector<8x128xf32>
    %cst_121 = arith.constant 1.000000e+00 : f32
    %427 = vector.broadcast %cst_121 : f32 to vector<8x128xf32>
    %428 = arith.subf %427, %420 : vector<8x128xf32>
    %429 = arith.mulf %428, %426 : vector<8x128xf32>
    %430 = arith.mulf %420, %400 : vector<8x128xf32>
    %431 = arith.addf %429, %430 : vector<8x128xf32>
    %c4_i32_122 = arith.constant 4 : i32
    %432 = arith.index_cast %c4_i32_122 : i32 to index
    %c0_123 = arith.constant 0 : index
    %c0_124 = arith.constant 0 : index
    %433 = vector.load %arg13[%432, %c0_123, %c0_124] : memref<8x8x384xf32, #tpu.memory_space<vmem>>, vector<1x8x384xf32>
    %434 = vector.shape_cast %433 : vector<1x8x384xf32> to vector<8x384xf32>
    %cst_125 = arith.constant dense<0.000000e+00> : vector<8x384xf32>
    %435 = tpu.matmul %431, %303, %cst_125 {dimension_numbers = #tpu.dot_dimension_numbers<[1], [0], [0], [1], [0, 0, 1, 1], [], []>} : vector<8x128xf32>, vector<128x384xf32>, vector<8x384xf32> -> vector<8x384xf32>
    %436 = vector.extract_strided_slice %434 {offsets = [0, 0], sizes = [8, 128], strides = [1, 1]} : vector<8x384xf32> to vector<8x128xf32>
    %437 = vector.extract_strided_slice %435 {offsets = [0, 0], sizes = [8, 128], strides = [1, 1]} : vector<8x384xf32> to vector<8x128xf32>
    %438 = arith.addf %436, %437 : vector<8x128xf32>
    %439 = arith.negf %438 : vector<8x128xf32>
    %440 = math.exp %439 : vector<8x128xf32>
    %cst_126 = arith.constant 1.000000e+00 : f32
    %441 = vector.broadcast %cst_126 : f32 to vector<8x128xf32>
    %442 = arith.addf %441, %440 : vector<8x128xf32>
    %443 = arith.divf %441, %442 : vector<8x128xf32>
    %444 = vector.extract_strided_slice %434 {offsets = [0, 128], sizes = [8, 128], strides = [1, 1]} : vector<8x384xf32> to vector<8x128xf32>
    %445 = vector.extract_strided_slice %435 {offsets = [0, 128], sizes = [8, 128], strides = [1, 1]} : vector<8x384xf32> to vector<8x128xf32>
    %446 = arith.addf %444, %445 : vector<8x128xf32>
    %447 = arith.negf %446 : vector<8x128xf32>
    %448 = math.exp %447 : vector<8x128xf32>
    %cst_127 = arith.constant 1.000000e+00 : f32
    %449 = vector.broadcast %cst_127 : f32 to vector<8x128xf32>
    %450 = arith.addf %449, %448 : vector<8x128xf32>
    %451 = arith.divf %449, %450 : vector<8x128xf32>
    %452 = vector.extract_strided_slice %434 {offsets = [0, 256], sizes = [8, 128], strides = [1, 1]} : vector<8x384xf32> to vector<8x128xf32>
    %453 = vector.extract_strided_slice %435 {offsets = [0, 256], sizes = [8, 128], strides = [1, 1]} : vector<8x384xf32> to vector<8x128xf32>
    %454 = arith.addf %453, %306 : vector<8x128xf32>
    %455 = arith.mulf %443, %454 : vector<8x128xf32>
    %456 = arith.addf %452, %455 : vector<8x128xf32>
    %457 = math.tanh %456 : vector<8x128xf32>
    %cst_128 = arith.constant 1.000000e+00 : f32
    %458 = vector.broadcast %cst_128 : f32 to vector<8x128xf32>
    %459 = arith.subf %458, %451 : vector<8x128xf32>
    %460 = arith.mulf %459, %457 : vector<8x128xf32>
    %461 = arith.mulf %451, %431 : vector<8x128xf32>
    %462 = arith.addf %460, %461 : vector<8x128xf32>
    %c5_i32_129 = arith.constant 5 : i32
    %463 = arith.index_cast %c5_i32_129 : i32 to index
    %c0_130 = arith.constant 0 : index
    %c0_131 = arith.constant 0 : index
    %464 = vector.load %arg13[%463, %c0_130, %c0_131] : memref<8x8x384xf32, #tpu.memory_space<vmem>>, vector<1x8x384xf32>
    %465 = vector.shape_cast %464 : vector<1x8x384xf32> to vector<8x384xf32>
    %cst_132 = arith.constant dense<0.000000e+00> : vector<8x384xf32>
    %466 = tpu.matmul %462, %303, %cst_132 {dimension_numbers = #tpu.dot_dimension_numbers<[1], [0], [0], [1], [0, 0, 1, 1], [], []>} : vector<8x128xf32>, vector<128x384xf32>, vector<8x384xf32> -> vector<8x384xf32>
    %467 = vector.extract_strided_slice %465 {offsets = [0, 0], sizes = [8, 128], strides = [1, 1]} : vector<8x384xf32> to vector<8x128xf32>
    %468 = vector.extract_strided_slice %466 {offsets = [0, 0], sizes = [8, 128], strides = [1, 1]} : vector<8x384xf32> to vector<8x128xf32>
    %469 = arith.addf %467, %468 : vector<8x128xf32>
    %470 = arith.negf %469 : vector<8x128xf32>
    %471 = math.exp %470 : vector<8x128xf32>
    %cst_133 = arith.constant 1.000000e+00 : f32
    %472 = vector.broadcast %cst_133 : f32 to vector<8x128xf32>
    %473 = arith.addf %472, %471 : vector<8x128xf32>
    %474 = arith.divf %472, %473 : vector<8x128xf32>
    %475 = vector.extract_strided_slice %465 {offsets = [0, 128], sizes = [8, 128], strides = [1, 1]} : vector<8x384xf32> to vector<8x128xf32>
    %476 = vector.extract_strided_slice %466 {offsets = [0, 128], sizes = [8, 128], strides = [1, 1]} : vector<8x384xf32> to vector<8x128xf32>
    %477 = arith.addf %475, %476 : vector<8x128xf32>
    %478 = arith.negf %477 : vector<8x128xf32>
    %479 = math.exp %478 : vector<8x128xf32>
    %cst_134 = arith.constant 1.000000e+00 : f32
    %480 = vector.broadcast %cst_134 : f32 to vector<8x128xf32>
    %481 = arith.addf %480, %479 : vector<8x128xf32>
    %482 = arith.divf %480, %481 : vector<8x128xf32>
    %483 = vector.extract_strided_slice %465 {offsets = [0, 256], sizes = [8, 128], strides = [1, 1]} : vector<8x384xf32> to vector<8x128xf32>
    %484 = vector.extract_strided_slice %466 {offsets = [0, 256], sizes = [8, 128], strides = [1, 1]} : vector<8x384xf32> to vector<8x128xf32>
    %485 = arith.addf %484, %306 : vector<8x128xf32>
    %486 = arith.mulf %474, %485 : vector<8x128xf32>
    %487 = arith.addf %483, %486 : vector<8x128xf32>
    %488 = math.tanh %487 : vector<8x128xf32>
    %cst_135 = arith.constant 1.000000e+00 : f32
    %489 = vector.broadcast %cst_135 : f32 to vector<8x128xf32>
    %490 = arith.subf %489, %482 : vector<8x128xf32>
    %491 = arith.mulf %490, %488 : vector<8x128xf32>
    %492 = arith.mulf %482, %462 : vector<8x128xf32>
    %493 = arith.addf %491, %492 : vector<8x128xf32>
    %c6_i32_136 = arith.constant 6 : i32
    %494 = arith.index_cast %c6_i32_136 : i32 to index
    %c0_137 = arith.constant 0 : index
    %c0_138 = arith.constant 0 : index
    %495 = vector.load %arg13[%494, %c0_137, %c0_138] : memref<8x8x384xf32, #tpu.memory_space<vmem>>, vector<1x8x384xf32>
    %496 = vector.shape_cast %495 : vector<1x8x384xf32> to vector<8x384xf32>
    %cst_139 = arith.constant dense<0.000000e+00> : vector<8x384xf32>
    %497 = tpu.matmul %493, %303, %cst_139 {dimension_numbers = #tpu.dot_dimension_numbers<[1], [0], [0], [1], [0, 0, 1, 1], [], []>} : vector<8x128xf32>, vector<128x384xf32>, vector<8x384xf32> -> vector<8x384xf32>
    %498 = vector.extract_strided_slice %496 {offsets = [0, 0], sizes = [8, 128], strides = [1, 1]} : vector<8x384xf32> to vector<8x128xf32>
    %499 = vector.extract_strided_slice %497 {offsets = [0, 0], sizes = [8, 128], strides = [1, 1]} : vector<8x384xf32> to vector<8x128xf32>
    %500 = arith.addf %498, %499 : vector<8x128xf32>
    %501 = arith.negf %500 : vector<8x128xf32>
    %502 = math.exp %501 : vector<8x128xf32>
    %cst_140 = arith.constant 1.000000e+00 : f32
    %503 = vector.broadcast %cst_140 : f32 to vector<8x128xf32>
    %504 = arith.addf %503, %502 : vector<8x128xf32>
    %505 = arith.divf %503, %504 : vector<8x128xf32>
    %506 = vector.extract_strided_slice %496 {offsets = [0, 128], sizes = [8, 128], strides = [1, 1]} : vector<8x384xf32> to vector<8x128xf32>
    %507 = vector.extract_strided_slice %497 {offsets = [0, 128], sizes = [8, 128], strides = [1, 1]} : vector<8x384xf32> to vector<8x128xf32>
    %508 = arith.addf %506, %507 : vector<8x128xf32>
    %509 = arith.negf %508 : vector<8x128xf32>
    %510 = math.exp %509 : vector<8x128xf32>
    %cst_141 = arith.constant 1.000000e+00 : f32
    %511 = vector.broadcast %cst_141 : f32 to vector<8x128xf32>
    %512 = arith.addf %511, %510 : vector<8x128xf32>
    %513 = arith.divf %511, %512 : vector<8x128xf32>
    %514 = vector.extract_strided_slice %496 {offsets = [0, 256], sizes = [8, 128], strides = [1, 1]} : vector<8x384xf32> to vector<8x128xf32>
    %515 = vector.extract_strided_slice %497 {offsets = [0, 256], sizes = [8, 128], strides = [1, 1]} : vector<8x384xf32> to vector<8x128xf32>
    %516 = arith.addf %515, %306 : vector<8x128xf32>
    %517 = arith.mulf %505, %516 : vector<8x128xf32>
    %518 = arith.addf %514, %517 : vector<8x128xf32>
    %519 = math.tanh %518 : vector<8x128xf32>
    %cst_142 = arith.constant 1.000000e+00 : f32
    %520 = vector.broadcast %cst_142 : f32 to vector<8x128xf32>
    %521 = arith.subf %520, %513 : vector<8x128xf32>
    %522 = arith.mulf %521, %519 : vector<8x128xf32>
    %523 = arith.mulf %513, %493 : vector<8x128xf32>
    %524 = arith.addf %522, %523 : vector<8x128xf32>
    %c7_i32_143 = arith.constant 7 : i32
    %525 = arith.index_cast %c7_i32_143 : i32 to index
    %c0_144 = arith.constant 0 : index
    %c0_145 = arith.constant 0 : index
    %526 = vector.load %arg13[%525, %c0_144, %c0_145] : memref<8x8x384xf32, #tpu.memory_space<vmem>>, vector<1x8x384xf32>
    %527 = vector.shape_cast %526 : vector<1x8x384xf32> to vector<8x384xf32>
    %cst_146 = arith.constant dense<0.000000e+00> : vector<8x384xf32>
    %528 = tpu.matmul %524, %303, %cst_146 {dimension_numbers = #tpu.dot_dimension_numbers<[1], [0], [0], [1], [0, 0, 1, 1], [], []>} : vector<8x128xf32>, vector<128x384xf32>, vector<8x384xf32> -> vector<8x384xf32>
    %529 = vector.extract_strided_slice %527 {offsets = [0, 0], sizes = [8, 128], strides = [1, 1]} : vector<8x384xf32> to vector<8x128xf32>
    %530 = vector.extract_strided_slice %528 {offsets = [0, 0], sizes = [8, 128], strides = [1, 1]} : vector<8x384xf32> to vector<8x128xf32>
    %531 = arith.addf %529, %530 : vector<8x128xf32>
    %532 = arith.negf %531 : vector<8x128xf32>
    %533 = math.exp %532 : vector<8x128xf32>
    %cst_147 = arith.constant 1.000000e+00 : f32
    %534 = vector.broadcast %cst_147 : f32 to vector<8x128xf32>
    %535 = arith.addf %534, %533 : vector<8x128xf32>
    %536 = arith.divf %534, %535 : vector<8x128xf32>
    %537 = vector.extract_strided_slice %527 {offsets = [0, 128], sizes = [8, 128], strides = [1, 1]} : vector<8x384xf32> to vector<8x128xf32>
    %538 = vector.extract_strided_slice %528 {offsets = [0, 128], sizes = [8, 128], strides = [1, 1]} : vector<8x384xf32> to vector<8x128xf32>
    %539 = arith.addf %537, %538 : vector<8x128xf32>
    %540 = arith.negf %539 : vector<8x128xf32>
    %541 = math.exp %540 : vector<8x128xf32>
    %cst_148 = arith.constant 1.000000e+00 : f32
    %542 = vector.broadcast %cst_148 : f32 to vector<8x128xf32>
    %543 = arith.addf %542, %541 : vector<8x128xf32>
    %544 = arith.divf %542, %543 : vector<8x128xf32>
    %545 = vector.extract_strided_slice %527 {offsets = [0, 256], sizes = [8, 128], strides = [1, 1]} : vector<8x384xf32> to vector<8x128xf32>
    %546 = vector.extract_strided_slice %528 {offsets = [0, 256], sizes = [8, 128], strides = [1, 1]} : vector<8x384xf32> to vector<8x128xf32>
    %547 = arith.addf %546, %306 : vector<8x128xf32>
    %548 = arith.mulf %536, %547 : vector<8x128xf32>
    %549 = arith.addf %545, %548 : vector<8x128xf32>
    %550 = math.tanh %549 : vector<8x128xf32>
    %cst_149 = arith.constant 1.000000e+00 : f32
    %551 = vector.broadcast %cst_149 : f32 to vector<8x128xf32>
    %552 = arith.subf %551, %544 : vector<8x128xf32>
    %553 = arith.mulf %552, %550 : vector<8x128xf32>
    %554 = arith.mulf %544, %524 : vector<8x128xf32>
    %555 = arith.addf %553, %554 : vector<8x128xf32>
    %c8_i32_150 = arith.constant 8 : i32
    %c0_151 = arith.constant 0 : index
    %c0_152 = arith.constant 0 : index
    %556 = vector.load %arg10[%c0_151, %c0_152] : memref<128x128xf32, #tpu.memory_space<vmem>>, vector<128x128xf32>
    %cst_153 = arith.constant dense<0.000000e+00> : vector<8x128xf32>
    %557 = tpu.matmul %555, %556, %cst_153 {dimension_numbers = #tpu.dot_dimension_numbers<[1], [0], [0], [1], [0, 0, 1, 1], [], []>} : vector<8x128xf32>, vector<128x128xf32>, vector<8x128xf32> -> vector<8x128xf32>
    %c0_154 = arith.constant 0 : index
    %c0_155 = arith.constant 0 : index
    %558 = vector.load %arg11[%c0_154, %c0_155] : memref<1x128xf32, #tpu.memory_space<vmem>>, vector<1x128xf32>
    %559 = vector.broadcast %558 : vector<1x128xf32> to vector<8x128xf32>
    %560 = arith.addf %557, %559 : vector<8x128xf32>
    %c0_156 = arith.constant 0 : index
    %c0_157 = arith.constant 0 : index
    %561 = vector.load %arg12[%c0_156, %c0_157] : memref<8x128xf32, #tpu.memory_space<vmem>>, vector<8x128xf32>
    tpu.vector_store %arg12[%c0_156, %c0_157], %560 {strides = array<i32>} : memref<8x128xf32, #tpu.memory_space<vmem>>, vector<8x128xf32>,
    return
  }
  func.func @transform_0(%arg0: i32) -> (i32, i32, i32) {
    %c0_i32 = arith.constant 0 : i32
    %c0_i32_0 = arith.constant 0 : i32
    %c0_i32_1 = arith.constant 0 : i32
    return %c0_i32, %arg0, %c0_i32_0 : i32, i32, i32
  }
  func.func @transform_1(%arg0: i32) -> (i32, i32) {
    %c0_i32 = arith.constant 0 : i32
    %c0_i32_0 = arith.constant 0 : i32
    %c0_i32_1 = arith.constant 0 : i32
    return %c0_i32, %c0_i32_0 : i32, i32
  }
  func.func @transform_2(%arg0: i32) -> (i32, i32) {
    %c0_i32 = arith.constant 0 : i32
    %c0_i32_0 = arith.constant 0 : i32
    %c0_i32_1 = arith.constant 0 : i32
    return %c0_i32, %c0_i32_0 : i32, i32
  }
  func.func @transform_3(%arg0: i32) -> (i32, i32) {
    %c0_i32 = arith.constant 0 : i32
    %c0_i32_0 = arith.constant 0 : i32
    %c0_i32_1 = arith.constant 0 : i32
    return %c0_i32, %c0_i32_0 : i32, i32
  }
  func.func @transform_4(%arg0: i32) -> (i32, i32) {
    %c0_i32 = arith.constant 0 : i32
    %c0_i32_0 = arith.constant 0 : i32
    %c0_i32_1 = arith.constant 0 : i32
    return %c0_i32, %c0_i32_0 : i32, i32
  }
  func.func @transform_5(%arg0: i32) -> (i32, i32) {
    %c0_i32 = arith.constant 0 : i32
    %c0_i32_0 = arith.constant 0 : i32
    %c0_i32_1 = arith.constant 0 : i32
    return %c0_i32, %c0_i32_0 : i32, i32
  }
  func.func @transform_6(%arg0: i32) -> (i32, i32) {
    %c0_i32 = arith.constant 0 : i32
    %c0_i32_0 = arith.constant 0 : i32
    %c0_i32_1 = arith.constant 0 : i32
    return %c0_i32, %c0_i32_0 : i32, i32
  }
  func.func @transform_7(%arg0: i32) -> (i32, i32) {
    %c0_i32 = arith.constant 0 : i32
    %c0_i32_0 = arith.constant 0 : i32
    %c0_i32_1 = arith.constant 0 : i32
    return %c0_i32, %c0_i32_0 : i32, i32
  }
  func.func @transform_8(%arg0: i32) -> (i32, i32) {
    %c0_i32 = arith.constant 0 : i32
    %c0_i32_0 = arith.constant 0 : i32
    %c0_i32_1 = arith.constant 0 : i32
    return %c0_i32, %c0_i32_0 : i32, i32
  }
  func.func @transform_9(%arg0: i32) -> (i32, i32) {
    %c0_i32 = arith.constant 0 : i32
    %c0_i32_0 = arith.constant 0 : i32
    %c0_i32_1 = arith.constant 0 : i32
    return %c0_i32, %c0_i32_0 : i32, i32
  }
  func.func @transform_10(%arg0: i32) -> (i32, i32) {
    %c0_i32 = arith.constant 0 : i32
    %c0_i32_0 = arith.constant 0 : i32
    %c0_i32_1 = arith.constant 0 : i32
    return %c0_i32, %c0_i32_0 : i32, i32
  }
  func.func @transform_11(%arg0: i32) -> (i32, i32) {
    %c0_i32 = arith.constant 0 : i32
    %c0_i32_0 = arith.constant 0 : i32
    return %arg0, %c0_i32 : i32, i32
  }
}

</mosaic_0001>

<llo_original>
// kernel: tpu_custom_call.1
$region0: #{tpu_custom_call.1}
  #allocation0 [shape = 'u32[]', space=smem, size = 0x4, offset = 0x4, fixed_abs, tag = 'smem constant byte address 0x4 - core index']
  #allocation1 [shape = 'u32[144,128]{1,0:T(1,128)}', space=vmem, size = 0x12000, scoped, tag = 'internal scratch']
  #allocation2 [shape = 'f32[8,8,384]{2,1,0:T(8,128)}', space=vmem, size = 0x18000, scoped, tag = 'scratch operand']
  #allocation3 [shape = 'f32[8,8,128]{2,1,0:T(8,128)}', space=vmem, size = 0x8000, scoped, tag = 'scratch operand']
  %s0 = inlined_call_operand.hbm [shape: f32[8,8,8], index: 0, kind: input, shape index: {}]
  %s1 = inlined_call_operand.hbm [shape: f32[8,384], index: 1, kind: input, shape index: {}]
  %s2 = inlined_call_operand.hbm [shape: f32[128,384], index: 2, kind: input, shape index: {}]
  %s3 = inlined_call_operand.vmem [shape: f32[1,384], index: 3, kind: input, shape index: {}]
  %s4 = inlined_call_operand.vmem [shape: f32[1,128], index: 4, kind: input, shape index: {}]
  %s5 = inlined_call_operand.hbm [shape: f32[128,384], index: 5, kind: input, shape index: {}]
  %s6 = inlined_call_operand.hbm [shape: f32[128,384], index: 6, kind: input, shape index: {}]
  %s7 = inlined_call_operand.vmem [shape: f32[1,384], index: 7, kind: input, shape index: {}]
  %s8 = inlined_call_operand.vmem [shape: f32[1,128], index: 8, kind: input, shape index: {}]
  %s9 = inlined_call_operand.hbm [shape: f32[128,128], index: 9, kind: input, shape index: {}]
  %s10 = inlined_call_operand.vmem [shape: f32[1,128], index: 10, kind: input, shape index: {}]
  %s11 = inlined_call_operand.hbm [shape: f32[8,128], index: 11, kind: output, shape index: {}]
  %s12 = sld [smem:[#allocation0]]
  $region78: #{tpu_custom_call.1} parent=0
    _
  %s14 = ssub.s32 1, %s12
  %s15 = scalar_select 0, %s14, %s12
  $region1: #{tpu_custom_call.1} parent=0
    #allocation4 [shape = 'u8[32768]{0}', space=vmem, size = 0x8000, scoped, tag = 'input window, operand 0, single buffered']
    #allocation5 [shape = 's32[1]{0}', space=sflag, size = 0x4, scoped, tag = 'scoped memory for tpu_custom_call.1']
    #allocation6 [shape = 's32[1]{0}', space=sflag, size = 0x4, scoped, tag = 'scoped memory for tpu_custom_call.1']
    #allocation7 [shape = 'u8[12288]{0}', space=vmem, size = 0x3000, scoped, tag = 'input window, operand 1, single buffered']
    #allocation8 [shape = 's32[1]{0}', space=sflag, size = 0x4, scoped, tag = 'scoped memory for tpu_custom_call.1']
    #allocation9 [shape = 'u8[196608]{0}', space=vmem, size = 0x30000, scoped, tag = 'input window, operand 2, single buffered']
    #allocation10 [shape = 'u8[196608]{0}', space=vmem, size = 0x30000, scoped, tag = 'input window, operand 5, single buffered']
    #allocation11 [shape = 's32[1]{0}', space=sflag, size = 0x4, scoped, tag = 'scoped memory for tpu_custom_call.1']
    #allocation12 [shape = 'u8[196608]{0}', space=vmem, size = 0x30000, scoped, tag = 'input window, operand 6, single buffered']
    #allocation13 [shape = 'u8[65536]{0}', space=vmem, size = 0x10000, scoped, tag = 'input window, operand 9, single buffered']
    #allocation14 [shape = 's32[1]{0}', space=sflag, size = 0x4, scoped, tag = 'scoped memory for tpu_custom_call.1']
    #allocation15 [shape = 'u8[4096]{0}', space=vmem, size = 0x1000, scoped, tag = 'output window, operand 0, single buffered']
    %16 = vsyncpa [#allocation5], 0
    %17 = vsyncpa [#allocation8], 0
    %18 = vsyncpa [#allocation11], 0
    %19 = vsyncpa [#allocation14], 0
    %20 = vsyncpa [#allocation6], 0
    // Predicated region
    $region2: #{tpu_custom_call.1} parent=1 // pred_check
      _
    $region3: #{tpu_custom_call.1} parent=1 // pred_check_branch
      %22 = sbr.rel (0) target = $region5
    $region4: #{tpu_custom_call.1} parent=1 // pred_region
      %s24 = ssub.s32 1024, 1024
      %25 = vsyncadd [#allocation5], %s24
      %s26 = sshll.u32 [#allocation4], 4
      %s27 = int_to_ptr.vmem [resolvable:$true] %s26
      %32 = dma.hbm_to_vmem [thread:$0]  %s0, 1024, %s27, [#allocation5], 128, 128, 8
    $region5: #{tpu_custom_call.1} parent=1 // pred_fallthru
      _
    // Predicated region
    $region6: #{tpu_custom_call.1} parent=1 // pred_check
      _
    $region7: #{tpu_custom_call.1} parent=1 // pred_check_branch
      %34 = sbr.rel (0) target = $region9
    $region8: #{tpu_custom_call.1} parent=1 // pred_region
      %s36 = ssub.s32 384, 384
      %37 = vsyncadd [#allocation8], %s36
      %s39 = sshll.u32 [#allocation7], 4
      %s40 = int_to_ptr.vmem [resolvable:$true] %s39
      %42 = dma.hbm_to_vmem [thread:$0]  %s1, 384, %s40, [#allocation8]
    $region9: #{tpu_custom_call.1} parent=1 // pred_fallthru
      _
    // Predicated region
    $region10: #{tpu_custom_call.1} parent=1 // pred_check
      _
    $region11: #{tpu_custom_call.1} parent=1 // pred_check_branch
      %44 = sbr.rel (0) target = $region13
    $region12: #{tpu_custom_call.1} parent=1 // pred_region
      %s46 = ssub.s32 6144, 6144
      %47 = vsyncadd [#allocation8], %s46
      %s48 = sshll.u32 [#allocation9], 4
      %s49 = int_to_ptr.vmem [resolvable:$true] %s48
      %54 = dma.hbm_to_vmem [thread:$0]  %s2, 6144, %s49, [#allocation8], 384, 384, 24
    $region13: #{tpu_custom_call.1} parent=1 // pred_fallthru
      _
    // Predicated region
    $region14: #{tpu_custom_call.1} parent=1 // pred_check
      _
    $region15: #{tpu_custom_call.1} parent=1 // pred_check_branch
      %56 = sbr.rel (0) target = $region17
    $region16: #{tpu_custom_call.1} parent=1 // pred_region
      _
    $region17: #{tpu_custom_call.1} parent=1 // pred_fallthru
      _
    // Predicated region
    $region18: #{tpu_custom_call.1} parent=1 // pred_check
      _
    $region19: #{tpu_custom_call.1} parent=1 // pred_check_branch
      %58 = sbr.rel (0) target = $region21
    $region20: #{tpu_custom_call.1} parent=1 // pred_region
      _
    $region21: #{tpu_custom_call.1} parent=1 // pred_fallthru
      _
    // Predicated region
    $region22: #{tpu_custom_call.1} parent=1 // pred_check
      _
    $region23: #{tpu_custom_call.1} parent=1 // pred_check_branch
      %60 = sbr.rel (0) target = $region25
    $region24: #{tpu_custom_call.1} parent=1 // pred_region
      %s62 = ssub.s32 6144, 6144
      %63 = vsyncadd [#allocation11], %s62
      %s64 = sshll.u32 [#allocation10], 4
      %s65 = int_to_ptr.vmem [resolvable:$true] %s64
      %70 = dma.hbm_to_vmem [thread:$0]  %s5, 6144, %s65, [#allocation11], 384, 384, 24
    $region25: #{tpu_custom_call.1} parent=1 // pred_fallthru
      _
    // Predicated region
    $region26: #{tpu_custom_call.1} parent=1 // pred_check
      _
    $region27: #{tpu_custom_call.1} parent=1 // pred_check_branch
      %72 = sbr.rel (0) target = $region29
    $region28: #{tpu_custom_call.1} parent=1 // pred_region
      %s74 = ssub.s32 6144, 6144
      %75 = vsyncadd [#allocation11], %s74
      %s76 = sshll.u32 [#allocation12], 4
      %s77 = int_to_ptr.vmem [resolvable:$true] %s76
      %82 = dma.hbm_to_vmem [thread:$0]  %s6, 6144, %s77, [#allocation11], 384, 384, 24
    $region29: #{tpu_custom_call.1} parent=1 // pred_fallthru
      _
    // Predicated region
    $region30: #{tpu_custom_call.1} parent=1 // pred_check
      _
    $region31: #{tpu_custom_call.1} parent=1 // pred_check_branch
      %84 = sbr.rel (0) target = $region33
    $region32: #{tpu_custom_call.1} parent=1 // pred_region
      _
    $region33: #{tpu_custom_call.1} parent=1 // pred_fallthru
      _
    // Predicated region
    $region34: #{tpu_custom_call.1} parent=1 // pred_check
      _
    $region35: #{tpu_custom_call.1} parent=1 // pred_check_branch
      %86 = sbr.rel (0) target = $region37
    $region36: #{tpu_custom_call.1} parent=1 // pred_region
      _
    $region37: #{tpu_custom_call.1} parent=1 // pred_fallthru
      _
    // Predicated region
    $region38: #{tpu_custom_call.1} parent=1 // pred_check
      _
    $region39: #{tpu_custom_call.1} parent=1 // pred_check_branch
      %88 = sbr.rel (0) target = $region41
    $region40: #{tpu_custom_call.1} parent=1 // pred_region
      %s90 = ssub.s32 2048, 2048
      %91 = vsyncadd [#allocation14], %s90
      %s92 = sshll.u32 [#allocation13], 4
      %s93 = int_to_ptr.vmem [resolvable:$true] %s92
      %98 = dma.hbm_to_vmem [thread:$0]  %s9, 2048, %s93, [#allocation14], 128, 128, 8
    $region41: #{tpu_custom_call.1} parent=1 // pred_fallthru
      _
    // Predicated region
    $region42: #{tpu_custom_call.1} parent=1 // pred_check
      _
    $region43: #{tpu_custom_call.1} parent=1 // pred_check_branch
      %100 = sbr.rel (0) target = $region45
    $region44: #{tpu_custom_call.1} parent=1 // pred_region
      _
    $region45: #{tpu_custom_call.1} parent=1 // pred_fallthru
      _
    // Predicated region
    $region46: #{tpu_custom_call.1} parent=1 // pred_check
      _
    $region47: #{tpu_custom_call.1} parent=1 // pred_check_branch
      %102 = sbr.rel (0) target = $region49
    $region48: #{tpu_custom_call.1} parent=1 // pred_region
      %103 = dma.done [#allocation5], 1024
    $region49: #{tpu_custom_call.1} parent=1 // pred_fallthru
      _
    // Predicated region
    $region50: #{tpu_custom_call.1} parent=1 // pred_check
      _
    $region51: #{tpu_custom_call.1} parent=1 // pred_check_branch
      %105 = sbr.rel (0) target = $region53
    $region52: #{tpu_custom_call.1} parent=1 // pred_region
      %106 = dma.done [#allocation8], 384
    $region53: #{tpu_custom_call.1} parent=1 // pred_fallthru
      _
    // Predicated region
    $region54: #{tpu_custom_call.1} parent=1 // pred_check
      _
    $region55: #{tpu_custom_call.1} parent=1 // pred_check_branch
      %108 = sbr.rel (0) target = $region57
    $region56: #{tpu_custom_call.1} parent=1 // pred_region
      %109 = dma.done [#allocation8], 6144
    $region57: #{tpu_custom_call.1} parent=1 // pred_fallthru
      _
    // Predicated region
    $region58: #{tpu_custom_call.1} parent=1 // pred_check
      _
    $region59: #{tpu_custom_call.1} parent=1 // pred_check_branch
      %111 = sbr.rel (0) target = $region61
    $region60: #{tpu_custom_call.1} parent=1 // pred_region
      %112 = dma.done [#allocation11], 6144
    $region61: #{tpu_custom_call.1} parent=1 // pred_fallthru
      _
    // Predicated region
    $region62: #{tpu_custom_call.1} parent=1 // pred_check
      _
    $region63: #{tpu_custom_call.1} parent=1 // pred_check_branch
      %114 = sbr.rel (0) target = $region65
    $region64: #{tpu_custom_call.1} parent=1 // pred_region
      %115 = dma.done [#allocation11], 6144
    $region65: #{tpu_custom_call.1} parent=1 // pred_fallthru
      _
    // Predicated region
    $region66: #{tpu_custom_call.1} parent=1 // pred_check
      _
    $region67: #{tpu_custom_call.1} parent=1 // pred_check_branch
      %117 = sbr.rel (0) target = $region69
    $region68: #{tpu_custom_call.1} parent=1 // pred_region
      %118 = dma.done [#allocation14], 2048
    $region69: #{tpu_custom_call.1} parent=1 // pred_fallthru
      _
    %v119 = vld [vmem:[#allocation4] sm:$0xff]
    %v120 = vld [vmem:[#allocation4 + $0x8] sm:$0xff]
    %v121 = vld [vmem:[#allocation4 + $0x10] sm:$0xff]
    %v122 = vld [vmem:[#allocation4 + $0x18] sm:$0xff]
    %v123 = vld [vmem:[#allocation4 + $0x20] sm:$0xff]
    %v124 = vld [vmem:[#allocation4 + $0x28] sm:$0xff]
    %v125 = vld [vmem:[#allocation4 + $0x30] sm:$0xff]
    %v126 = vld [vmem:[#allocation4 + $0x38] sm:$0xff]
    %v127 = vld [vmem:[#allocation7] sm:$0xff]
    %v128 = vld [vmem:[#allocation7 + $0x8] sm:$0xff]
    %v129 = vld [vmem:[#allocation7 + $0x10] sm:$0xff]
    %v130 = vld [vmem:[%s3] sm:$0x7]
    %v132 = vlaneseq
    %v133 = vshrl.u32 %v132, 7
    %v134 = vsub.s32 0, %v133
    %v135 = vrot.slane %v130, %v134
    %v136 = vlaneseq
    %v137 = vshrl.u32 %v136, 7
    %v138 = vsub.s32 1, %v137
    %v139 = vrot.slane %v130, %v138
    %v140 = vlaneseq
    %v141 = vshrl.u32 %v140, 7
    %v142 = vsub.s32 2, %v141
    %v143 = vrot.slane %v130, %v142
    %vm147 = vcmask 64512
    %v149 = vsel %vm147, %v119, 0
    %v152 = vsel %vm147, %v120, 0
    %v155 = vsel %vm147, %v121, 0
    %v158 = vsel %vm147, %v122, 0
    %v161 = vsel %vm147, %v123, 0
    %v164 = vsel %vm147, %v124, 0
    %v167 = vsel %vm147, %v125, 0
    %v170 = vsel %vm147, %v126, 0
    %172 = vmatprep.subr.mxu0 0.0
    %173 = vmatpush1.msra.mxu0 0.0
    %174 = vmatprep.subr.mxu0 0.0
    %175 = vmatpush1.msra.mxu0 0.0
    %176 = vmatprep.subr.mxu0 0.0
    %177 = vmatpush1.msra.mxu0 0.0
    %178 = vmatprep.subr.mxu0 0.0
    %179 = vmatpush1.msra.mxu0 0.0
    %180 = vmatprep.subr.mxu0 0.0
    %181 = vmatpush1.msra.mxu0 0.0
    %182 = vmatprep.subr.mxu0 0.0
    %183 = vmatpush1.msra.mxu0 0.0
    %184 = vmatprep.subr.mxu0 0.0
    %185 = vmatpush1.msra.mxu0 0.0
    %186 = vmatprep.subr.mxu0 0.0
    %187 = vmatpush1.msra.mxu0 0.0
    %188 = vmatprep.subr.mxu0 0.0
    %189 = vmatpush1.msra.mxu0 0.0
    %190 = vmatprep.subr.mxu0 0.0
    %191 = vmatpush1.msra.mxu0 0.0
    %192 = vmatprep.subr.mxu0 0.0
    %193 = vmatpush1.msra.mxu0 0.0
    %194 = vmatprep.subr.mxu0 0.0
    %195 = vmatpush1.msra.mxu0 0.0
    %196 = vmatprep.subr.mxu0 0.0
    %197 = vmatpush1.msra.mxu0 0.0
    %198 = vmatprep.subr.mxu0 0.0
    %199 = vmatpush1.msra.mxu0 0.0
    %200 = vmatprep.subr.mxu0 0.0
    %201 = vmatpush1.msra.mxu0 0.0
    %202 = vmatprep.subr.mxu0 %v128
    %203 = vmatpush1.msra.mxu0 %v127
    %204 = vmatprep.subr.mxu0 0.0
    %205 = vmatpush2.msra.mxu0 0.0
    %206 = vmatprep.subr.mxu0 0.0
    %207 = vmatpush2.msra.mxu0 0.0
    %208 = vmatprep.subr.mxu0 0.0
    %209 = vmatpush2.msra.mxu0 0.0
    %210 = vmatprep.subr.mxu0 0.0
    %211 = vmatpush2.msra.mxu0 0.0
    %212 = vmatprep.subr.mxu0 0.0
    %213 = vmatpush2.msra.mxu0 0.0
    %214 = vmatprep.subr.mxu0 0.0
    %215 = vmatpush2.msra.mxu0 0.0
    %216 = vmatprep.subr.mxu0 0.0
    %217 = vmatpush2.msra.mxu0 0.0
    %218 = vmatprep.subr.mxu0 0.0
    %219 = vmatpush2.msra.mxu0 0.0
    %220 = vmatprep.subr.mxu0 0.0
    %221 = vmatpush2.msra.mxu0 0.0
    %222 = vmatprep.subr.mxu0 0.0
    %223 = vmatpush2.msra.mxu0 0.0
    %224 = vmatprep.subr.mxu0 0.0
    %225 = vmatpush2.msra.mxu0 0.0
    %226 = vmatprep.subr.mxu0 0.0
    %227 = vmatpush2.msra.mxu0 0.0
    %228 = vmatprep.subr.mxu0 0.0
    %229 = vmatpush2.msra.mxu0 0.0
    %230 = vmatprep.subr.mxu0 0.0
    %231 = vmatpush2.msra.mxu0 0.0
    %232 = vmatprep.subr.mxu0 0.0
    %233 = vmatpush2.msra.mxu0 0.0
    %234 = vmatprep.subr.mxu0 0.0
    %235 = vmatpush2.msra.mxu0 0.0
    %236 = vmatprep.mubr.f32.mxu0 0.0
    %237 = vmatmul.mubr.f32.gmra.mxu0 %v149
    %v238 = vpop.f32.mrf.mxu0
    %v239 = vadd.f32 %v135, %v238
    %v240 = vpop.f32.mrf.mxu0
    %v241 = vadd.f32 %v139, %v240
    %242 = vmatprep.mubr.f32.mxu0 0.0
    %243 = vmatmul.mubr.f32.gmra.mxu0 %v152
    %v244 = vpop.f32.mrf.mxu0
    %v245 = vadd.f32 %v135, %v244
    %v246 = vpop.f32.mrf.mxu0
    %v247 = vadd.f32 %v139, %v246
    %248 = vmatprep.mubr.f32.mxu0 0.0
    %249 = vmatmul.mubr.f32.gmra.mxu0 %v155
    %v250 = vpop.f32.mrf.mxu0
    %v251 = vadd.f32 %v135, %v250
    %v252 = vpop.f32.mrf.mxu0
    %v253 = vadd.f32 %v139, %v252
    %254 = vmatprep.mubr.f32.mxu0 0.0
    %255 = vmatmul.mubr.f32.gmra.mxu0 %v158
    %v256 = vpop.f32.mrf.mxu0
    %v257 = vadd.f32 %v135, %v256
    %v258 = vpop.f32.mrf.mxu0
    %v259 = vadd.f32 %v139, %v258
    %260 = vmatprep.mubr.f32.mxu0 0.0
    %261 = vmatmul.mubr.f32.gmra.mxu0 %v161
    %v262 = vpop.f32.mrf.mxu0
    %v263 = vadd.f32 %v135, %v262
    %v264 = vpop.f32.mrf.mxu0
    %v265 = vadd.f32 %v139, %v264
    %266 = vmatprep.mubr.f32.mxu0 0.0
    %267 = vmatmul.mubr.f32.gmra.mxu0 %v164
    %v268 = vpop.f32.mrf.mxu0
    %v269 = vadd.f32 %v135, %v268
    %v270 = vpop.f32.mrf.mxu0
    %v271 = vadd.f32 %v139, %v270
    %272 = vmatprep.mubr.f32.mxu0 0.0
    %273 = vmatmul.mubr.f32.gmra.mxu0 %v167
    %v274 = vpop.f32.mrf.mxu0
    %v275 = vadd.f32 %v135, %v274
    %v276 = vpop.f32.mrf.mxu0
    %v277 = vadd.f32 %v139, %v276
    %278 = vmatprep.mubr.f32.mxu0 0.0
    %279 = vmatmul.mubr.f32.gmra.mxu0 %v170
    %v280 = vpop.f32.mrf.mxu0
    %v281 = vadd.f32 %v135, %v280
    %v282 = vpop.f32.mrf.mxu0
    %v283 = vadd.f32 %v139, %v282
    %284 = vdwg.mxu0
    %285 = vmatprep.subr.mxu0 0.0
    %286 = vmatpush1.msra.mxu0 0.0
    %287 = vmatprep.subr.mxu0 0.0
    %288 = vmatpush1.msra.mxu0 0.0
    %289 = vmatprep.subr.mxu0 0.0
    %290 = vmatpush1.msra.mxu0 0.0
    %291 = vmatprep.subr.mxu0 0.0
    %292 = vmatpush1.msra.mxu0 0.0
    %293 = vmatprep.subr.mxu0 0.0
    %294 = vmatpush1.msra.mxu0 0.0
    %295 = vmatprep.subr.mxu0 0.0
    %296 = vmatpush1.msra.mxu0 0.0
    %297 = vmatprep.subr.mxu0 0.0
    %298 = vmatpush1.msra.mxu0 0.0
    %299 = vmatprep.subr.mxu0 0.0
    %300 = vmatpush1.msra.mxu0 0.0
    %301 = vmatprep.subr.mxu0 0.0
    %302 = vmatpush1.msra.mxu0 0.0
    %303 = vmatprep.subr.mxu0 0.0
    %304 = vmatpush1.msra.mxu0 0.0
    %305 = vmatprep.subr.mxu0 0.0
    %306 = vmatpush1.msra.mxu0 0.0
    %307 = vmatprep.subr.mxu0 0.0
    %308 = vmatpush1.msra.mxu0 0.0
    %309 = vmatprep.subr.mxu0 0.0
    %310 = vmatpush1.msra.mxu0 0.0
    %311 = vmatprep.subr.mxu0 0.0
    %312 = vmatpush1.msra.mxu0 0.0
    %313 = vmatprep.subr.mxu0 0.0
    %314 = vmatpush1.msra.mxu0 0.0
    %315 = vmatprep.subr.mxu0 0.0
    %316 = vmatpush1.msra.mxu0 %v129
    %317 = vmatprep.subr.mxu0 0.0
    %318 = vmatpush2.msra.mxu0 0.0
    %319 = vmatprep.subr.mxu0 0.0
    %320 = vmatpush2.msra.mxu0 0.0
    %321 = vmatprep.subr.mxu0 0.0
    %322 = vmatpush2.msra.mxu0 0.0
    %323 = vmatprep.subr.mxu0 0.0
    %324 = vmatpush2.msra.mxu0 0.0
    %325 = vmatprep.subr.mxu0 0.0
    %326 = vmatpush2.msra.mxu0 0.0
    %327 = vmatprep.subr.mxu0 0.0
    %328 = vmatpush2.msra.mxu0 0.0
    %329 = vmatprep.subr.mxu0 0.0
    %330 = vmatpush2.msra.mxu0 0.0
    %331 = vmatprep.subr.mxu0 0.0
    %332 = vmatpush2.msra.mxu0 0.0
    %333 = vmatprep.subr.mxu0 0.0
    %334 = vmatpush2.msra.mxu0 0.0
    %335 = vmatprep.subr.mxu0 0.0
    %336 = vmatpush2.msra.mxu0 0.0
    %337 = vmatprep.subr.mxu0 0.0
    %338 = vmatpush2.msra.mxu0 0.0
    %339 = vmatprep.subr.mxu0 0.0
    %340 = vmatpush2.msra.mxu0 0.0
    %341 = vmatprep.subr.mxu0 0.0
    %342 = vmatpush2.msra.mxu0 0.0
    %343 = vmatprep.subr.mxu0 0.0
    %344 = vmatpush2.msra.mxu0 0.0
    %345 = vmatprep.subr.mxu0 0.0
    %346 = vmatpush2.msra.mxu0 0.0
    %347 = vmatprep.subr.mxu0 0.0
    %348 = vmatpush2.msra.mxu0 0.0
    %349 = vmatprep.mubr.f32.mxu0 0.0
    %350 = vmatmul.mubr.f32.gmra.mxu0 %v149
    %v351 = vpop.f32.mrf.mxu0
    %v352 = vadd.f32 %v143, %v351
    %v353 = vpop.f32.mrf.mxu0
    %354 = vmatprep.mubr.f32.mxu0 0.0
    %355 = vmatmul.mubr.f32.gmra.mxu0 %v152
    %v356 = vpop.f32.mrf.mxu0
    %v357 = vadd.f32 %v143, %v356
    %v358 = vpop.f32.mrf.mxu0
    %359 = vmatprep.mubr.f32.mxu0 0.0
    %360 = vmatmul.mubr.f32.gmra.mxu0 %v155
    %v361 = vpop.f32.mrf.mxu0
    %v362 = vadd.f32 %v143, %v361
    %v363 = vpop.f32.mrf.mxu0
    %364 = vmatprep.mubr.f32.mxu0 0.0
    %365 = vmatmul.mubr.f32.gmra.mxu0 %v158
    %v366 = vpop.f32.mrf.mxu0
    %v367 = vadd.f32 %v143, %v366
    %v368 = vpop.f32.mrf.mxu0
    %369 = vmatprep.mubr.f32.mxu0 0.0
    %370 = vmatmul.mubr.f32.gmra.mxu0 %v161
    %v371 = vpop.f32.mrf.mxu0
    %v372 = vadd.f32 %v143, %v371
    %v373 = vpop.f32.mrf.mxu0
    %374 = vmatprep.mubr.f32.mxu0 0.0
    %375 = vmatmul.mubr.f32.gmra.mxu0 %v164
    %v376 = vpop.f32.mrf.mxu0
    %v377 = vadd.f32 %v143, %v376
    %v378 = vpop.f32.mrf.mxu0
    %379 = vmatprep.mubr.f32.mxu0 0.0
    %380 = vmatmul.mubr.f32.gmra.mxu0 %v167
    %v381 = vpop.f32.mrf.mxu0
    %v382 = vadd.f32 %v143, %v381
    %v383 = vpop.f32.mrf.mxu0
    %384 = vmatprep.mubr.f32.mxu0 0.0
    %385 = vmatmul.mubr.f32.gmra.mxu0 %v170
    %v386 = vpop.f32.mrf.mxu0
    %v387 = vadd.f32 %v143, %v386
    %v388 = vpop.f32.mrf.mxu0
    %389 = vdwg.mxu0
    %390 = vst [vmem:[#allocation2] sm:$0xff] %v239
    %391 = vst [vmem:[#allocation2 + $0x8] sm:$0xff] %v241
    %392 = vst [vmem:[#allocation2 + $0x10] sm:$0xff] %v352
    %393 = vst [vmem:[#allocation2 + $0x18] sm:$0xff] %v245
    %394 = vst [vmem:[#allocation2 + $0x20] sm:$0xff] %v247
    %395 = vst [vmem:[#allocation2 + $0x28] sm:$0xff] %v357
    %396 = vst [vmem:[#allocation2 + $0x30] sm:$0xff] %v251
    %397 = vst [vmem:[#allocation2 + $0x38] sm:$0xff] %v253
    %398 = vst [vmem:[#allocation2 + $0x40] sm:$0xff] %v362
    %399 = vst [vmem:[#allocation2 + $0x48] sm:$0xff] %v257
    %400 = vst [vmem:[#allocation2 + $0x50] sm:$0xff] %v259
    %401 = vst [vmem:[#allocation2 + $0x58] sm:$0xff] %v367
    %402 = vst [vmem:[#allocation2 + $0x60] sm:$0xff] %v263
    %403 = vst [vmem:[#allocation2 + $0x68] sm:$0xff] %v265
    %404 = vst [vmem:[#allocation2 + $0x70] sm:$0xff] %v372
    %405 = vst [vmem:[#allocation2 + $0x78] sm:$0xff] %v269
    %406 = vst [vmem:[#allocation2 + $0x80] sm:$0xff] %v271
    %407 = vst [vmem:[#allocation2 + $0x88] sm:$0xff] %v377
    %408 = vst [vmem:[#allocation2 + $0x90] sm:$0xff] %v275
    %409 = vst [vmem:[#allocation2 + $0x98] sm:$0xff] %v277
    %410 = vst [vmem:[#allocation2 + $0xa0] sm:$0xff] %v382
    %411 = vst [vmem:[#allocation2 + $0xa8] sm:$0xff] %v281
    %412 = vst [vmem:[#allocation2 + $0xb0] sm:$0xff] %v283
    %413 = vst [vmem:[#allocation2 + $0xb8] sm:$0xff] %v387
    %v414 = vld [vmem:[#allocation9] sm:$0xff]
    %v415 = vld [vmem:[#allocation9 + $0x8] sm:$0xff]
    %v416 = vld [vmem:[#allocation9 + $0x10] sm:$0xff]
    %v417 = vld [vmem:[#allocation9 + $0x18] sm:$0xff]
    %v418 = vld [vmem:[#allocation9 + $0x20] sm:$0xff]
    %v419 = vld [vmem:[#allocation9 + $0x28] sm:$0xff]
    %v420 = vld [vmem:[#allocation9 + $0x30] sm:$0xff]
    %v421 = vld [vmem:[#allocation9 + $0x38] sm:$0xff]
    %v422 = vld [vmem:[#allocation9 + $0x40] sm:$0xff]
    %v423 = vld [vmem:[#allocation9 + $0x48] sm:$0xff]
    %v424 = vld [vmem:[#allocation9 + $0x50] sm:$0xff]
    %v425 = vld [vmem:[#allocation9 + $0x58] sm:$0xff]
    %v426 = vld [vmem:[#allocation9 + $0x60] sm:$0xff]
    %v427 = vld [vmem:[#allocation9 + $0x68] sm:$0xff]
    %v428 = vld [vmem:[#allocation9 + $0x70] sm:$0xff]
    %v429 = vld [vmem:[#allocation9 + $0x78] sm:$0xff]
    %v430 = vld [vmem:[#allocation9 + $0x80] sm:$0xff]
    %v431 = vld [vmem:[#allocation9 + $0x88] sm:$0xff]
    %v432 = vld [vmem:[#allocation9 + $0x90] sm:$0xff]
    %v433 = vld [vmem:[#allocation9 + $0x98] sm:$0xff]
    %v434 = vld [vmem:[#allocation9 + $0xa0] sm:$0xff]
    %v435 = vld [vmem:[#allocation9 + $0xa8] sm:$0xff]
    %v436 = vld [vmem:[#allocation9 + $0xb0] sm:$0xff]
    %v437 = vld [vmem:[#allocation9 + $0xb8] sm:$0xff]
    %v438 = vld [vmem:[#allocation9 + $0xc0] sm:$0xff]
    %v439 = vld [vmem:[#allocation9 + $0xc8] sm:$0xff]
    %v440 = vld [vmem:[#allocation9 + $0xd0] sm:$0xff]
    %v441 = vld [vmem:[#allocation9 + $0xd8] sm:$0xff]
    %v442 = vld [vmem:[#allocation9 + $0xe0] sm:$0xff]
    %v443 = vld [vmem:[#allocation9 + $0xe8] sm:$0xff]
    %v444 = vld [vmem:[#allocation9 + $0xf0] sm:$0xff]
    %v445 = vld [vmem:[#allocation9 + $0xf8] sm:$0xff]
    %v446 = vld [vmem:[#allocation9 + $0x100] sm:$0xff]
    %v447 = vld [vmem:[#allocation9 + $0x108] sm:$0xff]
    %v448 = vld [vmem:[#allocation9 + $0x110] sm:$0xff]
    %v449 = vld [vmem:[#allocation9 + $0x118] sm:$0xff]
    %v450 = vld [vmem:[#allocation9 + $0x120] sm:$0xff]
    %v451 = vld [vmem:[#allocation9 + $0x128] sm:$0xff]
    %v452 = vld [vmem:[#allocation9 + $0x130] sm:$0xff]
    %v453 = vld [vmem:[#allocation9 + $0x138] sm:$0xff]
    %v454 = vld [vmem:[#allocation9 + $0x140] sm:$0xff]
    %v455 = vld [vmem:[#allocation9 + $0x148] sm:$0xff]
    %v456 = vld [vmem:[#allocation9 + $0x150] sm:$0xff]
    %v457 = vld [vmem:[#allocation9 + $0x158] sm:$0xff]
    %v458 = vld [vmem:[#allocation9 + $0x160] sm:$0xff]
    %v459 = vld [vmem:[#allocation9 + $0x168] sm:$0xff]
    %v460 = vld [vmem:[#allocation9 + $0x170] sm:$0xff]
    %v461 = vld [vmem:[#allocation9 + $0x178] sm:$0xff]
    %v462 = vld [vmem:[%s4] sm:$0x1]
    %v464 = vlaneseq
    %v465 = vshrl.u32 %v464, 7
    %v466 = vsub.s32 0, %v465
    %v467 = vrot.slane %v462, %v466
    %v469 = vld [vmem:[#allocation2] sm:$0xff]
    %v470 = vld [vmem:[#allocation2 + $0x8] sm:$0xff]
    %v471 = vld [vmem:[#allocation2 + $0x10] sm:$0xff]
    %472 = vmatprep.subr.mxu0 %v460
    %473 = vmatpush1.msra.mxu0 %v459
    %474 = vmatprep.subr.mxu0 %v457
    %475 = vmatpush1.msra.mxu0 %v456
    %476 = vmatprep.subr.mxu0 %v454
    %477 = vmatpush1.msra.mxu0 %v453
    %478 = vmatprep.subr.mxu0 %v451
    %479 = vmatpush1.msra.mxu0 %v450
    %480 = vmatprep.subr.mxu0 %v448
    %481 = vmatpush1.msra.mxu0 %v447
    %482 = vmatprep.subr.mxu0 %v445
    %483 = vmatpush1.msra.mxu0 %v444
    %484 = vmatprep.subr.mxu0 %v442
    %485 = vmatpush1.msra.mxu0 %v441
    %486 = vmatprep.subr.mxu0 %v439
    %487 = vmatpush1.msra.mxu0 %v438
    %488 = vmatprep.subr.mxu0 %v436
    %489 = vmatpush1.msra.mxu0 %v435
    %490 = vmatprep.subr.mxu0 %v433
    %491 = vmatpush1.msra.mxu0 %v432
    %492 = vmatprep.subr.mxu0 %v430
    %493 = vmatpush1.msra.mxu0 %v429
    %494 = vmatprep.subr.mxu0 %v427
    %495 = vmatpush1.msra.mxu0 %v426
    %496 = vmatprep.subr.mxu0 %v424
    %497 = vmatpush1.msra.mxu0 %v423
    %498 = vmatprep.subr.mxu0 %v421
    %499 = vmatpush1.msra.mxu0 %v420
    %500 = vmatprep.subr.mxu0 %v418
    %501 = vmatpush1.msra.mxu0 %v417
    %502 = vmatprep.subr.mxu0 %v415
    %503 = vmatpush1.msra.mxu0 %v414
    %504 = vmatprep.subr.mxu0 0.0
    %505 = vmatpush2.msra.mxu0 0.0
    %506 = vmatprep.subr.mxu0 0.0
    %507 = vmatpush2.msra.mxu0 0.0
    %508 = vmatprep.subr.mxu0 0.0
    %509 = vmatpush2.msra.mxu0 0.0
    %510 = vmatprep.subr.mxu0 0.0
    %511 = vmatpush2.msra.mxu0 0.0
    %512 = vmatprep.subr.mxu0 0.0
    %513 = vmatpush2.msra.mxu0 0.0
    %514 = vmatprep.subr.mxu0 0.0
    %515 = vmatpush2.msra.mxu0 0.0
    %516 = vmatprep.subr.mxu0 0.0
    %517 = vmatpush2.msra.mxu0 0.0
    %518 = vmatprep.subr.mxu0 0.0
    %519 = vmatpush2.msra.mxu0 0.0
    %520 = vmatprep.subr.mxu0 0.0
    %521 = vmatpush2.msra.mxu0 0.0
    %522 = vmatprep.subr.mxu0 0.0
    %523 = vmatpush2.msra.mxu0 0.0
    %524 = vmatprep.subr.mxu0 0.0
    %525 = vmatpush2.msra.mxu0 0.0
    %526 = vmatprep.subr.mxu0 0.0
    %527 = vmatpush2.msra.mxu0 0.0
    %528 = vmatprep.subr.mxu0 0.0
    %529 = vmatpush2.msra.mxu0 0.0
    %530 = vmatprep.subr.mxu0 0.0
    %531 = vmatpush2.msra.mxu0 0.0
    %532 = vmatprep.subr.mxu0 0.0
    %533 = vmatpush2.msra.mxu0 0.0
    %534 = vmatprep.subr.mxu0 0.0
    %535 = vmatpush2.msra.mxu0 0.0
    %536 = vmatprep.mubr.f32.mxu0 0.0
    %537 = vmatmul.mubr.f32.gmra.mxu0 0.0
    %v538 = vpop.f32.mrf.mxu0
    %v539 = vadd.f32 0.0, %v538
    %v540 = vpop.f32.mrf.mxu0
    %v541 = vadd.f32 0.0, %v540
    %542 = vdwg.mxu0
    %543 = vmatprep.subr.mxu0 0.0
    %544 = vmatpush1.msra.mxu0 %v461
    %545 = vmatprep.subr.mxu0 0.0
    %546 = vmatpush1.msra.mxu0 %v458
    %547 = vmatprep.subr.mxu0 0.0
    %548 = vmatpush1.msra.mxu0 %v455
    %549 = vmatprep.subr.mxu0 0.0
    %550 = vmatpush1.msra.mxu0 %v452
    %551 = vmatprep.subr.mxu0 0.0
    %552 = vmatpush1.msra.mxu0 %v449
    %553 = vmatprep.subr.mxu0 0.0
    %554 = vmatpush1.msra.mxu0 %v446
    %555 = vmatprep.subr.mxu0 0.0
    %556 = vmatpush1.msra.mxu0 %v443
    %557 = vmatprep.subr.mxu0 0.0
    %558 = vmatpush1.msra.mxu0 %v440
    %559 = vmatprep.subr.mxu0 0.0
    %560 = vmatpush1.msra.mxu0 %v437
    %561 = vmatprep.subr.mxu0 0.0
    %562 = vmatpush1.msra.mxu0 %v434
    %563 = vmatprep.subr.mxu0 0.0
    %564 = vmatpush1.msra.mxu0 %v431
    %565 = vmatprep.subr.mxu0 0.0
    %566 = vmatpush1.msra.mxu0 %v428
    %567 = vmatprep.subr.mxu0 0.0
    %568 = vmatpush1.msra.mxu0 %v425
    %569 = vmatprep.subr.mxu0 0.0
    %570 = vmatpush1.msra.mxu0 %v422
    %571 = vmatprep.subr.mxu0 0.0
    %572 = vmatpush1.msra.mxu0 %v419
    %573 = vmatprep.subr.mxu0 0.0
    %574 = vmatpush1.msra.mxu0 %v416
    %575 = vmatprep.subr.mxu0 0.0
    %576 = vmatpush2.msra.mxu0 0.0
    %577 = vmatprep.subr.mxu0 0.0
    %578 = vmatpush2.msra.mxu0 0.0
    %579 = vmatprep.subr.mxu0 0.0
    %580 = vmatpush2.msra.mxu0 0.0
    %581 = vmatprep.subr.mxu0 0.0
    %582 = vmatpush2.msra.mxu0 0.0
    %583 = vmatprep.subr.mxu0 0.0
    %584 = vmatpush2.msra.mxu0 0.0
    %585 = vmatprep.subr.mxu0 0.0
    %586 = vmatpush2.msra.mxu0 0.0
    %587 = vmatprep.subr.mxu0 0.0
    %588 = vmatpush2.msra.mxu0 0.0
    %589 = vmatprep.subr.mxu0 0.0
    %590 = vmatpush2.msra.mxu0 0.0
    %591 = vmatprep.subr.mxu0 0.0
    %592 = vmatpush2.msra.mxu0 0.0
    %593 = vmatprep.subr.mxu0 0.0
    %594 = vmatpush2.msra.mxu0 0.0
    %595 = vmatprep.subr.mxu0 0.0
    %596 = vmatpush2.msra.mxu0 0.0
    %597 = vmatprep.subr.mxu0 0.0
    %598 = vmatpush2.msra.mxu0 0.0
    %599 = vmatprep.subr.mxu0 0.0
    %600 = vmatpush2.msra.mxu0 0.0
    %601 = vmatprep.subr.mxu0 0.0
    %602 = vmatpush2.msra.mxu0 0.0
    %603 = vmatprep.subr.mxu0 0.0
    %604 = vmatpush2.msra.mxu0 0.0
    %605 = vmatprep.subr.mxu0 0.0
    %606 = vmatpush2.msra.mxu0 0.0
    %607 = vmatprep.mubr.f32.mxu0 0.0
    %608 = vmatmul.mubr.f32.gmra.mxu0 0.0
    %v609 = vpop.f32.mrf.mxu0
    %v610 = vadd.f32 0.0, %v609
    %v611 = vpop.f32.mrf.mxu0
    %612 = vdwg.mxu0
    %v613 = vadd.f32 %v469, %v539
    %v614 = vxor.u32 %v613, 2147483648
    %v615 = vmul.f32 %v614, 1.442695
    %v616 = vpow.pop %v615
    %v617 = vadd.f32 %v616, 1.0
    %v618 = vrcp.pop %v617
    %v619 = vmul.f32 1.0, %v618
    %v620 = vadd.f32 %v470, %v541
    %v621 = vxor.u32 %v620, 2147483648
    %v622 = vmul.f32 %v621, 1.442695
    %v623 = vpow.pop %v622
    %v624 = vadd.f32 %v623, 1.0
    %v625 = vrcp.pop %v624
    %v626 = vmul.f32 1.0, %v625
    %v627 = vadd.f32 %v610, %v467
    %v628 = vmul.f32 %v619, %v627
    %v629 = vadd.f32 %v471, %v628
    %v630 = vtanh.pop %v629
    %v631 = vsub.f32 1.0, %v626
    %v632 = vmul.f32 %v631, %v630
    %v633 = vmul.f32 %v626, 0.0
    %v634 = vadd.f32 %v632, %v633
    %635 = vst [vmem:[#allocation3] sm:$0xff] %v634
    %s636 = scalar_lea.vmem [#allocation2], 24
    %v637 = vld [vmem:[%s636] sm:$0xff]
    %v638 = vld [vmem:[%s636 + $0x8] sm:$0xff]
    %v639 = vld [vmem:[%s636 + $0x10] sm:$0xff]
    %640 = vmatprep.subr.mxu0 %v460
    %641 = vmatpush1.msra.mxu0 %v459
    %642 = vmatprep.subr.mxu0 %v457
    %643 = vmatpush1.msra.mxu0 %v456
    %644 = vmatprep.subr.mxu0 %v454
    %645 = vmatpush1.msra.mxu0 %v453
    %646 = vmatprep.subr.mxu0 %v451
    %647 = vmatpush1.msra.mxu0 %v450
    %648 = vmatprep.subr.mxu0 %v448
    %649 = vmatpush1.msra.mxu0 %v447
    %650 = vmatprep.subr.mxu0 %v445
    %651 = vmatpush1.msra.mxu0 %v444
    %652 = vmatprep.subr.mxu0 %v442
    %653 = vmatpush1.msra.mxu0 %v441
    %654 = vmatprep.subr.mxu0 %v439
    %655 = vmatpush1.msra.mxu0 %v438
    %656 = vmatprep.subr.mxu0 %v436
    %657 = vmatpush1.msra.mxu0 %v435
    %658 = vmatprep.subr.mxu0 %v433
    %659 = vmatpush1.msra.mxu0 %v432
    %660 = vmatprep.subr.mxu0 %v430
    %661 = vmatpush1.msra.mxu0 %v429
    %662 = vmatprep.subr.mxu0 %v427
    %663 = vmatpush1.msra.mxu0 %v426
    %664 = vmatprep.subr.mxu0 %v424
    %665 = vmatpush1.msra.mxu0 %v423
    %666 = vmatprep.subr.mxu0 %v421
    %667 = vmatpush1.msra.mxu0 %v420
    %668 = vmatprep.subr.mxu0 %v418
    %669 = vmatpush1.msra.mxu0 %v417
    %670 = vmatprep.subr.mxu0 %v415
    %671 = vmatpush1.msra.mxu0 %v414
    %672 = vmatprep.subr.mxu0 0.0
    %673 = vmatpush2.msra.mxu0 0.0
    %674 = vmatprep.subr.mxu0 0.0
    %675 = vmatpush2.msra.mxu0 0.0
    %676 = vmatprep.subr.mxu0 0.0
    %677 = vmatpush2.msra.mxu0 0.0
    %678 = vmatprep.subr.mxu0 0.0
    %679 = vmatpush2.msra.mxu0 0.0
    %680 = vmatprep.subr.mxu0 0.0
    %681 = vmatpush2.msra.mxu0 0.0
    %682 = vmatprep.subr.mxu0 0.0
    %683 = vmatpush2.msra.mxu0 0.0
    %684 = vmatprep.subr.mxu0 0.0
    %685 = vmatpush2.msra.mxu0 0.0
    %686 = vmatprep.subr.mxu0 0.0
    %687 = vmatpush2.msra.mxu0 0.0
    %688 = vmatprep.subr.mxu0 0.0
    %689 = vmatpush2.msra.mxu0 0.0
    %690 = vmatprep.subr.mxu0 0.0
    %691 = vmatpush2.msra.mxu0 0.0
    %692 = vmatprep.subr.mxu0 0.0
    %693 = vmatpush2.msra.mxu0 0.0
    %694 = vmatprep.subr.mxu0 0.0
    %695 = vmatpush2.msra.mxu0 0.0
    %696 = vmatprep.subr.mxu0 0.0
    %697 = vmatpush2.msra.mxu0 0.0
    %698 = vmatprep.subr.mxu0 0.0
    %699 = vmatpush2.msra.mxu0 0.0
    %700 = vmatprep.subr.mxu0 0.0
    %701 = vmatpush2.msra.mxu0 0.0
    %702 = vmatprep.subr.mxu0 0.0
    %703 = vmatpush2.msra.mxu0 0.0
    %704 = vmatprep.mubr.f32.mxu0 0.0
    %705 = vmatmul.mubr.f32.gmra.mxu0 %v634
    %v706 = vpop.f32.mrf.mxu0
    %v707 = vadd.f32 0.0, %v706
    %v708 = vpop.f32.mrf.mxu0
    %v709 = vadd.f32 0.0, %v708
    %710 = vdwg.mxu0
    %711 = vmatprep.subr.mxu0 0.0
    %712 = vmatpush1.msra.mxu0 %v461
    %713 = vmatprep.subr.mxu0 0.0
    %714 = vmatpush1.msra.mxu0 %v458
    %715 = vmatprep.subr.mxu0 0.0
    %716 = vmatpush1.msra.mxu0 %v455
    %717 = vmatprep.subr.mxu0 0.0
    %718 = vmatpush1.msra.mxu0 %v452
    %719 = vmatprep.subr.mxu0 0.0
    %720 = vmatpush1.msra.mxu0 %v449
    %721 = vmatprep.subr.mxu0 0.0
    %722 = vmatpush1.msra.mxu0 %v446
    %723 = vmatprep.subr.mxu0 0.0
    %724 = vmatpush1.msra.mxu0 %v443
    %725 = vmatprep.subr.mxu0 0.0
    %726 = vmatpush1.msra.mxu0 %v440
    %727 = vmatprep.subr.mxu0 0.0
    %728 = vmatpush1.msra.mxu0 %v437
    %729 = vmatprep.subr.mxu0 0.0
    %730 = vmatpush1.msra.mxu0 %v434
    %731 = vmatprep.subr.mxu0 0.0
    %732 = vmatpush1.msra.mxu0 %v431
    %733 = vmatprep.subr.mxu0 0.0
    %734 = vmatpush1.msra.mxu0 %v428
    %735 = vmatprep.subr.mxu0 0.0
    %736 = vmatpush1.msra.mxu0 %v425
    %737 = vmatprep.subr.mxu0 0.0
    %738 = vmatpush1.msra.mxu0 %v422
    %739 = vmatprep.subr.mxu0 0.0
    %740 = vmatpush1.msra.mxu0 %v419
    %741 = vmatprep.subr.mxu0 0.0
    %742 = vmatpush1.msra.mxu0 %v416
    %743 = vmatprep.subr.mxu0 0.0
    %744 = vmatpush2.msra.mxu0 0.0
    %745 = vmatprep.subr.mxu0 0.0
    %746 = vmatpush2.msra.mxu0 0.0
    %747 = vmatprep.subr.mxu0 0.0
    %748 = vmatpush2.msra.mxu0 0.0
    %749 = vmatprep.subr.mxu0 0.0
    %750 = vmatpush2.msra.mxu0 0.0
    %751 = vmatprep.subr.mxu0 0.0
    %752 = vmatpush2.msra.mxu0 0.0
    %753 = vmatprep.subr.mxu0 0.0
    %754 = vmatpush2.msra.mxu0 0.0
    %755 = vmatprep.subr.mxu0 0.0
    %756 = vmatpush2.msra.mxu0 0.0
    %757 = vmatprep.subr.mxu0 0.0
    %758 = vmatpush2.msra.mxu0 0.0
    %759 = vmatprep.subr.mxu0 0.0
    %760 = vmatpush2.msra.mxu0 0.0
    %761 = vmatprep.subr.mxu0 0.0
    %762 = vmatpush2.msra.mxu0 0.0
    %763 = vmatprep.subr.mxu0 0.0
    %764 = vmatpush2.msra.mxu0 0.0
    %765 = vmatprep.subr.mxu0 0.0
    %766 = vmatpush2.msra.mxu0 0.0
    %767 = vmatprep.subr.mxu0 0.0
    %768 = vmatpush2.msra.mxu0 0.0
    %769 = vmatprep.subr.mxu0 0.0
    %770 = vmatpush2.msra.mxu0 0.0
    %771 = vmatprep.subr.mxu0 0.0
    %772 = vmatpush2.msra.mxu0 0.0
    %773 = vmatprep.subr.mxu0 0.0
    %774 = vmatpush2.msra.mxu0 0.0
    %775 = vmatprep.mubr.f32.mxu0 0.0
    %776 = vmatmul.mubr.f32.gmra.mxu0 %v634
    %v777 = vpop.f32.mrf.mxu0
    %v778 = vadd.f32 0.0, %v777
    %v779 = vpop.f32.mrf.mxu0
    %780 = vdwg.mxu0
    %v781 = vadd.f32 %v637, %v707
    %v782 = vxor.u32 %v781, 2147483648
    %v783 = vmul.f32 %v782, 1.442695
    %v784 = vpow.pop %v783
    %v785 = vadd.f32 %v784, 1.0
    %v786 = vrcp.pop %v785
    %v787 = vmul.f32 1.0, %v786
    %v788 = vadd.f32 %v638, %v709
    %v789 = vxor.u32 %v788, 2147483648
    %v790 = vmul.f32 %v789, 1.442695
    %v791 = vpow.pop %v790
    %v792 = vadd.f32 %v791, 1.0
    %v793 = vrcp.pop %v792
    %v794 = vmul.f32 1.0, %v793
    %v795 = vadd.f32 %v778, %v467
    %v796 = vmul.f32 %v787, %v795
    %v797 = vadd.f32 %v639, %v796
    %v798 = vtanh.pop %v797
    %v799 = vsub.f32 1.0, %v794
    %v800 = vmul.f32 %v799, %v798
    %v801 = vmul.f32 %v794, %v634
    %v802 = vadd.f32 %v800, %v801
    %s803 = scalar_lea.vmem [#allocation3], 8
    %804 = vst [vmem:[%s803] sm:$0xff] %v802
    %s805 = scalar_lea.vmem [#allocation2], 48
    %v806 = vld [vmem:[%s805] sm:$0xff]
    %v807 = vld [vmem:[%s805 + $0x8] sm:$0xff]
    %v808 = vld [vmem:[%s805 + $0x10] sm:$0xff]
    %809 = vmatprep.subr.mxu0 %v460
    %810 = vmatpush1.msra.mxu0 %v459
    %811 = vmatprep.subr.mxu0 %v457
    %812 = vmatpush1.msra.mxu0 %v456
    %813 = vmatprep.subr.mxu0 %v454
    %814 = vmatpush1.msra.mxu0 %v453
    %815 = vmatprep.subr.mxu0 %v451
    %816 = vmatpush1.msra.mxu0 %v450
    %817 = vmatprep.subr.mxu0 %v448
    %818 = vmatpush1.msra.mxu0 %v447
    %819 = vmatprep.subr.mxu0 %v445
    %820 = vmatpush1.msra.mxu0 %v444
    %821 = vmatprep.subr.mxu0 %v442
    %822 = vmatpush1.msra.mxu0 %v441
    %823 = vmatprep.subr.mxu0 %v439
    %824 = vmatpush1.msra.mxu0 %v438
    %825 = vmatprep.subr.mxu0 %v436
    %826 = vmatpush1.msra.mxu0 %v435
    %827 = vmatprep.subr.mxu0 %v433
    %828 = vmatpush1.msra.mxu0 %v432
    %829 = vmatprep.subr.mxu0 %v430
    %830 = vmatpush1.msra.mxu0 %v429
    %831 = vmatprep.subr.mxu0 %v427
    %832 = vmatpush1.msra.mxu0 %v426
    %833 = vmatprep.subr.mxu0 %v424
    %834 = vmatpush1.msra.mxu0 %v423
    %835 = vmatprep.subr.mxu0 %v421
    %836 = vmatpush1.msra.mxu0 %v420
    %837 = vmatprep.subr.mxu0 %v418
    %838 = vmatpush1.msra.mxu0 %v417
    %839 = vmatprep.subr.mxu0 %v415
    %840 = vmatpush1.msra.mxu0 %v414
    %841 = vmatprep.subr.mxu0 0.0
    %842 = vmatpush2.msra.mxu0 0.0
    %843 = vmatprep.subr.mxu0 0.0
    %844 = vmatpush2.msra.mxu0 0.0
    %845 = vmatprep.subr.mxu0 0.0
    %846 = vmatpush2.msra.mxu0 0.0
    %847 = vmatprep.subr.mxu0 0.0
    %848 = vmatpush2.msra.mxu0 0.0
    %849 = vmatprep.subr.mxu0 0.0
    %850 = vmatpush2.msra.mxu0 0.0
    %851 = vmatprep.subr.mxu0 0.0
    %852 = vmatpush2.msra.mxu0 0.0
    %853 = vmatprep.subr.mxu0 0.0
    %854 = vmatpush2.msra.mxu0 0.0
    %855 = vmatprep.subr.mxu0 0.0
    %856 = vmatpush2.msra.mxu0 0.0
    %857 = vmatprep.subr.mxu0 0.0
    %858 = vmatpush2.msra.mxu0 0.0
    %859 = vmatprep.subr.mxu0 0.0
    %860 = vmatpush2.msra.mxu0 0.0
    %861 = vmatprep.subr.mxu0 0.0
    %862 = vmatpush2.msra.mxu0 0.0
    %863 = vmatprep.subr.mxu0 0.0
    %864 = vmatpush2.msra.mxu0 0.0
    %865 = vmatprep.subr.mxu0 0.0
    %866 = vmatpush2.msra.mxu0 0.0
    %867 = vmatprep.subr.mxu0 0.0
    %868 = vmatpush2.msra.mxu0 0.0
    %869 = vmatprep.subr.mxu0 0.0
    %870 = vmatpush2.msra.mxu0 0.0
    %871 = vmatprep.subr.mxu0 0.0
    %872 = vmatpush2.msra.mxu0 0.0
    %873 = vmatprep.mubr.f32.mxu0 0.0
    %874 = vmatmul.mubr.f32.gmra.mxu0 %v802
    %v875 = vpop.f32.mrf.mxu0
    %v876 = vadd.f32 0.0, %v875
    %v877 = vpop.f32.mrf.mxu0
    %v878 = vadd.f32 0.0, %v877
    %879 = vdwg.mxu0
    %880 = vmatprep.subr.mxu0 0.0
    %881 = vmatpush1.msra.mxu0 %v461
    %882 = vmatprep.subr.mxu0 0.0
    %883 = vmatpush1.msra.mxu0 %v458
    %884 = vmatprep.subr.mxu0 0.0
    %885 = vmatpush1.msra.mxu0 %v455
    %886 = vmatprep.subr.mxu0 0.0
    %887 = vmatpush1.msra.mxu0 %v452
    %888 = vmatprep.subr.mxu0 0.0
    %889 = vmatpush1.msra.mxu0 %v449
    %890 = vmatprep.subr.mxu0 0.0
    %891 = vmatpush1.msra.mxu0 %v446
    %892 = vmatprep.subr.mxu0 0.0
    %893 = vmatpush1.msra.mxu0 %v443
    %894 = vmatprep.subr.mxu0 0.0
    %895 = vmatpush1.msra.mxu0 %v440
    %896 = vmatprep.subr.mxu0 0.0
    %897 = vmatpush1.msra.mxu0 %v437
    %898 = vmatprep.subr.mxu0 0.0
    %899 = vmatpush1.msra.mxu0 %v434
    %900 = vmatprep.subr.mxu0 0.0
    %901 = vmatpush1.msra.mxu0 %v431
    %902 = vmatprep.subr.mxu0 0.0
    %903 = vmatpush1.msra.mxu0 %v428
    %904 = vmatprep.subr.mxu0 0.0
    %905 = vmatpush1.msra.mxu0 %v425
    %906 = vmatprep.subr.mxu0 0.0
    %907 = vmatpush1.msra.mxu0 %v422
    %908 = vmatprep.subr.mxu0 0.0
    %909 = vmatpush1.msra.mxu0 %v419
    %910 = vmatprep.subr.mxu0 0.0
    %911 = vmatpush1.msra.mxu0 %v416
    %912 = vmatprep.subr.mxu0 0.0
    %913 = vmatpush2.msra.mxu0 0.0
    %914 = vmatprep.subr.mxu0 0.0
    %915 = vmatpush2.msra.mxu0 0.0
    %916 = vmatprep.subr.mxu0 0.0
    %917 = vmatpush2.msra.mxu0 0.0
    %918 = vmatprep.subr.mxu0 0.0
    %919 = vmatpush2.msra.mxu0 0.0
    %920 = vmatprep.subr.mxu0 0.0
    %921 = vmatpush2.msra.mxu0 0.0
    %922 = vmatprep.subr.mxu0 0.0
    %923 = vmatpush2.msra.mxu0 0.0
    %924 = vmatprep.subr.mxu0 0.0
    %925 = vmatpush2.msra.mxu0 0.0
    %926 = vmatprep.subr.mxu0 0.0
    %927 = vmatpush2.msra.mxu0 0.0
    %928 = vmatprep.subr.mxu0 0.0
    %929 = vmatpush2.msra.mxu0 0.0
    %930 = vmatprep.subr.mxu0 0.0
    %931 = vmatpush2.msra.mxu0 0.0
    %932 = vmatprep.subr.mxu0 0.0
    %933 = vmatpush2.msra.mxu0 0.0
    %934 = vmatprep.subr.mxu0 0.0
    %935 = vmatpush2.msra.mxu0 0.0
    %936 = vmatprep.subr.mxu0 0.0
    %937 = vmatpush2.msra.mxu0 0.0
    %938 = vmatprep.subr.mxu0 0.0
    %939 = vmatpush2.msra.mxu0 0.0
    %940 = vmatprep.subr.mxu0 0.0
    %941 = vmatpush2.msra.mxu0 0.0
    %942 = vmatprep.subr.mxu0 0.0
    %943 = vmatpush2.msra.mxu0 0.0
    %944 = vmatprep.mubr.f32.mxu0 0.0
    %945 = vmatmul.mubr.f32.gmra.mxu0 %v802
    %v946 = vpop.f32.mrf.mxu0
    %v947 = vadd.f32 0.0, %v946
    %v948 = vpop.f32.mrf.mxu0
    %949 = vdwg.mxu0
    %v950 = vadd.f32 %v806, %v876
    %v951 = vxor.u32 %v950, 2147483648
    %v952 = vmul.f32 %v951, 1.442695
    %v953 = vpow.pop %v952
    %v954 = vadd.f32 %v953, 1.0
    %v955 = vrcp.pop %v954
    %v956 = vmul.f32 1.0, %v955
    %v957 = vadd.f32 %v807, %v878
    %v958 = vxor.u32 %v957, 2147483648
    %v959 = vmul.f32 %v958, 1.442695
    %v960 = vpow.pop %v959
    %v961 = vadd.f32 %v960, 1.0
    %v962 = vrcp.pop %v961
    %v963 = vmul.f32 1.0, %v962
    %v964 = vadd.f32 %v947, %v467
    %v965 = vmul.f32 %v956, %v964
    %v966 = vadd.f32 %v808, %v965
    %v967 = vtanh.pop %v966
    %v968 = vsub.f32 1.0, %v963
    %v969 = vmul.f32 %v968, %v967
    %v970 = vmul.f32 %v963, %v802
    %v971 = vadd.f32 %v969, %v970
    %s972 = scalar_lea.vmem [#allocation3], 16
    %973 = vst [vmem:[%s972] sm:$0xff] %v971
    %s974 = scalar_lea.vmem [#allocation2], 72
    %v975 = vld [vmem:[%s974] sm:$0xff]
    %v976 = vld [vmem:[%s974 + $0x8] sm:$0xff]
    %v977 = vld [vmem:[%s974 + $0x10] sm:$0xff]
    %978 = vmatprep.subr.mxu0 %v460
    %979 = vmatpush1.msra.mxu0 %v459
    %980 = vmatprep.subr.mxu0 %v457
    %981 = vmatpush1.msra.mxu0 %v456
    %982 = vmatprep.subr.mxu0 %v454
    %983 = vmatpush1.msra.mxu0 %v453
    %984 = vmatprep.subr.mxu0 %v451
    %985 = vmatpush1.msra.mxu0 %v450
    %986 = vmatprep.subr.mxu0 %v448
    %987 = vmatpush1.msra.mxu0 %v447
    %988 = vmatprep.subr.mxu0 %v445
    %989 = vmatpush1.msra.mxu0 %v444
    %990 = vmatprep.subr.mxu0 %v442
    %991 = vmatpush1.msra.mxu0 %v441
    %992 = vmatprep.subr.mxu0 %v439
    %993 = vmatpush1.msra.mxu0 %v438
    %994 = vmatprep.subr.mxu0 %v436
    %995 = vmatpush1.msra.mxu0 %v435
    %996 = vmatprep.subr.mxu0 %v433
    %997 = vmatpush1.msra.mxu0 %v432
    %998 = vmatprep.subr.mxu0 %v430
    %999 = vmatpush1.msra.mxu0 %v429
    %1000 = vmatprep.subr.mxu0 %v427
    %1001 = vmatpush1.msra.mxu0 %v426
    %1002 = vmatprep.subr.mxu0 %v424
    %1003 = vmatpush1.msra.mxu0 %v423
    %1004 = vmatprep.subr.mxu0 %v421
    %1005 = vmatpush1.msra.mxu0 %v420
    %1006 = vmatprep.subr.mxu0 %v418
    %1007 = vmatpush1.msra.mxu0 %v417
    %1008 = vmatprep.subr.mxu0 %v415
    %1009 = vmatpush1.msra.mxu0 %v414
    %1010 = vmatprep.subr.mxu0 0.0
    %1011 = vmatpush2.msra.mxu0 0.0
    %1012 = vmatprep.subr.mxu0 0.0
    %1013 = vmatpush2.msra.mxu0 0.0
    %1014 = vmatprep.subr.mxu0 0.0
    %1015 = vmatpush2.msra.mxu0 0.0
    %1016 = vmatprep.subr.mxu0 0.0
    %1017 = vmatpush2.msra.mxu0 0.0
    %1018 = vmatprep.subr.mxu0 0.0
    %1019 = vmatpush2.msra.mxu0 0.0
    %1020 = vmatprep.subr.mxu0 0.0
    %1021 = vmatpush2.msra.mxu0 0.0
    %1022 = vmatprep.subr.mxu0 0.0
    %1023 = vmatpush2.msra.mxu0 0.0
    %1024 = vmatprep.subr.mxu0 0.0
    %1025 = vmatpush2.msra.mxu0 0.0
    %1026 = vmatprep.subr.mxu0 0.0
    %1027 = vmatpush2.msra.mxu0 0.0
    %1028 = vmatprep.subr.mxu0 0.0
    %1029 = vmatpush2.msra.mxu0 0.0
    %1030 = vmatprep.subr.mxu0 0.0
    %1031 = vmatpush2.msra.mxu0 0.0
    %1032 = vmatprep.subr.mxu0 0.0
    %1033 = vmatpush2.msra.mxu0 0.0
    %1034 = vmatprep.subr.mxu0 0.0
    %1035 = vmatpush2.msra.mxu0 0.0
    %1036 = vmatprep.subr.mxu0 0.0
    %1037 = vmatpush2.msra.mxu0 0.0
    %1038 = vmatprep.subr.mxu0 0.0
    %1039 = vmatpush2.msra.mxu0 0.0
    %1040 = vmatprep.subr.mxu0 0.0
    %1041 = vmatpush2.msra.mxu0 0.0
    %1042 = vmatprep.mubr.f32.mxu0 0.0
    %1043 = vmatmul.mubr.f32.gmra.mxu0 %v971
    %v1044 = vpop.f32.mrf.mxu0
    %v1045 = vadd.f32 0.0, %v1044
    %v1046 = vpop.f32.mrf.mxu0
    %v1047 = vadd.f32 0.0, %v1046
    %1048 = vdwg.mxu0
    %1049 = vmatprep.subr.mxu0 0.0
    %1050 = vmatpush1.msra.mxu0 %v461
    %1051 = vmatprep.subr.mxu0 0.0
    %1052 = vmatpush1.msra.mxu0 %v458
    %1053 = vmatprep.subr.mxu0 0.0
    %1054 = vmatpush1.msra.mxu0 %v455
    %1055 = vmatprep.subr.mxu0 0.0
    %1056 = vmatpush1.msra.mxu0 %v452
    %1057 = vmatprep.subr.mxu0 0.0
    %1058 = vmatpush1.msra.mxu0 %v449
    %1059 = vmatprep.subr.mxu0 0.0
    %1060 = vmatpush1.msra.mxu0 %v446
    %1061 = vmatprep.subr.mxu0 0.0
    %1062 = vmatpush1.msra.mxu0 %v443
    %1063 = vmatprep.subr.mxu0 0.0
    %1064 = vmatpush1.msra.mxu0 %v440
    %1065 = vmatprep.subr.mxu0 0.0
    %1066 = vmatpush1.msra.mxu0 %v437
    %1067 = vmatprep.subr.mxu0 0.0
    %1068 = vmatpush1.msra.mxu0 %v434
    %1069 = vmatprep.subr.mxu0 0.0
    %1070 = vmatpush1.msra.mxu0 %v431
    %1071 = vmatprep.subr.mxu0 0.0
    %1072 = vmatpush1.msra.mxu0 %v428
    %1073 = vmatprep.subr.mxu0 0.0
    %1074 = vmatpush1.msra.mxu0 %v425
    %1075 = vmatprep.subr.mxu0 0.0
    %1076 = vmatpush1.msra.mxu0 %v422
    %1077 = vmatprep.subr.mxu0 0.0
    %1078 = vmatpush1.msra.mxu0 %v419
    %1079 = vmatprep.subr.mxu0 0.0
    %1080 = vmatpush1.msra.mxu0 %v416
    %1081 = vmatprep.subr.mxu0 0.0
    %1082 = vmatpush2.msra.mxu0 0.0
    %1083 = vmatprep.subr.mxu0 0.0
    %1084 = vmatpush2.msra.mxu0 0.0
    %1085 = vmatprep.subr.mxu0 0.0
    %1086 = vmatpush2.msra.mxu0 0.0
    %1087 = vmatprep.subr.mxu0 0.0
    %1088 = vmatpush2.msra.mxu0 0.0
    %1089 = vmatprep.subr.mxu0 0.0
    %1090 = vmatpush2.msra.mxu0 0.0
    %1091 = vmatprep.subr.mxu0 0.0
    %1092 = vmatpush2.msra.mxu0 0.0
    %1093 = vmatprep.subr.mxu0 0.0
    %1094 = vmatpush2.msra.mxu0 0.0
    %1095 = vmatprep.subr.mxu0 0.0
    %1096 = vmatpush2.msra.mxu0 0.0
    %1097 = vmatprep.subr.mxu0 0.0
    %1098 = vmatpush2.msra.mxu0 0.0
    %1099 = vmatprep.subr.mxu0 0.0
    %1100 = vmatpush2.msra.mxu0 0.0
    %1101 = vmatprep.subr.mxu0 0.0
    %1102 = vmatpush2.msra.mxu0 0.0
    %1103 = vmatprep.subr.mxu0 0.0
    %1104 = vmatpush2.msra.mxu0 0.0
    %1105 = vmatprep.subr.mxu0 0.0
    %1106 = vmatpush2.msra.mxu0 0.0
    %1107 = vmatprep.subr.mxu0 0.0
    %1108 = vmatpush2.msra.mxu0 0.0
    %1109 = vmatprep.subr.mxu0 0.0
    %1110 = vmatpush2.msra.mxu0 0.0
    %1111 = vmatprep.subr.mxu0 0.0
    %1112 = vmatpush2.msra.mxu0 0.0
    %1113 = vmatprep.mubr.f32.mxu0 0.0
    %1114 = vmatmul.mubr.f32.gmra.mxu0 %v971
    %v1115 = vpop.f32.mrf.mxu0
    %v1116 = vadd.f32 0.0, %v1115
    %v1117 = vpop.f32.mrf.mxu0
    %1118 = vdwg.mxu0
    %v1119 = vadd.f32 %v975, %v1045
    %v1120 = vxor.u32 %v1119, 2147483648
    %v1121 = vmul.f32 %v1120, 1.442695
    %v1122 = vpow.pop %v1121
    %v1123 = vadd.f32 %v1122, 1.0
    %v1124 = vrcp.pop %v1123
    %v1125 = vmul.f32 1.0, %v1124
    %v1126 = vadd.f32 %v976, %v1047
    %v1127 = vxor.u32 %v1126, 2147483648
    %v1128 = vmul.f32 %v1127, 1.442695
    %v1129 = vpow.pop %v1128
    %v1130 = vadd.f32 %v1129, 1.0
    %v1131 = vrcp.pop %v1130
    %v1132 = vmul.f32 1.0, %v1131
    %v1133 = vadd.f32 %v1116, %v467
    %v1134 = vmul.f32 %v1125, %v1133
    %v1135 = vadd.f32 %v977, %v1134
    %v1136 = vtanh.pop %v1135
    %v1137 = vsub.f32 1.0, %v1132
    %v1138 = vmul.f32 %v1137, %v1136
    %v1139 = vmul.f32 %v1132, %v971
    %v1140 = vadd.f32 %v1138, %v1139
    %s1141 = scalar_lea.vmem [#allocation3], 24
    %1142 = vst [vmem:[%s1141] sm:$0xff] %v1140
    %s1143 = scalar_lea.vmem [#allocation2], 96
    %v1144 = vld [vmem:[%s1143] sm:$0xff]
    %v1145 = vld [vmem:[%s1143 + $0x8] sm:$0xff]
    %v1146 = vld [vmem:[%s1143 + $0x10] sm:$0xff]
    %1147 = vmatprep.subr.mxu0 %v460
    %1148 = vmatpush1.msra.mxu0 %v459
    %1149 = vmatprep.subr.mxu0 %v457
    %1150 = vmatpush1.msra.mxu0 %v456
    %1151 = vmatprep.subr.mxu0 %v454
    %1152 = vmatpush1.msra.mxu0 %v453
    %1153 = vmatprep.subr.mxu0 %v451
    %1154 = vmatpush1.msra.mxu0 %v450
    %1155 = vmatprep.subr.mxu0 %v448
    %1156 = vmatpush1.msra.mxu0 %v447
    %1157 = vmatprep.subr.mxu0 %v445
    %1158 = vmatpush1.msra.mxu0 %v444
    %1159 = vmatprep.subr.mxu0 %v442
    %1160 = vmatpush1.msra.mxu0 %v441
    %1161 = vmatprep.subr.mxu0 %v439
    %1162 = vmatpush1.msra.mxu0 %v438
    %1163 = vmatprep.subr.mxu0 %v436
    %1164 = vmatpush1.msra.mxu0 %v435
    %1165 = vmatprep.subr.mxu0 %v433
    %1166 = vmatpush1.msra.mxu0 %v432
    %1167 = vmatprep.subr.mxu0 %v430
    %1168 = vmatpush1.msra.mxu0 %v429
    %1169 = vmatprep.subr.mxu0 %v427
    %1170 = vmatpush1.msra.mxu0 %v426
    %1171 = vmatprep.subr.mxu0 %v424
    %1172 = vmatpush1.msra.mxu0 %v423
    %1173 = vmatprep.subr.mxu0 %v421
    %1174 = vmatpush1.msra.mxu0 %v420
    %1175 = vmatprep.subr.mxu0 %v418
    %1176 = vmatpush1.msra.mxu0 %v417
    %1177 = vmatprep.subr.mxu0 %v415
    %1178 = vmatpush1.msra.mxu0 %v414
    %1179 = vmatprep.subr.mxu0 0.0
    %1180 = vmatpush2.msra.mxu0 0.0
    %1181 = vmatprep.subr.mxu0 0.0
    %1182 = vmatpush2.msra.mxu0 0.0
    %1183 = vmatprep.subr.mxu0 0.0
    %1184 = vmatpush2.msra.mxu0 0.0
    %1185 = vmatprep.subr.mxu0 0.0
    %1186 = vmatpush2.msra.mxu0 0.0
    %1187 = vmatprep.subr.mxu0 0.0
    %1188 = vmatpush2.msra.mxu0 0.0
    %1189 = vmatprep.subr.mxu0 0.0
    %1190 = vmatpush2.msra.mxu0 0.0
    %1191 = vmatprep.subr.mxu0 0.0
    %1192 = vmatpush2.msra.mxu0 0.0
    %1193 = vmatprep.subr.mxu0 0.0
    %1194 = vmatpush2.msra.mxu0 0.0
    %1195 = vmatprep.subr.mxu0 0.0
    %1196 = vmatpush2.msra.mxu0 0.0
    %1197 = vmatprep.subr.mxu0 0.0
    %1198 = vmatpush2.msra.mxu0 0.0
    %1199 = vmatprep.subr.mxu0 0.0
    %1200 = vmatpush2.msra.mxu0 0.0
    %1201 = vmatprep.subr.mxu0 0.0
    %1202 = vmatpush2.msra.mxu0 0.0
    %1203 = vmatprep.subr.mxu0 0.0
    %1204 = vmatpush2.msra.mxu0 0.0
    %1205 = vmatprep.subr.mxu0 0.0
    %1206 = vmatpush2.msra.mxu0 0.0
    %1207 = vmatprep.subr.mxu0 0.0
    %1208 = vmatpush2.msra.mxu0 0.0
    %1209 = vmatprep.subr.mxu0 0.0
    %1210 = vmatpush2.msra.mxu0 0.0
    %1211 = vmatprep.mubr.f32.mxu0 0.0
    %1212 = vmatmul.mubr.f32.gmra.mxu0 %v1140
    %v1213 = vpop.f32.mrf.mxu0
    %v1214 = vadd.f32 0.0, %v1213
    %v1215 = vpop.f32.mrf.mxu0
    %v1216 = vadd.f32 0.0, %v1215
    %1217 = vdwg.mxu0
    %1218 = vmatprep.subr.mxu0 0.0
    %1219 = vmatpush1.msra.mxu0 %v461
    %1220 = vmatprep.subr.mxu0 0.0
    %1221 = vmatpush1.msra.mxu0 %v458
    %1222 = vmatprep.subr.mxu0 0.0
    %1223 = vmatpush1.msra.mxu0 %v455
    %1224 = vmatprep.subr.mxu0 0.0
    %1225 = vmatpush1.msra.mxu0 %v452
    %1226 = vmatprep.subr.mxu0 0.0
    %1227 = vmatpush1.msra.mxu0 %v449
    %1228 = vmatprep.subr.mxu0 0.0
    %1229 = vmatpush1.msra.mxu0 %v446
    %1230 = vmatprep.subr.mxu0 0.0
    %1231 = vmatpush1.msra.mxu0 %v443
    %1232 = vmatprep.subr.mxu0 0.0
    %1233 = vmatpush1.msra.mxu0 %v440
    %1234 = vmatprep.subr.mxu0 0.0
    %1235 = vmatpush1.msra.mxu0 %v437
    %1236 = vmatprep.subr.mxu0 0.0
    %1237 = vmatpush1.msra.mxu0 %v434
    %1238 = vmatprep.subr.mxu0 0.0
    %1239 = vmatpush1.msra.mxu0 %v431
    %1240 = vmatprep.subr.mxu0 0.0
    %1241 = vmatpush1.msra.mxu0 %v428
    %1242 = vmatprep.subr.mxu0 0.0
    %1243 = vmatpush1.msra.mxu0 %v425
    %1244 = vmatprep.subr.mxu0 0.0
    %1245 = vmatpush1.msra.mxu0 %v422
    %1246 = vmatprep.subr.mxu0 0.0
    %1247 = vmatpush1.msra.mxu0 %v419
    %1248 = vmatprep.subr.mxu0 0.0
    %1249 = vmatpush1.msra.mxu0 %v416
    %1250 = vmatprep.subr.mxu0 0.0
    %1251 = vmatpush2.msra.mxu0 0.0
    %1252 = vmatprep.subr.mxu0 0.0
    %1253 = vmatpush2.msra.mxu0 0.0
    %1254 = vmatprep.subr.mxu0 0.0
    %1255 = vmatpush2.msra.mxu0 0.0
    %1256 = vmatprep.subr.mxu0 0.0
    %1257 = vmatpush2.msra.mxu0 0.0
    %1258 = vmatprep.subr.mxu0 0.0
    %1259 = vmatpush2.msra.mxu0 0.0
    %1260 = vmatprep.subr.mxu0 0.0
    %1261 = vmatpush2.msra.mxu0 0.0
    %1262 = vmatprep.subr.mxu0 0.0
    %1263 = vmatpush2.msra.mxu0 0.0
    %1264 = vmatprep.subr.mxu0 0.0
    %1265 = vmatpush2.msra.mxu0 0.0
    %1266 = vmatprep.subr.mxu0 0.0
    %1267 = vmatpush2.msra.mxu0 0.0
    %1268 = vmatprep.subr.mxu0 0.0
    %1269 = vmatpush2.msra.mxu0 0.0
    %1270 = vmatprep.subr.mxu0 0.0
    %1271 = vmatpush2.msra.mxu0 0.0
    %1272 = vmatprep.subr.mxu0 0.0
    %1273 = vmatpush2.msra.mxu0 0.0
    %1274 = vmatprep.subr.mxu0 0.0
    %1275 = vmatpush2.msra.mxu0 0.0
    %1276 = vmatprep.subr.mxu0 0.0
    %1277 = vmatpush2.msra.mxu0 0.0
    %1278 = vmatprep.subr.mxu0 0.0
    %1279 = vmatpush2.msra.mxu0 0.0
    %1280 = vmatprep.subr.mxu0 0.0
    %1281 = vmatpush2.msra.mxu0 0.0
    %1282 = vmatprep.mubr.f32.mxu0 0.0
    %1283 = vmatmul.mubr.f32.gmra.mxu0 %v1140
    %v1284 = vpop.f32.mrf.mxu0
    %v1285 = vadd.f32 0.0, %v1284
    %v1286 = vpop.f32.mrf.mxu0
    %1287 = vdwg.mxu0
    %v1288 = vadd.f32 %v1144, %v1214
    %v1289 = vxor.u32 %v1288, 2147483648
    %v1290 = vmul.f32 %v1289, 1.442695
    %v1291 = vpow.pop %v1290
    %v1292 = vadd.f32 %v1291, 1.0
    %v1293 = vrcp.pop %v1292
    %v1294 = vmul.f32 1.0, %v1293
    %v1295 = vadd.f32 %v1145, %v1216
    %v1296 = vxor.u32 %v1295, 2147483648
    %v1297 = vmul.f32 %v1296, 1.442695
    %v1298 = vpow.pop %v1297
    %v1299 = vadd.f32 %v1298, 1.0
    %v1300 = vrcp.pop %v1299
    %v1301 = vmul.f32 1.0, %v1300
    %v1302 = vadd.f32 %v1285, %v467
    %v1303 = vmul.f32 %v1294, %v1302
    %v1304 = vadd.f32 %v1146, %v1303
    %v1305 = vtanh.pop %v1304
    %v1306 = vsub.f32 1.0, %v1301
    %v1307 = vmul.f32 %v1306, %v1305
    %v1308 = vmul.f32 %v1301, %v1140
    %v1309 = vadd.f32 %v1307, %v1308
    %s1310 = scalar_lea.vmem [#allocation3], 32
    %1311 = vst [vmem:[%s1310] sm:$0xff] %v1309
    %s1312 = scalar_lea.vmem [#allocation2], 120
    %v1313 = vld [vmem:[%s1312] sm:$0xff]
    %v1314 = vld [vmem:[%s1312 + $0x8] sm:$0xff]
    %v1315 = vld [vmem:[%s1312 + $0x10] sm:$0xff]
    %1316 = vmatprep.subr.mxu0 %v460
    %1317 = vmatpush1.msra.mxu0 %v459
    %1318 = vmatprep.subr.mxu0 %v457
    %1319 = vmatpush1.msra.mxu0 %v456
    %1320 = vmatprep.subr.mxu0 %v454
    %1321 = vmatpush1.msra.mxu0 %v453
    %1322 = vmatprep.subr.mxu0 %v451
    %1323 = vmatpush1.msra.mxu0 %v450
    %1324 = vmatprep.subr.mxu0 %v448
    %1325 = vmatpush1.msra.mxu0 %v447
    %1326 = vmatprep.subr.mxu0 %v445
    %1327 = vmatpush1.msra.mxu0 %v444
    %1328 = vmatprep.subr.mxu0 %v442
    %1329 = vmatpush1.msra.mxu0 %v441
    %1330 = vmatprep.subr.mxu0 %v439
    %1331 = vmatpush1.msra.mxu0 %v438
    %1332 = vmatprep.subr.mxu0 %v436
    %1333 = vmatpush1.msra.mxu0 %v435
    %1334 = vmatprep.subr.mxu0 %v433
    %1335 = vmatpush1.msra.mxu0 %v432
    %1336 = vmatprep.subr.mxu0 %v430
    %1337 = vmatpush1.msra.mxu0 %v429
    %1338 = vmatprep.subr.mxu0 %v427
    %1339 = vmatpush1.msra.mxu0 %v426
    %1340 = vmatprep.subr.mxu0 %v424
    %1341 = vmatpush1.msra.mxu0 %v423
    %1342 = vmatprep.subr.mxu0 %v421
    %1343 = vmatpush1.msra.mxu0 %v420
    %1344 = vmatprep.subr.mxu0 %v418
    %1345 = vmatpush1.msra.mxu0 %v417
    %1346 = vmatprep.subr.mxu0 %v415
    %1347 = vmatpush1.msra.mxu0 %v414
    %1348 = vmatprep.subr.mxu0 0.0
    %1349 = vmatpush2.msra.mxu0 0.0
    %1350 = vmatprep.subr.mxu0 0.0
    %1351 = vmatpush2.msra.mxu0 0.0
    %1352 = vmatprep.subr.mxu0 0.0
    %1353 = vmatpush2.msra.mxu0 0.0
    %1354 = vmatprep.subr.mxu0 0.0
    %1355 = vmatpush2.msra.mxu0 0.0
    %1356 = vmatprep.subr.mxu0 0.0
    %1357 = vmatpush2.msra.mxu0 0.0
    %1358 = vmatprep.subr.mxu0 0.0
    %1359 = vmatpush2.msra.mxu0 0.0
    %1360 = vmatprep.subr.mxu0 0.0
    %1361 = vmatpush2.msra.mxu0 0.0
    %1362 = vmatprep.subr.mxu0 0.0
    %1363 = vmatpush2.msra.mxu0 0.0
    %1364 = vmatprep.subr.mxu0 0.0
    %1365 = vmatpush2.msra.mxu0 0.0
    %1366 = vmatprep.subr.mxu0 0.0
    %1367 = vmatpush2.msra.mxu0 0.0
    %1368 = vmatprep.subr.mxu0 0.0
    %1369 = vmatpush2.msra.mxu0 0.0
    %1370 = vmatprep.subr.mxu0 0.0
    %1371 = vmatpush2.msra.mxu0 0.0
    %1372 = vmatprep.subr.mxu0 0.0
    %1373 = vmatpush2.msra.mxu0 0.0
    %1374 = vmatprep.subr.mxu0 0.0
    %1375 = vmatpush2.msra.mxu0 0.0
    %1376 = vmatprep.subr.mxu0 0.0
    %1377 = vmatpush2.msra.mxu0 0.0
    %1378 = vmatprep.subr.mxu0 0.0
    %1379 = vmatpush2.msra.mxu0 0.0
    %1380 = vmatprep.mubr.f32.mxu0 0.0
    %1381 = vmatmul.mubr.f32.gmra.mxu0 %v1309
    %v1382 = vpop.f32.mrf.mxu0
    %v1383 = vadd.f32 0.0, %v1382
    %v1384 = vpop.f32.mrf.mxu0
    %v1385 = vadd.f32 0.0, %v1384
    %1386 = vdwg.mxu0
    %1387 = vmatprep.subr.mxu0 0.0
    %1388 = vmatpush1.msra.mxu0 %v461
    %1389 = vmatprep.subr.mxu0 0.0
    %1390 = vmatpush1.msra.mxu0 %v458
    %1391 = vmatprep.subr.mxu0 0.0
    %1392 = vmatpush1.msra.mxu0 %v455
    %1393 = vmatprep.subr.mxu0 0.0
    %1394 = vmatpush1.msra.mxu0 %v452
    %1395 = vmatprep.subr.mxu0 0.0
    %1396 = vmatpush1.msra.mxu0 %v449
    %1397 = vmatprep.subr.mxu0 0.0
    %1398 = vmatpush1.msra.mxu0 %v446
    %1399 = vmatprep.subr.mxu0 0.0
    %1400 = vmatpush1.msra.mxu0 %v443
    %1401 = vmatprep.subr.mxu0 0.0
    %1402 = vmatpush1.msra.mxu0 %v440
    %1403 = vmatprep.subr.mxu0 0.0
    %1404 = vmatpush1.msra.mxu0 %v437
    %1405 = vmatprep.subr.mxu0 0.0
    %1406 = vmatpush1.msra.mxu0 %v434
    %1407 = vmatprep.subr.mxu0 0.0
    %1408 = vmatpush1.msra.mxu0 %v431
    %1409 = vmatprep.subr.mxu0 0.0
    %1410 = vmatpush1.msra.mxu0 %v428
    %1411 = vmatprep.subr.mxu0 0.0
    %1412 = vmatpush1.msra.mxu0 %v425
    %1413 = vmatprep.subr.mxu0 0.0
    %1414 = vmatpush1.msra.mxu0 %v422
    %1415 = vmatprep.subr.mxu0 0.0
    %1416 = vmatpush1.msra.mxu0 %v419
    %1417 = vmatprep.subr.mxu0 0.0
    %1418 = vmatpush1.msra.mxu0 %v416
    %1419 = vmatprep.subr.mxu0 0.0
    %1420 = vmatpush2.msra.mxu0 0.0
    %1421 = vmatprep.subr.mxu0 0.0
    %1422 = vmatpush2.msra.mxu0 0.0
    %1423 = vmatprep.subr.mxu0 0.0
    %1424 = vmatpush2.msra.mxu0 0.0
    %1425 = vmatprep.subr.mxu0 0.0
    %1426 = vmatpush2.msra.mxu0 0.0
    %1427 = vmatprep.subr.mxu0 0.0
    %1428 = vmatpush2.msra.mxu0 0.0
    %1429 = vmatprep.subr.mxu0 0.0
    %1430 = vmatpush2.msra.mxu0 0.0
    %1431 = vmatprep.subr.mxu0 0.0
    %1432 = vmatpush2.msra.mxu0 0.0
    %1433 = vmatprep.subr.mxu0 0.0
    %1434 = vmatpush2.msra.mxu0 0.0
    %1435 = vmatprep.subr.mxu0 0.0
    %1436 = vmatpush2.msra.mxu0 0.0
    %1437 = vmatprep.subr.mxu0 0.0
    %1438 = vmatpush2.msra.mxu0 0.0
    %1439 = vmatprep.subr.mxu0 0.0
    %1440 = vmatpush2.msra.mxu0 0.0
    %1441 = vmatprep.subr.mxu0 0.0
    %1442 = vmatpush2.msra.mxu0 0.0
    %1443 = vmatprep.subr.mxu0 0.0
    %1444 = vmatpush2.msra.mxu0 0.0
    %1445 = vmatprep.subr.mxu0 0.0
    %1446 = vmatpush2.msra.mxu0 0.0
    %1447 = vmatprep.subr.mxu0 0.0
    %1448 = vmatpush2.msra.mxu0 0.0
    %1449 = vmatprep.subr.mxu0 0.0
    %1450 = vmatpush2.msra.mxu0 0.0
    %1451 = vmatprep.mubr.f32.mxu0 0.0
    %1452 = vmatmul.mubr.f32.gmra.mxu0 %v1309
    %v1453 = vpop.f32.mrf.mxu0
    %v1454 = vadd.f32 0.0, %v1453
    %v1455 = vpop.f32.mrf.mxu0
    %1456 = vdwg.mxu0
    %v1457 = vadd.f32 %v1313, %v1383
    %v1458 = vxor.u32 %v1457, 2147483648
    %v1459 = vmul.f32 %v1458, 1.442695
    %v1460 = vpow.pop %v1459
    %v1461 = vadd.f32 %v1460, 1.0
    %v1462 = vrcp.pop %v1461
    %v1463 = vmul.f32 1.0, %v1462
    %v1464 = vadd.f32 %v1314, %v1385
    %v1465 = vxor.u32 %v1464, 2147483648
    %v1466 = vmul.f32 %v1465, 1.442695
    %v1467 = vpow.pop %v1466
    %v1468 = vadd.f32 %v1467, 1.0
    %v1469 = vrcp.pop %v1468
    %v1470 = vmul.f32 1.0, %v1469
    %v1471 = vadd.f32 %v1454, %v467
    %v1472 = vmul.f32 %v1463, %v1471
    %v1473 = vadd.f32 %v1315, %v1472
    %v1474 = vtanh.pop %v1473
    %v1475 = vsub.f32 1.0, %v1470
    %v1476 = vmul.f32 %v1475, %v1474
    %v1477 = vmul.f32 %v1470, %v1309
    %v1478 = vadd.f32 %v1476, %v1477
    %s1479 = scalar_lea.vmem [#allocation3], 40
    %1480 = vst [vmem:[%s1479] sm:$0xff] %v1478
    %s1481 = scalar_lea.vmem [#allocation2], 144
    %v1482 = vld [vmem:[%s1481] sm:$0xff]
    %v1483 = vld [vmem:[%s1481 + $0x8] sm:$0xff]
    %v1484 = vld [vmem:[%s1481 + $0x10] sm:$0xff]
    %1485 = vmatprep.subr.mxu0 %v460
    %1486 = vmatpush1.msra.mxu0 %v459
    %1487 = vmatprep.subr.mxu0 %v457
    %1488 = vmatpush1.msra.mxu0 %v456
    %1489 = vmatprep.subr.mxu0 %v454
    %1490 = vmatpush1.msra.mxu0 %v453
    %1491 = vmatprep.subr.mxu0 %v451
    %1492 = vmatpush1.msra.mxu0 %v450
    %1493 = vmatprep.subr.mxu0 %v448
    %1494 = vmatpush1.msra.mxu0 %v447
    %1495 = vmatprep.subr.mxu0 %v445
    %1496 = vmatpush1.msra.mxu0 %v444
    %1497 = vmatprep.subr.mxu0 %v442
    %1498 = vmatpush1.msra.mxu0 %v441
    %1499 = vmatprep.subr.mxu0 %v439
    %1500 = vmatpush1.msra.mxu0 %v438
    %1501 = vmatprep.subr.mxu0 %v436
    %1502 = vmatpush1.msra.mxu0 %v435
    %1503 = vmatprep.subr.mxu0 %v433
    %1504 = vmatpush1.msra.mxu0 %v432
    %1505 = vmatprep.subr.mxu0 %v430
    %1506 = vmatpush1.msra.mxu0 %v429
    %1507 = vmatprep.subr.mxu0 %v427
    %1508 = vmatpush1.msra.mxu0 %v426
    %1509 = vmatprep.subr.mxu0 %v424
    %1510 = vmatpush1.msra.mxu0 %v423
    %1511 = vmatprep.subr.mxu0 %v421
    %1512 = vmatpush1.msra.mxu0 %v420
    %1513 = vmatprep.subr.mxu0 %v418
    %1514 = vmatpush1.msra.mxu0 %v417
    %1515 = vmatprep.subr.mxu0 %v415
    %1516 = vmatpush1.msra.mxu0 %v414
    %1517 = vmatprep.subr.mxu0 0.0
    %1518 = vmatpush2.msra.mxu0 0.0
    %1519 = vmatprep.subr.mxu0 0.0
    %1520 = vmatpush2.msra.mxu0 0.0
    %1521 = vmatprep.subr.mxu0 0.0
    %1522 = vmatpush2.msra.mxu0 0.0
    %1523 = vmatprep.subr.mxu0 0.0
    %1524 = vmatpush2.msra.mxu0 0.0
    %1525 = vmatprep.subr.mxu0 0.0
    %1526 = vmatpush2.msra.mxu0 0.0
    %1527 = vmatprep.subr.mxu0 0.0
    %1528 = vmatpush2.msra.mxu0 0.0
    %1529 = vmatprep.subr.mxu0 0.0
    %1530 = vmatpush2.msra.mxu0 0.0
    %1531 = vmatprep.subr.mxu0 0.0
    %1532 = vmatpush2.msra.mxu0 0.0
    %1533 = vmatprep.subr.mxu0 0.0
    %1534 = vmatpush2.msra.mxu0 0.0
    %1535 = vmatprep.subr.mxu0 0.0
    %1536 = vmatpush2.msra.mxu0 0.0
    %1537 = vmatprep.subr.mxu0 0.0
    %1538 = vmatpush2.msra.mxu0 0.0
    %1539 = vmatprep.subr.mxu0 0.0
    %1540 = vmatpush2.msra.mxu0 0.0
    %1541 = vmatprep.subr.mxu0 0.0
    %1542 = vmatpush2.msra.mxu0 0.0
    %1543 = vmatprep.subr.mxu0 0.0
    %1544 = vmatpush2.msra.mxu0 0.0
    %1545 = vmatprep.subr.mxu0 0.0
    %1546 = vmatpush2.msra.mxu0 0.0
    %1547 = vmatprep.subr.mxu0 0.0
    %1548 = vmatpush2.msra.mxu0 0.0
    %1549 = vmatprep.mubr.f32.mxu0 0.0
    %1550 = vmatmul.mubr.f32.gmra.mxu0 %v1478
    %v1551 = vpop.f32.mrf.mxu0
    %v1552 = vadd.f32 0.0, %v1551
    %v1553 = vpop.f32.mrf.mxu0
    %v1554 = vadd.f32 0.0, %v1553
    %1555 = vdwg.mxu0
    %1556 = vmatprep.subr.mxu0 0.0
    %1557 = vmatpush1.msra.mxu0 %v461
    %1558 = vmatprep.subr.mxu0 0.0
    %1559 = vmatpush1.msra.mxu0 %v458
    %1560 = vmatprep.subr.mxu0 0.0
    %1561 = vmatpush1.msra.mxu0 %v455
    %1562 = vmatprep.subr.mxu0 0.0
    %1563 = vmatpush1.msra.mxu0 %v452
    %1564 = vmatprep.subr.mxu0 0.0
    %1565 = vmatpush1.msra.mxu0 %v449
    %1566 = vmatprep.subr.mxu0 0.0
    %1567 = vmatpush1.msra.mxu0 %v446
    %1568 = vmatprep.subr.mxu0 0.0
    %1569 = vmatpush1.msra.mxu0 %v443
    %1570 = vmatprep.subr.mxu0 0.0
    %1571 = vmatpush1.msra.mxu0 %v440
    %1572 = vmatprep.subr.mxu0 0.0
    %1573 = vmatpush1.msra.mxu0 %v437
    %1574 = vmatprep.subr.mxu0 0.0
    %1575 = vmatpush1.msra.mxu0 %v434
    %1576 = vmatprep.subr.mxu0 0.0
    %1577 = vmatpush1.msra.mxu0 %v431
    %1578 = vmatprep.subr.mxu0 0.0
    %1579 = vmatpush1.msra.mxu0 %v428
    %1580 = vmatprep.subr.mxu0 0.0
    %1581 = vmatpush1.msra.mxu0 %v425
    %1582 = vmatprep.subr.mxu0 0.0
    %1583 = vmatpush1.msra.mxu0 %v422
    %1584 = vmatprep.subr.mxu0 0.0
    %1585 = vmatpush1.msra.mxu0 %v419
    %1586 = vmatprep.subr.mxu0 0.0
    %1587 = vmatpush1.msra.mxu0 %v416
    %1588 = vmatprep.subr.mxu0 0.0
    %1589 = vmatpush2.msra.mxu0 0.0
    %1590 = vmatprep.subr.mxu0 0.0
    %1591 = vmatpush2.msra.mxu0 0.0
    %1592 = vmatprep.subr.mxu0 0.0
    %1593 = vmatpush2.msra.mxu0 0.0
    %1594 = vmatprep.subr.mxu0 0.0
    %1595 = vmatpush2.msra.mxu0 0.0
    %1596 = vmatprep.subr.mxu0 0.0
    %1597 = vmatpush2.msra.mxu0 0.0
    %1598 = vmatprep.subr.mxu0 0.0
    %1599 = vmatpush2.msra.mxu0 0.0
    %1600 = vmatprep.subr.mxu0 0.0
    %1601 = vmatpush2.msra.mxu0 0.0
    %1602 = vmatprep.subr.mxu0 0.0
    %1603 = vmatpush2.msra.mxu0 0.0
    %1604 = vmatprep.subr.mxu0 0.0
    %1605 = vmatpush2.msra.mxu0 0.0
    %1606 = vmatprep.subr.mxu0 0.0
    %1607 = vmatpush2.msra.mxu0 0.0
    %1608 = vmatprep.subr.mxu0 0.0
    %1609 = vmatpush2.msra.mxu0 0.0
    %1610 = vmatprep.subr.mxu0 0.0
    %1611 = vmatpush2.msra.mxu0 0.0
    %1612 = vmatprep.subr.mxu0 0.0
    %1613 = vmatpush2.msra.mxu0 0.0
    %1614 = vmatprep.subr.mxu0 0.0
    %1615 = vmatpush2.msra.mxu0 0.0
    %1616 = vmatprep.subr.mxu0 0.0
    %1617 = vmatpush2.msra.mxu0 0.0
    %1618 = vmatprep.subr.mxu0 0.0
    %1619 = vmatpush2.msra.mxu0 0.0
    %1620 = vmatprep.mubr.f32.mxu0 0.0
    %1621 = vmatmul.mubr.f32.gmra.mxu0 %v1478
    %v1622 = vpop.f32.mrf.mxu0
    %v1623 = vadd.f32 0.0, %v1622
    %v1624 = vpop.f32.mrf.mxu0
    %1625 = vdwg.mxu0
    %v1626 = vadd.f32 %v1482, %v1552
    %v1627 = vxor.u32 %v1626, 2147483648
    %v1628 = vmul.f32 %v1627, 1.442695
    %v1629 = vpow.pop %v1628
    %v1630 = vadd.f32 %v1629, 1.0
    %v1631 = vrcp.pop %v1630
    %v1632 = vmul.f32 1.0, %v1631
    %v1633 = vadd.f32 %v1483, %v1554
    %v1634 = vxor.u32 %v1633, 2147483648
    %v1635 = vmul.f32 %v1634, 1.442695
    %v1636 = vpow.pop %v1635
    %v1637 = vadd.f32 %v1636, 1.0
    %v1638 = vrcp.pop %v1637
    %v1639 = vmul.f32 1.0, %v1638
    %v1640 = vadd.f32 %v1623, %v467
    %v1641 = vmul.f32 %v1632, %v1640
    %v1642 = vadd.f32 %v1484, %v1641
    %v1643 = vtanh.pop %v1642
    %v1644 = vsub.f32 1.0, %v1639
    %v1645 = vmul.f32 %v1644, %v1643
    %v1646 = vmul.f32 %v1639, %v1478
    %v1647 = vadd.f32 %v1645, %v1646
    %s1648 = scalar_lea.vmem [#allocation3], 48
    %1649 = vst [vmem:[%s1648] sm:$0xff] %v1647
    %s1650 = scalar_lea.vmem [#allocation2], 168
    %v1651 = vld [vmem:[%s1650] sm:$0xff]
    %v1652 = vld [vmem:[%s1650 + $0x8] sm:$0xff]
    %v1653 = vld [vmem:[%s1650 + $0x10] sm:$0xff]
    %1654 = vmatprep.subr.mxu0 %v460
    %1655 = vmatpush1.msra.mxu0 %v459
    %1656 = vmatprep.subr.mxu0 %v457
    %1657 = vmatpush1.msra.mxu0 %v456
    %1658 = vmatprep.subr.mxu0 %v454
    %1659 = vmatpush1.msra.mxu0 %v453
    %1660 = vmatprep.subr.mxu0 %v451
    %1661 = vmatpush1.msra.mxu0 %v450
    %1662 = vmatprep.subr.mxu0 %v448
    %1663 = vmatpush1.msra.mxu0 %v447
    %1664 = vmatprep.subr.mxu0 %v445
    %1665 = vmatpush1.msra.mxu0 %v444
    %1666 = vmatprep.subr.mxu0 %v442
    %1667 = vmatpush1.msra.mxu0 %v441
    %1668 = vmatprep.subr.mxu0 %v439
    %1669 = vmatpush1.msra.mxu0 %v438
    %1670 = vmatprep.subr.mxu0 %v436
    %1671 = vmatpush1.msra.mxu0 %v435
    %1672 = vmatprep.subr.mxu0 %v433
    %1673 = vmatpush1.msra.mxu0 %v432
    %1674 = vmatprep.subr.mxu0 %v430
    %1675 = vmatpush1.msra.mxu0 %v429
    %1676 = vmatprep.subr.mxu0 %v427
    %1677 = vmatpush1.msra.mxu0 %v426
    %1678 = vmatprep.subr.mxu0 %v424
    %1679 = vmatpush1.msra.mxu0 %v423
    %1680 = vmatprep.subr.mxu0 %v421
    %1681 = vmatpush1.msra.mxu0 %v420
    %1682 = vmatprep.subr.mxu0 %v418
    %1683 = vmatpush1.msra.mxu0 %v417
    %1684 = vmatprep.subr.mxu0 %v415
    %1685 = vmatpush1.msra.mxu0 %v414
    %1686 = vmatprep.subr.mxu0 0.0
    %1687 = vmatpush2.msra.mxu0 0.0
    %1688 = vmatprep.subr.mxu0 0.0
    %1689 = vmatpush2.msra.mxu0 0.0
    %1690 = vmatprep.subr.mxu0 0.0
    %1691 = vmatpush2.msra.mxu0 0.0
    %1692 = vmatprep.subr.mxu0 0.0
    %1693 = vmatpush2.msra.mxu0 0.0
    %1694 = vmatprep.subr.mxu0 0.0
    %1695 = vmatpush2.msra.mxu0 0.0
    %1696 = vmatprep.subr.mxu0 0.0
    %1697 = vmatpush2.msra.mxu0 0.0
    %1698 = vmatprep.subr.mxu0 0.0
    %1699 = vmatpush2.msra.mxu0 0.0
    %1700 = vmatprep.subr.mxu0 0.0
    %1701 = vmatpush2.msra.mxu0 0.0
    %1702 = vmatprep.subr.mxu0 0.0
    %1703 = vmatpush2.msra.mxu0 0.0
    %1704 = vmatprep.subr.mxu0 0.0
    %1705 = vmatpush2.msra.mxu0 0.0
    %1706 = vmatprep.subr.mxu0 0.0
    %1707 = vmatpush2.msra.mxu0 0.0
    %1708 = vmatprep.subr.mxu0 0.0
    %1709 = vmatpush2.msra.mxu0 0.0
    %1710 = vmatprep.subr.mxu0 0.0
    %1711 = vmatpush2.msra.mxu0 0.0
    %1712 = vmatprep.subr.mxu0 0.0
    %1713 = vmatpush2.msra.mxu0 0.0
    %1714 = vmatprep.subr.mxu0 0.0
    %1715 = vmatpush2.msra.mxu0 0.0
    %1716 = vmatprep.subr.mxu0 0.0
    %1717 = vmatpush2.msra.mxu0 0.0
    %1718 = vmatprep.mubr.f32.mxu0 0.0
    %1719 = vmatmul.mubr.f32.gmra.mxu0 %v1647
    %v1720 = vpop.f32.mrf.mxu0
    %v1721 = vadd.f32 0.0, %v1720
    %v1722 = vpop.f32.mrf.mxu0
    %v1723 = vadd.f32 0.0, %v1722
    %1724 = vdwg.mxu0
    %1725 = vmatprep.subr.mxu0 0.0
    %1726 = vmatpush1.msra.mxu0 %v461
    %1727 = vmatprep.subr.mxu0 0.0
    %1728 = vmatpush1.msra.mxu0 %v458
    %1729 = vmatprep.subr.mxu0 0.0
    %1730 = vmatpush1.msra.mxu0 %v455
    %1731 = vmatprep.subr.mxu0 0.0
    %1732 = vmatpush1.msra.mxu0 %v452
    %1733 = vmatprep.subr.mxu0 0.0
    %1734 = vmatpush1.msra.mxu0 %v449
    %1735 = vmatprep.subr.mxu0 0.0
    %1736 = vmatpush1.msra.mxu0 %v446
    %1737 = vmatprep.subr.mxu0 0.0
    %1738 = vmatpush1.msra.mxu0 %v443
    %1739 = vmatprep.subr.mxu0 0.0
    %1740 = vmatpush1.msra.mxu0 %v440
    %1741 = vmatprep.subr.mxu0 0.0
    %1742 = vmatpush1.msra.mxu0 %v437
    %1743 = vmatprep.subr.mxu0 0.0
    %1744 = vmatpush1.msra.mxu0 %v434
    %1745 = vmatprep.subr.mxu0 0.0
    %1746 = vmatpush1.msra.mxu0 %v431
    %1747 = vmatprep.subr.mxu0 0.0
    %1748 = vmatpush1.msra.mxu0 %v428
    %1749 = vmatprep.subr.mxu0 0.0
    %1750 = vmatpush1.msra.mxu0 %v425
    %1751 = vmatprep.subr.mxu0 0.0
    %1752 = vmatpush1.msra.mxu0 %v422
    %1753 = vmatprep.subr.mxu0 0.0
    %1754 = vmatpush1.msra.mxu0 %v419
    %1755 = vmatprep.subr.mxu0 0.0
    %1756 = vmatpush1.msra.mxu0 %v416
    %1757 = vmatprep.subr.mxu0 0.0
    %1758 = vmatpush2.msra.mxu0 0.0
    %1759 = vmatprep.subr.mxu0 0.0
    %1760 = vmatpush2.msra.mxu0 0.0
    %1761 = vmatprep.subr.mxu0 0.0
    %1762 = vmatpush2.msra.mxu0 0.0
    %1763 = vmatprep.subr.mxu0 0.0
    %1764 = vmatpush2.msra.mxu0 0.0
    %1765 = vmatprep.subr.mxu0 0.0
    %1766 = vmatpush2.msra.mxu0 0.0
    %1767 = vmatprep.subr.mxu0 0.0
    %1768 = vmatpush2.msra.mxu0 0.0
    %1769 = vmatprep.subr.mxu0 0.0
    %1770 = vmatpush2.msra.mxu0 0.0
    %1771 = vmatprep.subr.mxu0 0.0
    %1772 = vmatpush2.msra.mxu0 0.0
    %1773 = vmatprep.subr.mxu0 0.0
    %1774 = vmatpush2.msra.mxu0 0.0
    %1775 = vmatprep.subr.mxu0 0.0
    %1776 = vmatpush2.msra.mxu0 0.0
    %1777 = vmatprep.subr.mxu0 0.0
    %1778 = vmatpush2.msra.mxu0 0.0
    %1779 = vmatprep.subr.mxu0 0.0
    %1780 = vmatpush2.msra.mxu0 0.0
    %1781 = vmatprep.subr.mxu0 0.0
    %1782 = vmatpush2.msra.mxu0 0.0
    %1783 = vmatprep.subr.mxu0 0.0
    %1784 = vmatpush2.msra.mxu0 0.0
    %1785 = vmatprep.subr.mxu0 0.0
    %1786 = vmatpush2.msra.mxu0 0.0
    %1787 = vmatprep.subr.mxu0 0.0
    %1788 = vmatpush2.msra.mxu0 0.0
    %1789 = vmatprep.mubr.f32.mxu0 0.0
    %1790 = vmatmul.mubr.f32.gmra.mxu0 %v1647
    %v1791 = vpop.f32.mrf.mxu0
    %v1792 = vadd.f32 0.0, %v1791
    %v1793 = vpop.f32.mrf.mxu0
    %1794 = vdwg.mxu0
    %v1795 = vadd.f32 %v1651, %v1721
    %v1796 = vxor.u32 %v1795, 2147483648
    %v1797 = vmul.f32 %v1796, 1.442695
    %v1798 = vpow.pop %v1797
    %v1799 = vadd.f32 %v1798, 1.0
    %v1800 = vrcp.pop %v1799
    %v1801 = vmul.f32 1.0, %v1800
    %v1802 = vadd.f32 %v1652, %v1723
    %v1803 = vxor.u32 %v1802, 2147483648
    %v1804 = vmul.f32 %v1803, 1.442695
    %v1805 = vpow.pop %v1804
    %v1806 = vadd.f32 %v1805, 1.0
    %v1807 = vrcp.pop %v1806
    %v1808 = vmul.f32 1.0, %v1807
    %v1809 = vadd.f32 %v1792, %v467
    %v1810 = vmul.f32 %v1801, %v1809
    %v1811 = vadd.f32 %v1653, %v1810
    %v1812 = vtanh.pop %v1811
    %v1813 = vsub.f32 1.0, %v1808
    %v1814 = vmul.f32 %v1813, %v1812
    %v1815 = vmul.f32 %v1808, %v1647
    %v1816 = vadd.f32 %v1814, %v1815
    %s1817 = scalar_lea.vmem [#allocation3], 56
    %1818 = vst [vmem:[%s1817] sm:$0xff] %v1816
    %v1819 = vld [vmem:[#allocation3] sm:$0xff]
    %v1820 = vld [vmem:[#allocation3 + $0x8] sm:$0xff]
    %v1821 = vld [vmem:[#allocation3 + $0x10] sm:$0xff]
    %v1822 = vld [vmem:[#allocation3 + $0x18] sm:$0xff]
    %v1823 = vld [vmem:[#allocation3 + $0x20] sm:$0xff]
    %v1824 = vld [vmem:[#allocation3 + $0x28] sm:$0xff]
    %v1825 = vld [vmem:[#allocation3 + $0x30] sm:$0xff]
    %v1826 = vld [vmem:[#allocation3 + $0x38] sm:$0xff]
    %v1827 = vld [vmem:[#allocation10] sm:$0xff]
    %v1828 = vld [vmem:[#allocation10 + $0x8] sm:$0xff]
    %v1829 = vld [vmem:[#allocation10 + $0x10] sm:$0xff]
    %v1830 = vld [vmem:[#allocation10 + $0x18] sm:$0xff]
    %v1831 = vld [vmem:[#allocation10 + $0x20] sm:$0xff]
    %v1832 = vld [vmem:[#allocation10 + $0x28] sm:$0xff]
    %v1833 = vld [vmem:[#allocation10 + $0x30] sm:$0xff]
    %v1834 = vld [vmem:[#allocation10 + $0x38] sm:$0xff]
    %v1835 = vld [vmem:[#allocation10 + $0x40] sm:$0xff]
    %v1836 = vld [vmem:[#allocation10 + $0x48] sm:$0xff]
    %v1837 = vld [vmem:[#allocation10 + $0x50] sm:$0xff]
    %v1838 = vld [vmem:[#allocation10 + $0x58] sm:$0xff]
    %v1839 = vld [vmem:[#allocation10 + $0x60] sm:$0xff]
    %v1840 = vld [vmem:[#allocation10 + $0x68] sm:$0xff]
    %v1841 = vld [vmem:[#allocation10 + $0x70] sm:$0xff]
    %v1842 = vld [vmem:[#allocation10 + $0x78] sm:$0xff]
    %v1843 = vld [vmem:[#allocation10 + $0x80] sm:$0xff]
    %v1844 = vld [vmem:[#allocation10 + $0x88] sm:$0xff]
    %v1845 = vld [vmem:[#allocation10 + $0x90] sm:$0xff]
    %v1846 = vld [vmem:[#allocation10 + $0x98] sm:$0xff]
    %v1847 = vld [vmem:[#allocation10 + $0xa0] sm:$0xff]
    %v1848 = vld [vmem:[#allocation10 + $0xa8] sm:$0xff]
    %v1849 = vld [vmem:[#allocation10 + $0xb0] sm:$0xff]
    %v1850 = vld [vmem:[#allocation10 + $0xb8] sm:$0xff]
    %v1851 = vld [vmem:[#allocation10 + $0xc0] sm:$0xff]
    %v1852 = vld [vmem:[#allocation10 + $0xc8] sm:$0xff]
    %v1853 = vld [vmem:[#allocation10 + $0xd0] sm:$0xff]
    %v1854 = vld [vmem:[#allocation10 + $0xd8] sm:$0xff]
    %v1855 = vld [vmem:[#allocation10 + $0xe0] sm:$0xff]
    %v1856 = vld [vmem:[#allocation10 + $0xe8] sm:$0xff]
    %v1857 = vld [vmem:[#allocation10 + $0xf0] sm:$0xff]
    %v1858 = vld [vmem:[#allocation10 + $0xf8] sm:$0xff]
    %v1859 = vld [vmem:[#allocation10 + $0x100] sm:$0xff]
    %v1860 = vld [vmem:[#allocation10 + $0x108] sm:$0xff]
    %v1861 = vld [vmem:[#allocation10 + $0x110] sm:$0xff]
    %v1862 = vld [vmem:[#allocation10 + $0x118] sm:$0xff]
    %v1863 = vld [vmem:[#allocation10 + $0x120] sm:$0xff]
    %v1864 = vld [vmem:[#allocation10 + $0x128] sm:$0xff]
    %v1865 = vld [vmem:[#allocation10 + $0x130] sm:$0xff]
    %v1866 = vld [vmem:[#allocation10 + $0x138] sm:$0xff]
    %v1867 = vld [vmem:[#allocation10 + $0x140] sm:$0xff]
    %v1868 = vld [vmem:[#allocation10 + $0x148] sm:$0xff]
    %v1869 = vld [vmem:[#allocation10 + $0x150] sm:$0xff]
    %v1870 = vld [vmem:[#allocation10 + $0x158] sm:$0xff]
    %v1871 = vld [vmem:[#allocation10 + $0x160] sm:$0xff]
    %v1872 = vld [vmem:[#allocation10 + $0x168] sm:$0xff]
    %v1873 = vld [vmem:[#allocation10 + $0x170] sm:$0xff]
    %v1874 = vld [vmem:[#allocation10 + $0x178] sm:$0xff]
    %v1875 = vld [vmem:[%s7] sm:$0x7]
    %v1877 = vlaneseq
    %v1878 = vshrl.u32 %v1877, 7
    %v1879 = vsub.s32 0, %v1878
    %v1880 = vrot.slane %v1875, %v1879
    %v1881 = vlaneseq
    %v1882 = vshrl.u32 %v1881, 7
    %v1883 = vsub.s32 1, %v1882
    %v1884 = vrot.slane %v1875, %v1883
    %v1885 = vlaneseq
    %v1886 = vshrl.u32 %v1885, 7
    %v1887 = vsub.s32 2, %v1886
    %v1888 = vrot.slane %v1875, %v1887
    %1892 = vmatprep.subr.mxu0 %v1873
    %1893 = vmatpush1.msra.mxu0 %v1872
    %1894 = vmatprep.subr.mxu0 %v1870
    %1895 = vmatpush1.msra.mxu0 %v1869
    %1896 = vmatprep.subr.mxu0 %v1867
    %1897 = vmatpush1.msra.mxu0 %v1866
    %1898 = vmatprep.subr.mxu0 %v1864
    %1899 = vmatpush1.msra.mxu0 %v1863
    %1900 = vmatprep.subr.mxu0 %v1861
    %1901 = vmatpush1.msra.mxu0 %v1860
    %1902 = vmatprep.subr.mxu0 %v1858
    %1903 = vmatpush1.msra.mxu0 %v1857
    %1904 = vmatprep.subr.mxu0 %v1855
    %1905 = vmatpush1.msra.mxu0 %v1854
    %1906 = vmatprep.subr.mxu0 %v1852
    %1907 = vmatpush1.msra.mxu0 %v1851
    %1908 = vmatprep.subr.mxu0 %v1849
    %1909 = vmatpush1.msra.mxu0 %v1848
    %1910 = vmatprep.subr.mxu0 %v1846
    %1911 = vmatpush1.msra.mxu0 %v1845
    %1912 = vmatprep.subr.mxu0 %v1843
    %1913 = vmatpush1.msra.mxu0 %v1842
    %1914 = vmatprep.subr.mxu0 %v1840
    %1915 = vmatpush1.msra.mxu0 %v1839
    %1916 = vmatprep.subr.mxu0 %v1837
    %1917 = vmatpush1.msra.mxu0 %v1836
    %1918 = vmatprep.subr.mxu0 %v1834
    %1919 = vmatpush1.msra.mxu0 %v1833
    %1920 = vmatprep.subr.mxu0 %v1831
    %1921 = vmatpush1.msra.mxu0 %v1830
    %1922 = vmatprep.subr.mxu0 %v1828
    %1923 = vmatpush1.msra.mxu0 %v1827
    %1924 = vmatprep.subr.mxu0 0.0
    %1925 = vmatpush2.msra.mxu0 0.0
    %1926 = vmatprep.subr.mxu0 0.0
    %1927 = vmatpush2.msra.mxu0 0.0
    %1928 = vmatprep.subr.mxu0 0.0
    %1929 = vmatpush2.msra.mxu0 0.0
    %1930 = vmatprep.subr.mxu0 0.0
    %1931 = vmatpush2.msra.mxu0 0.0
    %1932 = vmatprep.subr.mxu0 0.0
    %1933 = vmatpush2.msra.mxu0 0.0
    %1934 = vmatprep.subr.mxu0 0.0
    %1935 = vmatpush2.msra.mxu0 0.0
    %1936 = vmatprep.subr.mxu0 0.0
    %1937 = vmatpush2.msra.mxu0 0.0
    %1938 = vmatprep.subr.mxu0 0.0
    %1939 = vmatpush2.msra.mxu0 0.0
    %1940 = vmatprep.subr.mxu0 0.0
    %1941 = vmatpush2.msra.mxu0 0.0
    %1942 = vmatprep.subr.mxu0 0.0
    %1943 = vmatpush2.msra.mxu0 0.0
    %1944 = vmatprep.subr.mxu0 0.0
    %1945 = vmatpush2.msra.mxu0 0.0
    %1946 = vmatprep.subr.mxu0 0.0
    %1947 = vmatpush2.msra.mxu0 0.0
    %1948 = vmatprep.subr.mxu0 0.0
    %1949 = vmatpush2.msra.mxu0 0.0
    %1950 = vmatprep.subr.mxu0 0.0
    %1951 = vmatpush2.msra.mxu0 0.0
    %1952 = vmatprep.subr.mxu0 0.0
    %1953 = vmatpush2.msra.mxu0 0.0
    %1954 = vmatprep.subr.mxu0 0.0
    %1955 = vmatpush2.msra.mxu0 0.0
    %1956 = vmatprep.mubr.f32.mxu0 0.0
    %1957 = vmatmul.mubr.f32.gmra.mxu0 %v1819
    %v1958 = vpop.f32.mrf.mxu0
    %v1959 = vadd.f32 %v1880, %v1958
    %v1960 = vpop.f32.mrf.mxu0
    %v1961 = vadd.f32 %v1884, %v1960
    %1962 = vmatprep.mubr.f32.mxu0 0.0
    %1963 = vmatmul.mubr.f32.gmra.mxu0 %v1820
    %v1964 = vpop.f32.mrf.mxu0
    %v1965 = vadd.f32 %v1880, %v1964
    %v1966 = vpop.f32.mrf.mxu0
    %v1967 = vadd.f32 %v1884, %v1966
    %1968 = vmatprep.mubr.f32.mxu0 0.0
    %1969 = vmatmul.mubr.f32.gmra.mxu0 %v1821
    %v1970 = vpop.f32.mrf.mxu0
    %v1971 = vadd.f32 %v1880, %v1970
    %v1972 = vpop.f32.mrf.mxu0
    %v1973 = vadd.f32 %v1884, %v1972
    %1974 = vmatprep.mubr.f32.mxu0 0.0
    %1975 = vmatmul.mubr.f32.gmra.mxu0 %v1822
    %v1976 = vpop.f32.mrf.mxu0
    %v1977 = vadd.f32 %v1880, %v1976
    %v1978 = vpop.f32.mrf.mxu0
    %v1979 = vadd.f32 %v1884, %v1978
    %1980 = vmatprep.mubr.f32.mxu0 0.0
    %1981 = vmatmul.mubr.f32.gmra.mxu0 %v1823
    %v1982 = vpop.f32.mrf.mxu0
    %v1983 = vadd.f32 %v1880, %v1982
    %v1984 = vpop.f32.mrf.mxu0
    %v1985 = vadd.f32 %v1884, %v1984
    %1986 = vmatprep.mubr.f32.mxu0 0.0
    %1987 = vmatmul.mubr.f32.gmra.mxu0 %v1824
    %v1988 = vpop.f32.mrf.mxu0
    %v1989 = vadd.f32 %v1880, %v1988
    %v1990 = vpop.f32.mrf.mxu0
    %v1991 = vadd.f32 %v1884, %v1990
    %1992 = vmatprep.mubr.f32.mxu0 0.0
    %1993 = vmatmul.mubr.f32.gmra.mxu0 %v1825
    %v1994 = vpop.f32.mrf.mxu0
    %v1995 = vadd.f32 %v1880, %v1994
    %v1996 = vpop.f32.mrf.mxu0
    %v1997 = vadd.f32 %v1884, %v1996
    %1998 = vmatprep.mubr.f32.mxu0 0.0
    %1999 = vmatmul.mubr.f32.gmra.mxu0 %v1826
    %v2000 = vpop.f32.mrf.mxu0
    %v2001 = vadd.f32 %v1880, %v2000
    %v2002 = vpop.f32.mrf.mxu0
    %v2003 = vadd.f32 %v1884, %v2002
    %2004 = vdwg.mxu0
    %2005 = vmatprep.subr.mxu0 0.0
    %2006 = vmatpush1.msra.mxu0 %v1874
    %2007 = vmatprep.subr.mxu0 0.0
    %2008 = vmatpush1.msra.mxu0 %v1871
    %2009 = vmatprep.subr.mxu0 0.0
    %2010 = vmatpush1.msra.mxu0 %v1868
    %2011 = vmatprep.subr.mxu0 0.0
    %2012 = vmatpush1.msra.mxu0 %v1865
    %2013 = vmatprep.subr.mxu0 0.0
    %2014 = vmatpush1.msra.mxu0 %v1862
    %2015 = vmatprep.subr.mxu0 0.0
    %2016 = vmatpush1.msra.mxu0 %v1859
    %2017 = vmatprep.subr.mxu0 0.0
    %2018 = vmatpush1.msra.mxu0 %v1856
    %2019 = vmatprep.subr.mxu0 0.0
    %2020 = vmatpush1.msra.mxu0 %v1853
    %2021 = vmatprep.subr.mxu0 0.0
    %2022 = vmatpush1.msra.mxu0 %v1850
    %2023 = vmatprep.subr.mxu0 0.0
    %2024 = vmatpush1.msra.mxu0 %v1847
    %2025 = vmatprep.subr.mxu0 0.0
    %2026 = vmatpush1.msra.mxu0 %v1844
    %2027 = vmatprep.subr.mxu0 0.0
    %2028 = vmatpush1.msra.mxu0 %v1841
    %2029 = vmatprep.subr.mxu0 0.0
    %2030 = vmatpush1.msra.mxu0 %v1838
    %2031 = vmatprep.subr.mxu0 0.0
    %2032 = vmatpush1.msra.mxu0 %v1835
    %2033 = vmatprep.subr.mxu0 0.0
    %2034 = vmatpush1.msra.mxu0 %v1832
    %2035 = vmatprep.subr.mxu0 0.0
    %2036 = vmatpush1.msra.mxu0 %v1829
    %2037 = vmatprep.subr.mxu0 0.0
    %2038 = vmatpush2.msra.mxu0 0.0
    %2039 = vmatprep.subr.mxu0 0.0
    %2040 = vmatpush2.msra.mxu0 0.0
    %2041 = vmatprep.subr.mxu0 0.0
    %2042 = vmatpush2.msra.mxu0 0.0
    %2043 = vmatprep.subr.mxu0 0.0
    %2044 = vmatpush2.msra.mxu0 0.0
    %2045 = vmatprep.subr.mxu0 0.0
    %2046 = vmatpush2.msra.mxu0 0.0
    %2047 = vmatprep.subr.mxu0 0.0
    %2048 = vmatpush2.msra.mxu0 0.0
    %2049 = vmatprep.subr.mxu0 0.0
    %2050 = vmatpush2.msra.mxu0 0.0
    %2051 = vmatprep.subr.mxu0 0.0
    %2052 = vmatpush2.msra.mxu0 0.0
    %2053 = vmatprep.subr.mxu0 0.0
    %2054 = vmatpush2.msra.mxu0 0.0
    %2055 = vmatprep.subr.mxu0 0.0
    %2056 = vmatpush2.msra.mxu0 0.0
    %2057 = vmatprep.subr.mxu0 0.0
    %2058 = vmatpush2.msra.mxu0 0.0
    %2059 = vmatprep.subr.mxu0 0.0
    %2060 = vmatpush2.msra.mxu0 0.0
    %2061 = vmatprep.subr.mxu0 0.0
    %2062 = vmatpush2.msra.mxu0 0.0
    %2063 = vmatprep.subr.mxu0 0.0
    %2064 = vmatpush2.msra.mxu0 0.0
    %2065 = vmatprep.subr.mxu0 0.0
    %2066 = vmatpush2.msra.mxu0 0.0
    %2067 = vmatprep.subr.mxu0 0.0
    %2068 = vmatpush2.msra.mxu0 0.0
    %2069 = vmatprep.mubr.f32.mxu0 0.0
    %2070 = vmatmul.mubr.f32.gmra.mxu0 %v1819
    %v2071 = vpop.f32.mrf.mxu0
    %v2072 = vadd.f32 %v1888, %v2071
    %v2073 = vpop.f32.mrf.mxu0
    %2074 = vmatprep.mubr.f32.mxu0 0.0
    %2075 = vmatmul.mubr.f32.gmra.mxu0 %v1820
    %v2076 = vpop.f32.mrf.mxu0
    %v2077 = vadd.f32 %v1888, %v2076
    %v2078 = vpop.f32.mrf.mxu0
    %2079 = vmatprep.mubr.f32.mxu0 0.0
    %2080 = vmatmul.mubr.f32.gmra.mxu0 %v1821
    %v2081 = vpop.f32.mrf.mxu0
    %v2082 = vadd.f32 %v1888, %v2081
    %v2083 = vpop.f32.mrf.mxu0
    %2084 = vmatprep.mubr.f32.mxu0 0.0
    %2085 = vmatmul.mubr.f32.gmra.mxu0 %v1822
    %v2086 = vpop.f32.mrf.mxu0
    %v2087 = vadd.f32 %v1888, %v2086
    %v2088 = vpop.f32.mrf.mxu0
    %2089 = vmatprep.mubr.f32.mxu0 0.0
    %2090 = vmatmul.mubr.f32.gmra.mxu0 %v1823
    %v2091 = vpop.f32.mrf.mxu0
    %v2092 = vadd.f32 %v1888, %v2091
    %v2093 = vpop.f32.mrf.mxu0
    %2094 = vmatprep.mubr.f32.mxu0 0.0
    %2095 = vmatmul.mubr.f32.gmra.mxu0 %v1824
    %v2096 = vpop.f32.mrf.mxu0
    %v2097 = vadd.f32 %v1888, %v2096
    %v2098 = vpop.f32.mrf.mxu0
    %2099 = vmatprep.mubr.f32.mxu0 0.0
    %2100 = vmatmul.mubr.f32.gmra.mxu0 %v1825
    %v2101 = vpop.f32.mrf.mxu0
    %v2102 = vadd.f32 %v1888, %v2101
    %v2103 = vpop.f32.mrf.mxu0
    %2104 = vmatprep.mubr.f32.mxu0 0.0
    %2105 = vmatmul.mubr.f32.gmra.mxu0 %v1826
    %v2106 = vpop.f32.mrf.mxu0
    %v2107 = vadd.f32 %v1888, %v2106
    %v2108 = vpop.f32.mrf.mxu0
    %2109 = vdwg.mxu0
    %2110 = vst [vmem:[#allocation2] sm:$0xff] %v1959
    %2111 = vst [vmem:[#allocation2 + $0x8] sm:$0xff] %v1961
    %2112 = vst [vmem:[#allocation2 + $0x10] sm:$0xff] %v2072
    %2113 = vst [vmem:[#allocation2 + $0x18] sm:$0xff] %v1965
    %2114 = vst [vmem:[#allocation2 + $0x20] sm:$0xff] %v1967
    %2115 = vst [vmem:[#allocation2 + $0x28] sm:$0xff] %v2077
    %2116 = vst [vmem:[#allocation2 + $0x30] sm:$0xff] %v1971
    %2117 = vst [vmem:[#allocation2 + $0x38] sm:$0xff] %v1973
    %2118 = vst [vmem:[#allocation2 + $0x40] sm:$0xff] %v2082
    %2119 = vst [vmem:[#allocation2 + $0x48] sm:$0xff] %v1977
    %2120 = vst [vmem:[#allocation2 + $0x50] sm:$0xff] %v1979
    %2121 = vst [vmem:[#allocation2 + $0x58] sm:$0xff] %v2087
    %2122 = vst [vmem:[#allocation2 + $0x60] sm:$0xff] %v1983
    %2123 = vst [vmem:[#allocation2 + $0x68] sm:$0xff] %v1985
    %2124 = vst [vmem:[#allocation2 + $0x70] sm:$0xff] %v2092
    %2125 = vst [vmem:[#allocation2 + $0x78] sm:$0xff] %v1989
    %2126 = vst [vmem:[#allocation2 + $0x80] sm:$0xff] %v1991
    %2127 = vst [vmem:[#allocation2 + $0x88] sm:$0xff] %v2097
    %2128 = vst [vmem:[#allocation2 + $0x90] sm:$0xff] %v1995
    %2129 = vst [vmem:[#allocation2 + $0x98] sm:$0xff] %v1997
    %2130 = vst [vmem:[#allocation2 + $0xa0] sm:$0xff] %v2102
    %2131 = vst [vmem:[#allocation2 + $0xa8] sm:$0xff] %v2001
    %2132 = vst [vmem:[#allocation2 + $0xb0] sm:$0xff] %v2003
    %2133 = vst [vmem:[#allocation2 + $0xb8] sm:$0xff] %v2107
    %v2134 = vld [vmem:[#allocation12] sm:$0xff]
    %v2135 = vld [vmem:[#allocation12 + $0x8] sm:$0xff]
    %v2136 = vld [vmem:[#allocation12 + $0x10] sm:$0xff]
    %v2137 = vld [vmem:[#allocation12 + $0x18] sm:$0xff]
    %v2138 = vld [vmem:[#allocation12 + $0x20] sm:$0xff]
    %v2139 = vld [vmem:[#allocation12 + $0x28] sm:$0xff]
    %v2140 = vld [vmem:[#allocation12 + $0x30] sm:$0xff]
    %v2141 = vld [vmem:[#allocation12 + $0x38] sm:$0xff]
    %v2142 = vld [vmem:[#allocation12 + $0x40] sm:$0xff]
    %v2143 = vld [vmem:[#allocation12 + $0x48] sm:$0xff]
    %v2144 = vld [vmem:[#allocation12 + $0x50] sm:$0xff]
    %v2145 = vld [vmem:[#allocation12 + $0x58] sm:$0xff]
    %v2146 = vld [vmem:[#allocation12 + $0x60] sm:$0xff]
    %v2147 = vld [vmem:[#allocation12 + $0x68] sm:$0xff]
    %v2148 = vld [vmem:[#allocation12 + $0x70] sm:$0xff]
    %v2149 = vld [vmem:[#allocation12 + $0x78] sm:$0xff]
    %v2150 = vld [vmem:[#allocation12 + $0x80] sm:$0xff]
    %v2151 = vld [vmem:[#allocation12 + $0x88] sm:$0xff]
    %v2152 = vld [vmem:[#allocation12 + $0x90] sm:$0xff]
    %v2153 = vld [vmem:[#allocation12 + $0x98] sm:$0xff]
    %v2154 = vld [vmem:[#allocation12 + $0xa0] sm:$0xff]
    %v2155 = vld [vmem:[#allocation12 + $0xa8] sm:$0xff]
    %v2156 = vld [vmem:[#allocation12 + $0xb0] sm:$0xff]
    %v2157 = vld [vmem:[#allocation12 + $0xb8] sm:$0xff]
    %v2158 = vld [vmem:[#allocation12 + $0xc0] sm:$0xff]
    %v2159 = vld [vmem:[#allocation12 + $0xc8] sm:$0xff]
    %v2160 = vld [vmem:[#allocation12 + $0xd0] sm:$0xff]
    %v2161 = vld [vmem:[#allocation12 + $0xd8] sm:$0xff]
    %v2162 = vld [vmem:[#allocation12 + $0xe0] sm:$0xff]
    %v2163 = vld [vmem:[#allocation12 + $0xe8] sm:$0xff]
    %v2164 = vld [vmem:[#allocation12 + $0xf0] sm:$0xff]
    %v2165 = vld [vmem:[#allocation12 + $0xf8] sm:$0xff]
    %v2166 = vld [vmem:[#allocation12 + $0x100] sm:$0xff]
    %v2167 = vld [vmem:[#allocation12 + $0x108] sm:$0xff]
    %v2168 = vld [vmem:[#allocation12 + $0x110] sm:$0xff]
    %v2169 = vld [vmem:[#allocation12 + $0x118] sm:$0xff]
    %v2170 = vld [vmem:[#allocation12 + $0x120] sm:$0xff]
    %v2171 = vld [vmem:[#allocation12 + $0x128] sm:$0xff]
    %v2172 = vld [vmem:[#allocation12 + $0x130] sm:$0xff]
    %v2173 = vld [vmem:[#allocation12 + $0x138] sm:$0xff]
    %v2174 = vld [vmem:[#allocation12 + $0x140] sm:$0xff]
    %v2175 = vld [vmem:[#allocation12 + $0x148] sm:$0xff]
    %v2176 = vld [vmem:[#allocation12 + $0x150] sm:$0xff]
    %v2177 = vld [vmem:[#allocation12 + $0x158] sm:$0xff]
    %v2178 = vld [vmem:[#allocation12 + $0x160] sm:$0xff]
    %v2179 = vld [vmem:[#allocation12 + $0x168] sm:$0xff]
    %v2180 = vld [vmem:[#allocation12 + $0x170] sm:$0xff]
    %v2181 = vld [vmem:[#allocation12 + $0x178] sm:$0xff]
    %v2182 = vld [vmem:[%s8] sm:$0x1]
    %v2184 = vlaneseq
    %v2185 = vshrl.u32 %v2184, 7
    %v2186 = vsub.s32 0, %v2185
    %v2187 = vrot.slane %v2182, %v2186
    %v2189 = vld [vmem:[#allocation2] sm:$0xff]
    %v2190 = vld [vmem:[#allocation2 + $0x8] sm:$0xff]
    %v2191 = vld [vmem:[#allocation2 + $0x10] sm:$0xff]
    %2192 = vmatprep.subr.mxu0 %v2180
    %2193 = vmatpush1.msra.mxu0 %v2179
    %2194 = vmatprep.subr.mxu0 %v2177
    %2195 = vmatpush1.msra.mxu0 %v2176
    %2196 = vmatprep.subr.mxu0 %v2174
    %2197 = vmatpush1.msra.mxu0 %v2173
    %2198 = vmatprep.subr.mxu0 %v2171
    %2199 = vmatpush1.msra.mxu0 %v2170
    %2200 = vmatprep.subr.mxu0 %v2168
    %2201 = vmatpush1.msra.mxu0 %v2167
    %2202 = vmatprep.subr.mxu0 %v2165
    %2203 = vmatpush1.msra.mxu0 %v2164
    %2204 = vmatprep.subr.mxu0 %v2162
    %2205 = vmatpush1.msra.mxu0 %v2161
    %2206 = vmatprep.subr.mxu0 %v2159
    %2207 = vmatpush1.msra.mxu0 %v2158
    %2208 = vmatprep.subr.mxu0 %v2156
    %2209 = vmatpush1.msra.mxu0 %v2155
    %2210 = vmatprep.subr.mxu0 %v2153
    %2211 = vmatpush1.msra.mxu0 %v2152
    %2212 = vmatprep.subr.mxu0 %v2150
    %2213 = vmatpush1.msra.mxu0 %v2149
    %2214 = vmatprep.subr.mxu0 %v2147
    %2215 = vmatpush1.msra.mxu0 %v2146
    %2216 = vmatprep.subr.mxu0 %v2144
    %2217 = vmatpush1.msra.mxu0 %v2143
    %2218 = vmatprep.subr.mxu0 %v2141
    %2219 = vmatpush1.msra.mxu0 %v2140
    %2220 = vmatprep.subr.mxu0 %v2138
    %2221 = vmatpush1.msra.mxu0 %v2137
    %2222 = vmatprep.subr.mxu0 %v2135
    %2223 = vmatpush1.msra.mxu0 %v2134
    %2224 = vmatprep.subr.mxu0 0.0
    %2225 = vmatpush2.msra.mxu0 0.0
    %2226 = vmatprep.subr.mxu0 0.0
    %2227 = vmatpush2.msra.mxu0 0.0
    %2228 = vmatprep.subr.mxu0 0.0
    %2229 = vmatpush2.msra.mxu0 0.0
    %2230 = vmatprep.subr.mxu0 0.0
    %2231 = vmatpush2.msra.mxu0 0.0
    %2232 = vmatprep.subr.mxu0 0.0
    %2233 = vmatpush2.msra.mxu0 0.0
    %2234 = vmatprep.subr.mxu0 0.0
    %2235 = vmatpush2.msra.mxu0 0.0
    %2236 = vmatprep.subr.mxu0 0.0
    %2237 = vmatpush2.msra.mxu0 0.0
    %2238 = vmatprep.subr.mxu0 0.0
    %2239 = vmatpush2.msra.mxu0 0.0
    %2240 = vmatprep.subr.mxu0 0.0
    %2241 = vmatpush2.msra.mxu0 0.0
    %2242 = vmatprep.subr.mxu0 0.0
    %2243 = vmatpush2.msra.mxu0 0.0
    %2244 = vmatprep.subr.mxu0 0.0
    %2245 = vmatpush2.msra.mxu0 0.0
    %2246 = vmatprep.subr.mxu0 0.0
    %2247 = vmatpush2.msra.mxu0 0.0
    %2248 = vmatprep.subr.mxu0 0.0
    %2249 = vmatpush2.msra.mxu0 0.0
    %2250 = vmatprep.subr.mxu0 0.0
    %2251 = vmatpush2.msra.mxu0 0.0
    %2252 = vmatprep.subr.mxu0 0.0
    %2253 = vmatpush2.msra.mxu0 0.0
    %2254 = vmatprep.subr.mxu0 0.0
    %2255 = vmatpush2.msra.mxu0 0.0
    %2256 = vmatprep.mubr.f32.mxu0 0.0
    %2257 = vmatmul.mubr.f32.gmra.mxu0 0.0
    %v2258 = vpop.f32.mrf.mxu0
    %v2259 = vadd.f32 0.0, %v2258
    %v2260 = vpop.f32.mrf.mxu0
    %v2261 = vadd.f32 0.0, %v2260
    %2262 = vdwg.mxu0
    %2263 = vmatprep.subr.mxu0 0.0
    %2264 = vmatpush1.msra.mxu0 %v2181
    %2265 = vmatprep.subr.mxu0 0.0
    %2266 = vmatpush1.msra.mxu0 %v2178
    %2267 = vmatprep.subr.mxu0 0.0
    %2268 = vmatpush1.msra.mxu0 %v2175
    %2269 = vmatprep.subr.mxu0 0.0
    %2270 = vmatpush1.msra.mxu0 %v2172
    %2271 = vmatprep.subr.mxu0 0.0
    %2272 = vmatpush1.msra.mxu0 %v2169
    %2273 = vmatprep.subr.mxu0 0.0
    %2274 = vmatpush1.msra.mxu0 %v2166
    %2275 = vmatprep.subr.mxu0 0.0
    %2276 = vmatpush1.msra.mxu0 %v2163
    %2277 = vmatprep.subr.mxu0 0.0
    %2278 = vmatpush1.msra.mxu0 %v2160
    %2279 = vmatprep.subr.mxu0 0.0
    %2280 = vmatpush1.msra.mxu0 %v2157
    %2281 = vmatprep.subr.mxu0 0.0
    %2282 = vmatpush1.msra.mxu0 %v2154
    %2283 = vmatprep.subr.mxu0 0.0
    %2284 = vmatpush1.msra.mxu0 %v2151
    %2285 = vmatprep.subr.mxu0 0.0
    %2286 = vmatpush1.msra.mxu0 %v2148
    %2287 = vmatprep.subr.mxu0 0.0
    %2288 = vmatpush1.msra.mxu0 %v2145
    %2289 = vmatprep.subr.mxu0 0.0
    %2290 = vmatpush1.msra.mxu0 %v2142
    %2291 = vmatprep.subr.mxu0 0.0
    %2292 = vmatpush1.msra.mxu0 %v2139
    %2293 = vmatprep.subr.mxu0 0.0
    %2294 = vmatpush1.msra.mxu0 %v2136
    %2295 = vmatprep.subr.mxu0 0.0
    %2296 = vmatpush2.msra.mxu0 0.0
    %2297 = vmatprep.subr.mxu0 0.0
    %2298 = vmatpush2.msra.mxu0 0.0
    %2299 = vmatprep.subr.mxu0 0.0
    %2300 = vmatpush2.msra.mxu0 0.0
    %2301 = vmatprep.subr.mxu0 0.0
    %2302 = vmatpush2.msra.mxu0 0.0
    %2303 = vmatprep.subr.mxu0 0.0
    %2304 = vmatpush2.msra.mxu0 0.0
    %2305 = vmatprep.subr.mxu0 0.0
    %2306 = vmatpush2.msra.mxu0 0.0
    %2307 = vmatprep.subr.mxu0 0.0
    %2308 = vmatpush2.msra.mxu0 0.0
    %2309 = vmatprep.subr.mxu0 0.0
    %2310 = vmatpush2.msra.mxu0 0.0
    %2311 = vmatprep.subr.mxu0 0.0
    %2312 = vmatpush2.msra.mxu0 0.0
    %2313 = vmatprep.subr.mxu0 0.0
    %2314 = vmatpush2.msra.mxu0 0.0
    %2315 = vmatprep.subr.mxu0 0.0
    %2316 = vmatpush2.msra.mxu0 0.0
    %2317 = vmatprep.subr.mxu0 0.0
    %2318 = vmatpush2.msra.mxu0 0.0
    %2319 = vmatprep.subr.mxu0 0.0
    %2320 = vmatpush2.msra.mxu0 0.0
    %2321 = vmatprep.subr.mxu0 0.0
    %2322 = vmatpush2.msra.mxu0 0.0
    %2323 = vmatprep.subr.mxu0 0.0
    %2324 = vmatpush2.msra.mxu0 0.0
    %2325 = vmatprep.subr.mxu0 0.0
    %2326 = vmatpush2.msra.mxu0 0.0
    %2327 = vmatprep.mubr.f32.mxu0 0.0
    %2328 = vmatmul.mubr.f32.gmra.mxu0 0.0
    %v2329 = vpop.f32.mrf.mxu0
    %v2330 = vadd.f32 0.0, %v2329
    %v2331 = vpop.f32.mrf.mxu0
    %2332 = vdwg.mxu0
    %v2333 = vadd.f32 %v2189, %v2259
    %v2334 = vxor.u32 %v2333, 2147483648
    %v2335 = vmul.f32 %v2334, 1.442695
    %v2336 = vpow.pop %v2335
    %v2337 = vadd.f32 %v2336, 1.0
    %v2338 = vrcp.pop %v2337
    %v2339 = vmul.f32 1.0, %v2338
    %v2340 = vadd.f32 %v2190, %v2261
    %v2341 = vxor.u32 %v2340, 2147483648
    %v2342 = vmul.f32 %v2341, 1.442695
    %v2343 = vpow.pop %v2342
    %v2344 = vadd.f32 %v2343, 1.0
    %v2345 = vrcp.pop %v2344
    %v2346 = vmul.f32 1.0, %v2345
    %v2347 = vadd.f32 %v2330, %v2187
    %v2348 = vmul.f32 %v2339, %v2347
    %v2349 = vadd.f32 %v2191, %v2348
    %v2350 = vtanh.pop %v2349
    %v2351 = vsub.f32 1.0, %v2346
    %v2352 = vmul.f32 %v2351, %v2350
    %v2353 = vmul.f32 %v2346, 0.0
    %v2354 = vadd.f32 %v2352, %v2353
    %v2355 = vld [vmem:[%s636] sm:$0xff]
    %v2356 = vld [vmem:[%s636 + $0x8] sm:$0xff]
    %v2357 = vld [vmem:[%s636 + $0x10] sm:$0xff]
    %2358 = vmatprep.subr.mxu0 %v2180
    %2359 = vmatpush1.msra.mxu0 %v2179
    %2360 = vmatprep.subr.mxu0 %v2177
    %2361 = vmatpush1.msra.mxu0 %v2176
    %2362 = vmatprep.subr.mxu0 %v2174
    %2363 = vmatpush1.msra.mxu0 %v2173
    %2364 = vmatprep.subr.mxu0 %v2171
    %2365 = vmatpush1.msra.mxu0 %v2170
    %2366 = vmatprep.subr.mxu0 %v2168
    %2367 = vmatpush1.msra.mxu0 %v2167
    %2368 = vmatprep.subr.mxu0 %v2165
    %2369 = vmatpush1.msra.mxu0 %v2164
    %2370 = vmatprep.subr.mxu0 %v2162
    %2371 = vmatpush1.msra.mxu0 %v2161
    %2372 = vmatprep.subr.mxu0 %v2159
    %2373 = vmatpush1.msra.mxu0 %v2158
    %2374 = vmatprep.subr.mxu0 %v2156
    %2375 = vmatpush1.msra.mxu0 %v2155
    %2376 = vmatprep.subr.mxu0 %v2153
    %2377 = vmatpush1.msra.mxu0 %v2152
    %2378 = vmatprep.subr.mxu0 %v2150
    %2379 = vmatpush1.msra.mxu0 %v2149
    %2380 = vmatprep.subr.mxu0 %v2147
    %2381 = vmatpush1.msra.mxu0 %v2146
    %2382 = vmatprep.subr.mxu0 %v2144
    %2383 = vmatpush1.msra.mxu0 %v2143
    %2384 = vmatprep.subr.mxu0 %v2141
    %2385 = vmatpush1.msra.mxu0 %v2140
    %2386 = vmatprep.subr.mxu0 %v2138
    %2387 = vmatpush1.msra.mxu0 %v2137
    %2388 = vmatprep.subr.mxu0 %v2135
    %2389 = vmatpush1.msra.mxu0 %v2134
    %2390 = vmatprep.subr.mxu0 0.0
    %2391 = vmatpush2.msra.mxu0 0.0
    %2392 = vmatprep.subr.mxu0 0.0
    %2393 = vmatpush2.msra.mxu0 0.0
    %2394 = vmatprep.subr.mxu0 0.0
    %2395 = vmatpush2.msra.mxu0 0.0
    %2396 = vmatprep.subr.mxu0 0.0
    %2397 = vmatpush2.msra.mxu0 0.0
    %2398 = vmatprep.subr.mxu0 0.0
    %2399 = vmatpush2.msra.mxu0 0.0
    %2400 = vmatprep.subr.mxu0 0.0
    %2401 = vmatpush2.msra.mxu0 0.0
    %2402 = vmatprep.subr.mxu0 0.0
    %2403 = vmatpush2.msra.mxu0 0.0
    %2404 = vmatprep.subr.mxu0 0.0
    %2405 = vmatpush2.msra.mxu0 0.0
    %2406 = vmatprep.subr.mxu0 0.0
    %2407 = vmatpush2.msra.mxu0 0.0
    %2408 = vmatprep.subr.mxu0 0.0
    %2409 = vmatpush2.msra.mxu0 0.0
    %2410 = vmatprep.subr.mxu0 0.0
    %2411 = vmatpush2.msra.mxu0 0.0
    %2412 = vmatprep.subr.mxu0 0.0
    %2413 = vmatpush2.msra.mxu0 0.0
    %2414 = vmatprep.subr.mxu0 0.0
    %2415 = vmatpush2.msra.mxu0 0.0
    %2416 = vmatprep.subr.mxu0 0.0
    %2417 = vmatpush2.msra.mxu0 0.0
    %2418 = vmatprep.subr.mxu0 0.0
    %2419 = vmatpush2.msra.mxu0 0.0
    %2420 = vmatprep.subr.mxu0 0.0
    %2421 = vmatpush2.msra.mxu0 0.0
    %2422 = vmatprep.mubr.f32.mxu0 0.0
    %2423 = vmatmul.mubr.f32.gmra.mxu0 %v2354
    %v2424 = vpop.f32.mrf.mxu0
    %v2425 = vadd.f32 0.0, %v2424
    %v2426 = vpop.f32.mrf.mxu0
    %v2427 = vadd.f32 0.0, %v2426
    %2428 = vdwg.mxu0
    %2429 = vmatprep.subr.mxu0 0.0
    %2430 = vmatpush1.msra.mxu0 %v2181
    %2431 = vmatprep.subr.mxu0 0.0
    %2432 = vmatpush1.msra.mxu0 %v2178
    %2433 = vmatprep.subr.mxu0 0.0
    %2434 = vmatpush1.msra.mxu0 %v2175
    %2435 = vmatprep.subr.mxu0 0.0
    %2436 = vmatpush1.msra.mxu0 %v2172
    %2437 = vmatprep.subr.mxu0 0.0
    %2438 = vmatpush1.msra.mxu0 %v2169
    %2439 = vmatprep.subr.mxu0 0.0
    %2440 = vmatpush1.msra.mxu0 %v2166
    %2441 = vmatprep.subr.mxu0 0.0
    %2442 = vmatpush1.msra.mxu0 %v2163
    %2443 = vmatprep.subr.mxu0 0.0
    %2444 = vmatpush1.msra.mxu0 %v2160
    %2445 = vmatprep.subr.mxu0 0.0
    %2446 = vmatpush1.msra.mxu0 %v2157
    %2447 = vmatprep.subr.mxu0 0.0
    %2448 = vmatpush1.msra.mxu0 %v2154
    %2449 = vmatprep.subr.mxu0 0.0
    %2450 = vmatpush1.msra.mxu0 %v2151
    %2451 = vmatprep.subr.mxu0 0.0
    %2452 = vmatpush1.msra.mxu0 %v2148
    %2453 = vmatprep.subr.mxu0 0.0
    %2454 = vmatpush1.msra.mxu0 %v2145
    %2455 = vmatprep.subr.mxu0 0.0
    %2456 = vmatpush1.msra.mxu0 %v2142
    %2457 = vmatprep.subr.mxu0 0.0
    %2458 = vmatpush1.msra.mxu0 %v2139
    %2459 = vmatprep.subr.mxu0 0.0
    %2460 = vmatpush1.msra.mxu0 %v2136
    %2461 = vmatprep.subr.mxu0 0.0
    %2462 = vmatpush2.msra.mxu0 0.0
    %2463 = vmatprep.subr.mxu0 0.0
    %2464 = vmatpush2.msra.mxu0 0.0
    %2465 = vmatprep.subr.mxu0 0.0
    %2466 = vmatpush2.msra.mxu0 0.0
    %2467 = vmatprep.subr.mxu0 0.0
    %2468 = vmatpush2.msra.mxu0 0.0
    %2469 = vmatprep.subr.mxu0 0.0
    %2470 = vmatpush2.msra.mxu0 0.0
    %2471 = vmatprep.subr.mxu0 0.0
    %2472 = vmatpush2.msra.mxu0 0.0
    %2473 = vmatprep.subr.mxu0 0.0
    %2474 = vmatpush2.msra.mxu0 0.0
    %2475 = vmatprep.subr.mxu0 0.0
    %2476 = vmatpush2.msra.mxu0 0.0
    %2477 = vmatprep.subr.mxu0 0.0
    %2478 = vmatpush2.msra.mxu0 0.0
    %2479 = vmatprep.subr.mxu0 0.0
    %2480 = vmatpush2.msra.mxu0 0.0
    %2481 = vmatprep.subr.mxu0 0.0
    %2482 = vmatpush2.msra.mxu0 0.0
    %2483 = vmatprep.subr.mxu0 0.0
    %2484 = vmatpush2.msra.mxu0 0.0
    %2485 = vmatprep.subr.mxu0 0.0
    %2486 = vmatpush2.msra.mxu0 0.0
    %2487 = vmatprep.subr.mxu0 0.0
    %2488 = vmatpush2.msra.mxu0 0.0
    %2489 = vmatprep.subr.mxu0 0.0
    %2490 = vmatpush2.msra.mxu0 0.0
    %2491 = vmatprep.subr.mxu0 0.0
    %2492 = vmatpush2.msra.mxu0 0.0
    %2493 = vmatprep.mubr.f32.mxu0 0.0
    %2494 = vmatmul.mubr.f32.gmra.mxu0 %v2354
    %v2495 = vpop.f32.mrf.mxu0
    %v2496 = vadd.f32 0.0, %v2495
    %v2497 = vpop.f32.mrf.mxu0
    %2498 = vdwg.mxu0
    %v2499 = vadd.f32 %v2355, %v2425
    %v2500 = vxor.u32 %v2499, 2147483648
    %v2501 = vmul.f32 %v2500, 1.442695
    %v2502 = vpow.pop %v2501
    %v2503 = vadd.f32 %v2502, 1.0
    %v2504 = vrcp.pop %v2503
    %v2505 = vmul.f32 1.0, %v2504
    %v2506 = vadd.f32 %v2356, %v2427
    %v2507 = vxor.u32 %v2506, 2147483648
    %v2508 = vmul.f32 %v2507, 1.442695
    %v2509 = vpow.pop %v2508
    %v2510 = vadd.f32 %v2509, 1.0
    %v2511 = vrcp.pop %v2510
    %v2512 = vmul.f32 1.0, %v2511
    %v2513 = vadd.f32 %v2496, %v2187
    %v2514 = vmul.f32 %v2505, %v2513
    %v2515 = vadd.f32 %v2357, %v2514
    %v2516 = vtanh.pop %v2515
    %v2517 = vsub.f32 1.0, %v2512
    %v2518 = vmul.f32 %v2517, %v2516
    %v2519 = vmul.f32 %v2512, %v2354
    %v2520 = vadd.f32 %v2518, %v2519
    %v2521 = vld [vmem:[%s805] sm:$0xff]
    %v2522 = vld [vmem:[%s805 + $0x8] sm:$0xff]
    %v2523 = vld [vmem:[%s805 + $0x10] sm:$0xff]
    %2524 = vmatprep.subr.mxu0 %v2180
    %2525 = vmatpush1.msra.mxu0 %v2179
    %2526 = vmatprep.subr.mxu0 %v2177
    %2527 = vmatpush1.msra.mxu0 %v2176
    %2528 = vmatprep.subr.mxu0 %v2174
    %2529 = vmatpush1.msra.mxu0 %v2173
    %2530 = vmatprep.subr.mxu0 %v2171
    %2531 = vmatpush1.msra.mxu0 %v2170
    %2532 = vmatprep.subr.mxu0 %v2168
    %2533 = vmatpush1.msra.mxu0 %v2167
    %2534 = vmatprep.subr.mxu0 %v2165
    %2535 = vmatpush1.msra.mxu0 %v2164
    %2536 = vmatprep.subr.mxu0 %v2162
    %2537 = vmatpush1.msra.mxu0 %v2161
    %2538 = vmatprep.subr.mxu0 %v2159
    %2539 = vmatpush1.msra.mxu0 %v2158
    %2540 = vmatprep.subr.mxu0 %v2156
    %2541 = vmatpush1.msra.mxu0 %v2155
    %2542 = vmatprep.subr.mxu0 %v2153
    %2543 = vmatpush1.msra.mxu0 %v2152
    %2544 = vmatprep.subr.mxu0 %v2150
    %2545 = vmatpush1.msra.mxu0 %v2149
    %2546 = vmatprep.subr.mxu0 %v2147
    %2547 = vmatpush1.msra.mxu0 %v2146
    %2548 = vmatprep.subr.mxu0 %v2144
    %2549 = vmatpush1.msra.mxu0 %v2143
    %2550 = vmatprep.subr.mxu0 %v2141
    %2551 = vmatpush1.msra.mxu0 %v2140
    %2552 = vmatprep.subr.mxu0 %v2138
    %2553 = vmatpush1.msra.mxu0 %v2137
    %2554 = vmatprep.subr.mxu0 %v2135
    %2555 = vmatpush1.msra.mxu0 %v2134
    %2556 = vmatprep.subr.mxu0 0.0
    %2557 = vmatpush2.msra.mxu0 0.0
    %2558 = vmatprep.subr.mxu0 0.0
    %2559 = vmatpush2.msra.mxu0 0.0
    %2560 = vmatprep.subr.mxu0 0.0
    %2561 = vmatpush2.msra.mxu0 0.0
    %2562 = vmatprep.subr.mxu0 0.0
    %2563 = vmatpush2.msra.mxu0 0.0
    %2564 = vmatprep.subr.mxu0 0.0
    %2565 = vmatpush2.msra.mxu0 0.0
    %2566 = vmatprep.subr.mxu0 0.0
    %2567 = vmatpush2.msra.mxu0 0.0
    %2568 = vmatprep.subr.mxu0 0.0
    %2569 = vmatpush2.msra.mxu0 0.0
    %2570 = vmatprep.subr.mxu0 0.0
    %2571 = vmatpush2.msra.mxu0 0.0
    %2572 = vmatprep.subr.mxu0 0.0
    %2573 = vmatpush2.msra.mxu0 0.0
    %2574 = vmatprep.subr.mxu0 0.0
    %2575 = vmatpush2.msra.mxu0 0.0
    %2576 = vmatprep.subr.mxu0 0.0
    %2577 = vmatpush2.msra.mxu0 0.0
    %2578 = vmatprep.subr.mxu0 0.0
    %2579 = vmatpush2.msra.mxu0 0.0
    %2580 = vmatprep.subr.mxu0 0.0
    %2581 = vmatpush2.msra.mxu0 0.0
    %2582 = vmatprep.subr.mxu0 0.0
    %2583 = vmatpush2.msra.mxu0 0.0
    %2584 = vmatprep.subr.mxu0 0.0
    %2585 = vmatpush2.msra.mxu0 0.0
    %2586 = vmatprep.subr.mxu0 0.0
    %2587 = vmatpush2.msra.mxu0 0.0
    %2588 = vmatprep.mubr.f32.mxu0 0.0
    %2589 = vmatmul.mubr.f32.gmra.mxu0 %v2520
    %v2590 = vpop.f32.mrf.mxu0
    %v2591 = vadd.f32 0.0, %v2590
    %v2592 = vpop.f32.mrf.mxu0
    %v2593 = vadd.f32 0.0, %v2592
    %2594 = vdwg.mxu0
    %2595 = vmatprep.subr.mxu0 0.0
    %2596 = vmatpush1.msra.mxu0 %v2181
    %2597 = vmatprep.subr.mxu0 0.0
    %2598 = vmatpush1.msra.mxu0 %v2178
    %2599 = vmatprep.subr.mxu0 0.0
    %2600 = vmatpush1.msra.mxu0 %v2175
    %2601 = vmatprep.subr.mxu0 0.0
    %2602 = vmatpush1.msra.mxu0 %v2172
    %2603 = vmatprep.subr.mxu0 0.0
    %2604 = vmatpush1.msra.mxu0 %v2169
    %2605 = vmatprep.subr.mxu0 0.0
    %2606 = vmatpush1.msra.mxu0 %v2166
    %2607 = vmatprep.subr.mxu0 0.0
    %2608 = vmatpush1.msra.mxu0 %v2163
    %2609 = vmatprep.subr.mxu0 0.0
    %2610 = vmatpush1.msra.mxu0 %v2160
    %2611 = vmatprep.subr.mxu0 0.0
    %2612 = vmatpush1.msra.mxu0 %v2157
    %2613 = vmatprep.subr.mxu0 0.0
    %2614 = vmatpush1.msra.mxu0 %v2154
    %2615 = vmatprep.subr.mxu0 0.0
    %2616 = vmatpush1.msra.mxu0 %v2151
    %2617 = vmatprep.subr.mxu0 0.0
    %2618 = vmatpush1.msra.mxu0 %v2148
    %2619 = vmatprep.subr.mxu0 0.0
    %2620 = vmatpush1.msra.mxu0 %v2145
    %2621 = vmatprep.subr.mxu0 0.0
    %2622 = vmatpush1.msra.mxu0 %v2142
    %2623 = vmatprep.subr.mxu0 0.0
    %2624 = vmatpush1.msra.mxu0 %v2139
    %2625 = vmatprep.subr.mxu0 0.0
    %2626 = vmatpush1.msra.mxu0 %v2136
    %2627 = vmatprep.subr.mxu0 0.0
    %2628 = vmatpush2.msra.mxu0 0.0
    %2629 = vmatprep.subr.mxu0 0.0
    %2630 = vmatpush2.msra.mxu0 0.0
    %2631 = vmatprep.subr.mxu0 0.0
    %2632 = vmatpush2.msra.mxu0 0.0
    %2633 = vmatprep.subr.mxu0 0.0
    %2634 = vmatpush2.msra.mxu0 0.0
    %2635 = vmatprep.subr.mxu0 0.0
    %2636 = vmatpush2.msra.mxu0 0.0
    %2637 = vmatprep.subr.mxu0 0.0
    %2638 = vmatpush2.msra.mxu0 0.0
    %2639 = vmatprep.subr.mxu0 0.0
    %2640 = vmatpush2.msra.mxu0 0.0
    %2641 = vmatprep.subr.mxu0 0.0
    %2642 = vmatpush2.msra.mxu0 0.0
    %2643 = vmatprep.subr.mxu0 0.0
    %2644 = vmatpush2.msra.mxu0 0.0
    %2645 = vmatprep.subr.mxu0 0.0
    %2646 = vmatpush2.msra.mxu0 0.0
    %2647 = vmatprep.subr.mxu0 0.0
    %2648 = vmatpush2.msra.mxu0 0.0
    %2649 = vmatprep.subr.mxu0 0.0
    %2650 = vmatpush2.msra.mxu0 0.0
    %2651 = vmatprep.subr.mxu0 0.0
    %2652 = vmatpush2.msra.mxu0 0.0
    %2653 = vmatprep.subr.mxu0 0.0
    %2654 = vmatpush2.msra.mxu0 0.0
    %2655 = vmatprep.subr.mxu0 0.0
    %2656 = vmatpush2.msra.mxu0 0.0
    %2657 = vmatprep.subr.mxu0 0.0
    %2658 = vmatpush2.msra.mxu0 0.0
    %2659 = vmatprep.mubr.f32.mxu0 0.0
    %2660 = vmatmul.mubr.f32.gmra.mxu0 %v2520
    %v2661 = vpop.f32.mrf.mxu0
    %v2662 = vadd.f32 0.0, %v2661
    %v2663 = vpop.f32.mrf.mxu0
    %2664 = vdwg.mxu0
    %v2665 = vadd.f32 %v2521, %v2591
    %v2666 = vxor.u32 %v2665, 2147483648
    %v2667 = vmul.f32 %v2666, 1.442695
    %v2668 = vpow.pop %v2667
    %v2669 = vadd.f32 %v2668, 1.0
    %v2670 = vrcp.pop %v2669
    %v2671 = vmul.f32 1.0, %v2670
    %v2672 = vadd.f32 %v2522, %v2593
    %v2673 = vxor.u32 %v2672, 2147483648
    %v2674 = vmul.f32 %v2673, 1.442695
    %v2675 = vpow.pop %v2674
    %v2676 = vadd.f32 %v2675, 1.0
    %v2677 = vrcp.pop %v2676
    %v2678 = vmul.f32 1.0, %v2677
    %v2679 = vadd.f32 %v2662, %v2187
    %v2680 = vmul.f32 %v2671, %v2679
    %v2681 = vadd.f32 %v2523, %v2680
    %v2682 = vtanh.pop %v2681
    %v2683 = vsub.f32 1.0, %v2678
    %v2684 = vmul.f32 %v2683, %v2682
    %v2685 = vmul.f32 %v2678, %v2520
    %v2686 = vadd.f32 %v2684, %v2685
    %v2687 = vld [vmem:[%s974] sm:$0xff]
    %v2688 = vld [vmem:[%s974 + $0x8] sm:$0xff]
    %v2689 = vld [vmem:[%s974 + $0x10] sm:$0xff]
    %2690 = vmatprep.subr.mxu0 %v2180
    %2691 = vmatpush1.msra.mxu0 %v2179
    %2692 = vmatprep.subr.mxu0 %v2177
    %2693 = vmatpush1.msra.mxu0 %v2176
    %2694 = vmatprep.subr.mxu0 %v2174
    %2695 = vmatpush1.msra.mxu0 %v2173
    %2696 = vmatprep.subr.mxu0 %v2171
    %2697 = vmatpush1.msra.mxu0 %v2170
    %2698 = vmatprep.subr.mxu0 %v2168
    %2699 = vmatpush1.msra.mxu0 %v2167
    %2700 = vmatprep.subr.mxu0 %v2165
    %2701 = vmatpush1.msra.mxu0 %v2164
    %2702 = vmatprep.subr.mxu0 %v2162
    %2703 = vmatpush1.msra.mxu0 %v2161
    %2704 = vmatprep.subr.mxu0 %v2159
    %2705 = vmatpush1.msra.mxu0 %v2158
    %2706 = vmatprep.subr.mxu0 %v2156
    %2707 = vmatpush1.msra.mxu0 %v2155
    %2708 = vmatprep.subr.mxu0 %v2153
    %2709 = vmatpush1.msra.mxu0 %v2152
    %2710 = vmatprep.subr.mxu0 %v2150
    %2711 = vmatpush1.msra.mxu0 %v2149
    %2712 = vmatprep.subr.mxu0 %v2147
    %2713 = vmatpush1.msra.mxu0 %v2146
    %2714 = vmatprep.subr.mxu0 %v2144
    %2715 = vmatpush1.msra.mxu0 %v2143
    %2716 = vmatprep.subr.mxu0 %v2141
    %2717 = vmatpush1.msra.mxu0 %v2140
    %2718 = vmatprep.subr.mxu0 %v2138
    %2719 = vmatpush1.msra.mxu0 %v2137
    %2720 = vmatprep.subr.mxu0 %v2135
    %2721 = vmatpush1.msra.mxu0 %v2134
    %2722 = vmatprep.subr.mxu0 0.0
    %2723 = vmatpush2.msra.mxu0 0.0
    %2724 = vmatprep.subr.mxu0 0.0
    %2725 = vmatpush2.msra.mxu0 0.0
    %2726 = vmatprep.subr.mxu0 0.0
    %2727 = vmatpush2.msra.mxu0 0.0
    %2728 = vmatprep.subr.mxu0 0.0
    %2729 = vmatpush2.msra.mxu0 0.0
    %2730 = vmatprep.subr.mxu0 0.0
    %2731 = vmatpush2.msra.mxu0 0.0
    %2732 = vmatprep.subr.mxu0 0.0
    %2733 = vmatpush2.msra.mxu0 0.0
    %2734 = vmatprep.subr.mxu0 0.0
    %2735 = vmatpush2.msra.mxu0 0.0
    %2736 = vmatprep.subr.mxu0 0.0
    %2737 = vmatpush2.msra.mxu0 0.0
    %2738 = vmatprep.subr.mxu0 0.0
    %2739 = vmatpush2.msra.mxu0 0.0
    %2740 = vmatprep.subr.mxu0 0.0
    %2741 = vmatpush2.msra.mxu0 0.0
    %2742 = vmatprep.subr.mxu0 0.0
    %2743 = vmatpush2.msra.mxu0 0.0
    %2744 = vmatprep.subr.mxu0 0.0
    %2745 = vmatpush2.msra.mxu0 0.0
    %2746 = vmatprep.subr.mxu0 0.0
    %2747 = vmatpush2.msra.mxu0 0.0
    %2748 = vmatprep.subr.mxu0 0.0
    %2749 = vmatpush2.msra.mxu0 0.0
    %2750 = vmatprep.subr.mxu0 0.0
    %2751 = vmatpush2.msra.mxu0 0.0
    %2752 = vmatprep.subr.mxu0 0.0
    %2753 = vmatpush2.msra.mxu0 0.0
    %2754 = vmatprep.mubr.f32.mxu0 0.0
    %2755 = vmatmul.mubr.f32.gmra.mxu0 %v2686
    %v2756 = vpop.f32.mrf.mxu0
    %v2757 = vadd.f32 0.0, %v2756
    %v2758 = vpop.f32.mrf.mxu0
    %v2759 = vadd.f32 0.0, %v2758
    %2760 = vdwg.mxu0
    %2761 = vmatprep.subr.mxu0 0.0
    %2762 = vmatpush1.msra.mxu0 %v2181
    %2763 = vmatprep.subr.mxu0 0.0
    %2764 = vmatpush1.msra.mxu0 %v2178
    %2765 = vmatprep.subr.mxu0 0.0
    %2766 = vmatpush1.msra.mxu0 %v2175
    %2767 = vmatprep.subr.mxu0 0.0
    %2768 = vmatpush1.msra.mxu0 %v2172
    %2769 = vmatprep.subr.mxu0 0.0
    %2770 = vmatpush1.msra.mxu0 %v2169
    %2771 = vmatprep.subr.mxu0 0.0
    %2772 = vmatpush1.msra.mxu0 %v2166
    %2773 = vmatprep.subr.mxu0 0.0
    %2774 = vmatpush1.msra.mxu0 %v2163
    %2775 = vmatprep.subr.mxu0 0.0
    %2776 = vmatpush1.msra.mxu0 %v2160
    %2777 = vmatprep.subr.mxu0 0.0
    %2778 = vmatpush1.msra.mxu0 %v2157
    %2779 = vmatprep.subr.mxu0 0.0
    %2780 = vmatpush1.msra.mxu0 %v2154
    %2781 = vmatprep.subr.mxu0 0.0
    %2782 = vmatpush1.msra.mxu0 %v2151
    %2783 = vmatprep.subr.mxu0 0.0
    %2784 = vmatpush1.msra.mxu0 %v2148
    %2785 = vmatprep.subr.mxu0 0.0
    %2786 = vmatpush1.msra.mxu0 %v2145
    %2787 = vmatprep.subr.mxu0 0.0
    %2788 = vmatpush1.msra.mxu0 %v2142
    %2789 = vmatprep.subr.mxu0 0.0
    %2790 = vmatpush1.msra.mxu0 %v2139
    %2791 = vmatprep.subr.mxu0 0.0
    %2792 = vmatpush1.msra.mxu0 %v2136
    %2793 = vmatprep.subr.mxu0 0.0
    %2794 = vmatpush2.msra.mxu0 0.0
    %2795 = vmatprep.subr.mxu0 0.0
    %2796 = vmatpush2.msra.mxu0 0.0
    %2797 = vmatprep.subr.mxu0 0.0
    %2798 = vmatpush2.msra.mxu0 0.0
    %2799 = vmatprep.subr.mxu0 0.0
    %2800 = vmatpush2.msra.mxu0 0.0
    %2801 = vmatprep.subr.mxu0 0.0
    %2802 = vmatpush2.msra.mxu0 0.0
    %2803 = vmatprep.subr.mxu0 0.0
    %2804 = vmatpush2.msra.mxu0 0.0
    %2805 = vmatprep.subr.mxu0 0.0
    %2806 = vmatpush2.msra.mxu0 0.0
    %2807 = vmatprep.subr.mxu0 0.0
    %2808 = vmatpush2.msra.mxu0 0.0
    %2809 = vmatprep.subr.mxu0 0.0
    %2810 = vmatpush2.msra.mxu0 0.0
    %2811 = vmatprep.subr.mxu0 0.0
    %2812 = vmatpush2.msra.mxu0 0.0
    %2813 = vmatprep.subr.mxu0 0.0
    %2814 = vmatpush2.msra.mxu0 0.0
    %2815 = vmatprep.subr.mxu0 0.0
    %2816 = vmatpush2.msra.mxu0 0.0
    %2817 = vmatprep.subr.mxu0 0.0
    %2818 = vmatpush2.msra.mxu0 0.0
    %2819 = vmatprep.subr.mxu0 0.0
    %2820 = vmatpush2.msra.mxu0 0.0
    %2821 = vmatprep.subr.mxu0 0.0
    %2822 = vmatpush2.msra.mxu0 0.0
    %2823 = vmatprep.subr.mxu0 0.0
    %2824 = vmatpush2.msra.mxu0 0.0
    %2825 = vmatprep.mubr.f32.mxu0 0.0
    %2826 = vmatmul.mubr.f32.gmra.mxu0 %v2686
    %v2827 = vpop.f32.mrf.mxu0
    %v2828 = vadd.f32 0.0, %v2827
    %v2829 = vpop.f32.mrf.mxu0
    %2830 = vdwg.mxu0
    %v2831 = vadd.f32 %v2687, %v2757
    %v2832 = vxor.u32 %v2831, 2147483648
    %v2833 = vmul.f32 %v2832, 1.442695
    %v2834 = vpow.pop %v2833
    %v2835 = vadd.f32 %v2834, 1.0
    %v2836 = vrcp.pop %v2835
    %v2837 = vmul.f32 1.0, %v2836
    %v2838 = vadd.f32 %v2688, %v2759
    %v2839 = vxor.u32 %v2838, 2147483648
    %v2840 = vmul.f32 %v2839, 1.442695
    %v2841 = vpow.pop %v2840
    %v2842 = vadd.f32 %v2841, 1.0
    %v2843 = vrcp.pop %v2842
    %v2844 = vmul.f32 1.0, %v2843
    %v2845 = vadd.f32 %v2828, %v2187
    %v2846 = vmul.f32 %v2837, %v2845
    %v2847 = vadd.f32 %v2689, %v2846
    %v2848 = vtanh.pop %v2847
    %v2849 = vsub.f32 1.0, %v2844
    %v2850 = vmul.f32 %v2849, %v2848
    %v2851 = vmul.f32 %v2844, %v2686
    %v2852 = vadd.f32 %v2850, %v2851
    %v2853 = vld [vmem:[%s1143] sm:$0xff]
    %v2854 = vld [vmem:[%s1143 + $0x8] sm:$0xff]
    %v2855 = vld [vmem:[%s1143 + $0x10] sm:$0xff]
    %2856 = vmatprep.subr.mxu0 %v2180
    %2857 = vmatpush1.msra.mxu0 %v2179
    %2858 = vmatprep.subr.mxu0 %v2177
    %2859 = vmatpush1.msra.mxu0 %v2176
    %2860 = vmatprep.subr.mxu0 %v2174
    %2861 = vmatpush1.msra.mxu0 %v2173
    %2862 = vmatprep.subr.mxu0 %v2171
    %2863 = vmatpush1.msra.mxu0 %v2170
    %2864 = vmatprep.subr.mxu0 %v2168
    %2865 = vmatpush1.msra.mxu0 %v2167
    %2866 = vmatprep.subr.mxu0 %v2165
    %2867 = vmatpush1.msra.mxu0 %v2164
    %2868 = vmatprep.subr.mxu0 %v2162
    %2869 = vmatpush1.msra.mxu0 %v2161
    %2870 = vmatprep.subr.mxu0 %v2159
    %2871 = vmatpush1.msra.mxu0 %v2158
    %2872 = vmatprep.subr.mxu0 %v2156
    %2873 = vmatpush1.msra.mxu0 %v2155
    %2874 = vmatprep.subr.mxu0 %v2153
    %2875 = vmatpush1.msra.mxu0 %v2152
    %2876 = vmatprep.subr.mxu0 %v2150
    %2877 = vmatpush1.msra.mxu0 %v2149
    %2878 = vmatprep.subr.mxu0 %v2147
    %2879 = vmatpush1.msra.mxu0 %v2146
    %2880 = vmatprep.subr.mxu0 %v2144
    %2881 = vmatpush1.msra.mxu0 %v2143
    %2882 = vmatprep.subr.mxu0 %v2141
    %2883 = vmatpush1.msra.mxu0 %v2140
    %2884 = vmatprep.subr.mxu0 %v2138
    %2885 = vmatpush1.msra.mxu0 %v2137
    %2886 = vmatprep.subr.mxu0 %v2135
    %2887 = vmatpush1.msra.mxu0 %v2134
    %2888 = vmatprep.subr.mxu0 0.0
    %2889 = vmatpush2.msra.mxu0 0.0
    %2890 = vmatprep.subr.mxu0 0.0
    %2891 = vmatpush2.msra.mxu0 0.0
    %2892 = vmatprep.subr.mxu0 0.0
    %2893 = vmatpush2.msra.mxu0 0.0
    %2894 = vmatprep.subr.mxu0 0.0
    %2895 = vmatpush2.msra.mxu0 0.0
    %2896 = vmatprep.subr.mxu0 0.0
    %2897 = vmatpush2.msra.mxu0 0.0
    %2898 = vmatprep.subr.mxu0 0.0
    %2899 = vmatpush2.msra.mxu0 0.0
    %2900 = vmatprep.subr.mxu0 0.0
    %2901 = vmatpush2.msra.mxu0 0.0
    %2902 = vmatprep.subr.mxu0 0.0
    %2903 = vmatpush2.msra.mxu0 0.0
    %2904 = vmatprep.subr.mxu0 0.0
    %2905 = vmatpush2.msra.mxu0 0.0
    %2906 = vmatprep.subr.mxu0 0.0
    %2907 = vmatpush2.msra.mxu0 0.0
    %2908 = vmatprep.subr.mxu0 0.0
    %2909 = vmatpush2.msra.mxu0 0.0
    %2910 = vmatprep.subr.mxu0 0.0
    %2911 = vmatpush2.msra.mxu0 0.0
    %2912 = vmatprep.subr.mxu0 0.0
    %2913 = vmatpush2.msra.mxu0 0.0
    %2914 = vmatprep.subr.mxu0 0.0
    %2915 = vmatpush2.msra.mxu0 0.0
    %2916 = vmatprep.subr.mxu0 0.0
    %2917 = vmatpush2.msra.mxu0 0.0
    %2918 = vmatprep.subr.mxu0 0.0
    %2919 = vmatpush2.msra.mxu0 0.0
    %2920 = vmatprep.mubr.f32.mxu0 0.0
    %2921 = vmatmul.mubr.f32.gmra.mxu0 %v2852
    %v2922 = vpop.f32.mrf.mxu0
    %v2923 = vadd.f32 0.0, %v2922
    %v2924 = vpop.f32.mrf.mxu0
    %v2925 = vadd.f32 0.0, %v2924
    %2926 = vdwg.mxu0
    %2927 = vmatprep.subr.mxu0 0.0
    %2928 = vmatpush1.msra.mxu0 %v2181
    %2929 = vmatprep.subr.mxu0 0.0
    %2930 = vmatpush1.msra.mxu0 %v2178
    %2931 = vmatprep.subr.mxu0 0.0
    %2932 = vmatpush1.msra.mxu0 %v2175
    %2933 = vmatprep.subr.mxu0 0.0
    %2934 = vmatpush1.msra.mxu0 %v2172
    %2935 = vmatprep.subr.mxu0 0.0
    %2936 = vmatpush1.msra.mxu0 %v2169
    %2937 = vmatprep.subr.mxu0 0.0
    %2938 = vmatpush1.msra.mxu0 %v2166
    %2939 = vmatprep.subr.mxu0 0.0
    %2940 = vmatpush1.msra.mxu0 %v2163
    %2941 = vmatprep.subr.mxu0 0.0
    %2942 = vmatpush1.msra.mxu0 %v2160
    %2943 = vmatprep.subr.mxu0 0.0
    %2944 = vmatpush1.msra.mxu0 %v2157
    %2945 = vmatprep.subr.mxu0 0.0
    %2946 = vmatpush1.msra.mxu0 %v2154
    %2947 = vmatprep.subr.mxu0 0.0
    %2948 = vmatpush1.msra.mxu0 %v2151
    %2949 = vmatprep.subr.mxu0 0.0
    %2950 = vmatpush1.msra.mxu0 %v2148
    %2951 = vmatprep.subr.mxu0 0.0
    %2952 = vmatpush1.msra.mxu0 %v2145
    %2953 = vmatprep.subr.mxu0 0.0
    %2954 = vmatpush1.msra.mxu0 %v2142
    %2955 = vmatprep.subr.mxu0 0.0
    %2956 = vmatpush1.msra.mxu0 %v2139
    %2957 = vmatprep.subr.mxu0 0.0
    %2958 = vmatpush1.msra.mxu0 %v2136
    %2959 = vmatprep.subr.mxu0 0.0
    %2960 = vmatpush2.msra.mxu0 0.0
    %2961 = vmatprep.subr.mxu0 0.0
    %2962 = vmatpush2.msra.mxu0 0.0
    %2963 = vmatprep.subr.mxu0 0.0
    %2964 = vmatpush2.msra.mxu0 0.0
    %2965 = vmatprep.subr.mxu0 0.0
    %2966 = vmatpush2.msra.mxu0 0.0
    %2967 = vmatprep.subr.mxu0 0.0
    %2968 = vmatpush2.msra.mxu0 0.0
    %2969 = vmatprep.subr.mxu0 0.0
    %2970 = vmatpush2.msra.mxu0 0.0
    %2971 = vmatprep.subr.mxu0 0.0
    %2972 = vmatpush2.msra.mxu0 0.0
    %2973 = vmatprep.subr.mxu0 0.0
    %2974 = vmatpush2.msra.mxu0 0.0
    %2975 = vmatprep.subr.mxu0 0.0
    %2976 = vmatpush2.msra.mxu0 0.0
    %2977 = vmatprep.subr.mxu0 0.0
    %2978 = vmatpush2.msra.mxu0 0.0
    %2979 = vmatprep.subr.mxu0 0.0
    %2980 = vmatpush2.msra.mxu0 0.0
    %2981 = vmatprep.subr.mxu0 0.0
    %2982 = vmatpush2.msra.mxu0 0.0
    %2983 = vmatprep.subr.mxu0 0.0
    %2984 = vmatpush2.msra.mxu0 0.0
    %2985 = vmatprep.subr.mxu0 0.0
    %2986 = vmatpush2.msra.mxu0 0.0
    %2987 = vmatprep.subr.mxu0 0.0
    %2988 = vmatpush2.msra.mxu0 0.0
    %2989 = vmatprep.subr.mxu0 0.0
    %2990 = vmatpush2.msra.mxu0 0.0
    %2991 = vmatprep.mubr.f32.mxu0 0.0
    %2992 = vmatmul.mubr.f32.gmra.mxu0 %v2852
    %v2993 = vpop.f32.mrf.mxu0
    %v2994 = vadd.f32 0.0, %v2993
    %v2995 = vpop.f32.mrf.mxu0
    %2996 = vdwg.mxu0
    %v2997 = vadd.f32 %v2853, %v2923
    %v2998 = vxor.u32 %v2997, 2147483648
    %v2999 = vmul.f32 %v2998, 1.442695
    %v3000 = vpow.pop %v2999
    %v3001 = vadd.f32 %v3000, 1.0
    %v3002 = vrcp.pop %v3001
    %v3003 = vmul.f32 1.0, %v3002
    %v3004 = vadd.f32 %v2854, %v2925
    %v3005 = vxor.u32 %v3004, 2147483648
    %v3006 = vmul.f32 %v3005, 1.442695
    %v3007 = vpow.pop %v3006
    %v3008 = vadd.f32 %v3007, 1.0
    %v3009 = vrcp.pop %v3008
    %v3010 = vmul.f32 1.0, %v3009
    %v3011 = vadd.f32 %v2994, %v2187
    %v3012 = vmul.f32 %v3003, %v3011
    %v3013 = vadd.f32 %v2855, %v3012
    %v3014 = vtanh.pop %v3013
    %v3015 = vsub.f32 1.0, %v3010
    %v3016 = vmul.f32 %v3015, %v3014
    %v3017 = vmul.f32 %v3010, %v2852
    %v3018 = vadd.f32 %v3016, %v3017
    %v3019 = vld [vmem:[%s1312] sm:$0xff]
    %v3020 = vld [vmem:[%s1312 + $0x8] sm:$0xff]
    %v3021 = vld [vmem:[%s1312 + $0x10] sm:$0xff]
    %3022 = vmatprep.subr.mxu0 %v2180
    %3023 = vmatpush1.msra.mxu0 %v2179
    %3024 = vmatprep.subr.mxu0 %v2177
    %3025 = vmatpush1.msra.mxu0 %v2176
    %3026 = vmatprep.subr.mxu0 %v2174
    %3027 = vmatpush1.msra.mxu0 %v2173
    %3028 = vmatprep.subr.mxu0 %v2171
    %3029 = vmatpush1.msra.mxu0 %v2170
    %3030 = vmatprep.subr.mxu0 %v2168
    %3031 = vmatpush1.msra.mxu0 %v2167
    %3032 = vmatprep.subr.mxu0 %v2165
    %3033 = vmatpush1.msra.mxu0 %v2164
    %3034 = vmatprep.subr.mxu0 %v2162
    %3035 = vmatpush1.msra.mxu0 %v2161
    %3036 = vmatprep.subr.mxu0 %v2159
    %3037 = vmatpush1.msra.mxu0 %v2158
    %3038 = vmatprep.subr.mxu0 %v2156
    %3039 = vmatpush1.msra.mxu0 %v2155
    %3040 = vmatprep.subr.mxu0 %v2153
    %3041 = vmatpush1.msra.mxu0 %v2152
    %3042 = vmatprep.subr.mxu0 %v2150
    %3043 = vmatpush1.msra.mxu0 %v2149
    %3044 = vmatprep.subr.mxu0 %v2147
    %3045 = vmatpush1.msra.mxu0 %v2146
    %3046 = vmatprep.subr.mxu0 %v2144
    %3047 = vmatpush1.msra.mxu0 %v2143
    %3048 = vmatprep.subr.mxu0 %v2141
    %3049 = vmatpush1.msra.mxu0 %v2140
    %3050 = vmatprep.subr.mxu0 %v2138
    %3051 = vmatpush1.msra.mxu0 %v2137
    %3052 = vmatprep.subr.mxu0 %v2135
    %3053 = vmatpush1.msra.mxu0 %v2134
    %3054 = vmatprep.subr.mxu0 0.0
    %3055 = vmatpush2.msra.mxu0 0.0
    %3056 = vmatprep.subr.mxu0 0.0
    %3057 = vmatpush2.msra.mxu0 0.0
    %3058 = vmatprep.subr.mxu0 0.0
    %3059 = vmatpush2.msra.mxu0 0.0
    %3060 = vmatprep.subr.mxu0 0.0
    %3061 = vmatpush2.msra.mxu0 0.0
    %3062 = vmatprep.subr.mxu0 0.0
    %3063 = vmatpush2.msra.mxu0 0.0
    %3064 = vmatprep.subr.mxu0 0.0
    %3065 = vmatpush2.msra.mxu0 0.0
    %3066 = vmatprep.subr.mxu0 0.0
    %3067 = vmatpush2.msra.mxu0 0.0
    %3068 = vmatprep.subr.mxu0 0.0
    %3069 = vmatpush2.msra.mxu0 0.0
    %3070 = vmatprep.subr.mxu0 0.0
    %3071 = vmatpush2.msra.mxu0 0.0
    %3072 = vmatprep.subr.mxu0 0.0
    %3073 = vmatpush2.msra.mxu0 0.0
    %3074 = vmatprep.subr.mxu0 0.0
    %3075 = vmatpush2.msra.mxu0 0.0
    %3076 = vmatprep.subr.mxu0 0.0
    %3077 = vmatpush2.msra.mxu0 0.0
    %3078 = vmatprep.subr.mxu0 0.0
    %3079 = vmatpush2.msra.mxu0 0.0
    %3080 = vmatprep.subr.mxu0 0.0
    %3081 = vmatpush2.msra.mxu0 0.0
    %3082 = vmatprep.subr.mxu0 0.0
    %3083 = vmatpush2.msra.mxu0 0.0
    %3084 = vmatprep.subr.mxu0 0.0
    %3085 = vmatpush2.msra.mxu0 0.0
    %3086 = vmatprep.mubr.f32.mxu0 0.0
    %3087 = vmatmul.mubr.f32.gmra.mxu0 %v3018
    %v3088 = vpop.f32.mrf.mxu0
    %v3089 = vadd.f32 0.0, %v3088
    %v3090 = vpop.f32.mrf.mxu0
    %v3091 = vadd.f32 0.0, %v3090
    %3092 = vdwg.mxu0
    %3093 = vmatprep.subr.mxu0 0.0
    %3094 = vmatpush1.msra.mxu0 %v2181
    %3095 = vmatprep.subr.mxu0 0.0
    %3096 = vmatpush1.msra.mxu0 %v2178
    %3097 = vmatprep.subr.mxu0 0.0
    %3098 = vmatpush1.msra.mxu0 %v2175
    %3099 = vmatprep.subr.mxu0 0.0
    %3100 = vmatpush1.msra.mxu0 %v2172
    %3101 = vmatprep.subr.mxu0 0.0
    %3102 = vmatpush1.msra.mxu0 %v2169
    %3103 = vmatprep.subr.mxu0 0.0
    %3104 = vmatpush1.msra.mxu0 %v2166
    %3105 = vmatprep.subr.mxu0 0.0
    %3106 = vmatpush1.msra.mxu0 %v2163
    %3107 = vmatprep.subr.mxu0 0.0
    %3108 = vmatpush1.msra.mxu0 %v2160
    %3109 = vmatprep.subr.mxu0 0.0
    %3110 = vmatpush1.msra.mxu0 %v2157
    %3111 = vmatprep.subr.mxu0 0.0
    %3112 = vmatpush1.msra.mxu0 %v2154
    %3113 = vmatprep.subr.mxu0 0.0
    %3114 = vmatpush1.msra.mxu0 %v2151
    %3115 = vmatprep.subr.mxu0 0.0
    %3116 = vmatpush1.msra.mxu0 %v2148
    %3117 = vmatprep.subr.mxu0 0.0
    %3118 = vmatpush1.msra.mxu0 %v2145
    %3119 = vmatprep.subr.mxu0 0.0
    %3120 = vmatpush1.msra.mxu0 %v2142
    %3121 = vmatprep.subr.mxu0 0.0
    %3122 = vmatpush1.msra.mxu0 %v2139
    %3123 = vmatprep.subr.mxu0 0.0
    %3124 = vmatpush1.msra.mxu0 %v2136
    %3125 = vmatprep.subr.mxu0 0.0
    %3126 = vmatpush2.msra.mxu0 0.0
    %3127 = vmatprep.subr.mxu0 0.0
    %3128 = vmatpush2.msra.mxu0 0.0
    %3129 = vmatprep.subr.mxu0 0.0
    %3130 = vmatpush2.msra.mxu0 0.0
    %3131 = vmatprep.subr.mxu0 0.0
    %3132 = vmatpush2.msra.mxu0 0.0
    %3133 = vmatprep.subr.mxu0 0.0
    %3134 = vmatpush2.msra.mxu0 0.0
    %3135 = vmatprep.subr.mxu0 0.0
    %3136 = vmatpush2.msra.mxu0 0.0
    %3137 = vmatprep.subr.mxu0 0.0
    %3138 = vmatpush2.msra.mxu0 0.0
    %3139 = vmatprep.subr.mxu0 0.0
    %3140 = vmatpush2.msra.mxu0 0.0
    %3141 = vmatprep.subr.mxu0 0.0
    %3142 = vmatpush2.msra.mxu0 0.0
    %3143 = vmatprep.subr.mxu0 0.0
    %3144 = vmatpush2.msra.mxu0 0.0
    %3145 = vmatprep.subr.mxu0 0.0
    %3146 = vmatpush2.msra.mxu0 0.0
    %3147 = vmatprep.subr.mxu0 0.0
    %3148 = vmatpush2.msra.mxu0 0.0
    %3149 = vmatprep.subr.mxu0 0.0
    %3150 = vmatpush2.msra.mxu0 0.0
    %3151 = vmatprep.subr.mxu0 0.0
    %3152 = vmatpush2.msra.mxu0 0.0
    %3153 = vmatprep.subr.mxu0 0.0
    %3154 = vmatpush2.msra.mxu0 0.0
    %3155 = vmatprep.subr.mxu0 0.0
    %3156 = vmatpush2.msra.mxu0 0.0
    %3157 = vmatprep.mubr.f32.mxu0 0.0
    %3158 = vmatmul.mubr.f32.gmra.mxu0 %v3018
    %v3159 = vpop.f32.mrf.mxu0
    %v3160 = vadd.f32 0.0, %v3159
    %v3161 = vpop.f32.mrf.mxu0
    %3162 = vdwg.mxu0
    %v3163 = vadd.f32 %v3019, %v3089
    %v3164 = vxor.u32 %v3163, 2147483648
    %v3165 = vmul.f32 %v3164, 1.442695
    %v3166 = vpow.pop %v3165
    %v3167 = vadd.f32 %v3166, 1.0
    %v3168 = vrcp.pop %v3167
    %v3169 = vmul.f32 1.0, %v3168
    %v3170 = vadd.f32 %v3020, %v3091
    %v3171 = vxor.u32 %v3170, 2147483648
    %v3172 = vmul.f32 %v3171, 1.442695
    %v3173 = vpow.pop %v3172
    %v3174 = vadd.f32 %v3173, 1.0
    %v3175 = vrcp.pop %v3174
    %v3176 = vmul.f32 1.0, %v3175
    %v3177 = vadd.f32 %v3160, %v2187
    %v3178 = vmul.f32 %v3169, %v3177
    %v3179 = vadd.f32 %v3021, %v3178
    %v3180 = vtanh.pop %v3179
    %v3181 = vsub.f32 1.0, %v3176
    %v3182 = vmul.f32 %v3181, %v3180
    %v3183 = vmul.f32 %v3176, %v3018
    %v3184 = vadd.f32 %v3182, %v3183
    %v3185 = vld [vmem:[%s1481] sm:$0xff]
    %v3186 = vld [vmem:[%s1481 + $0x8] sm:$0xff]
    %v3187 = vld [vmem:[%s1481 + $0x10] sm:$0xff]
    %3188 = vmatprep.subr.mxu0 %v2180
    %3189 = vmatpush1.msra.mxu0 %v2179
    %3190 = vmatprep.subr.mxu0 %v2177
    %3191 = vmatpush1.msra.mxu0 %v2176
    %3192 = vmatprep.subr.mxu0 %v2174
    %3193 = vmatpush1.msra.mxu0 %v2173
    %3194 = vmatprep.subr.mxu0 %v2171
    %3195 = vmatpush1.msra.mxu0 %v2170
    %3196 = vmatprep.subr.mxu0 %v2168
    %3197 = vmatpush1.msra.mxu0 %v2167
    %3198 = vmatprep.subr.mxu0 %v2165
    %3199 = vmatpush1.msra.mxu0 %v2164
    %3200 = vmatprep.subr.mxu0 %v2162
    %3201 = vmatpush1.msra.mxu0 %v2161
    %3202 = vmatprep.subr.mxu0 %v2159
    %3203 = vmatpush1.msra.mxu0 %v2158
    %3204 = vmatprep.subr.mxu0 %v2156
    %3205 = vmatpush1.msra.mxu0 %v2155
    %3206 = vmatprep.subr.mxu0 %v2153
    %3207 = vmatpush1.msra.mxu0 %v2152
    %3208 = vmatprep.subr.mxu0 %v2150
    %3209 = vmatpush1.msra.mxu0 %v2149
    %3210 = vmatprep.subr.mxu0 %v2147
    %3211 = vmatpush1.msra.mxu0 %v2146
    %3212 = vmatprep.subr.mxu0 %v2144
    %3213 = vmatpush1.msra.mxu0 %v2143
    %3214 = vmatprep.subr.mxu0 %v2141
    %3215 = vmatpush1.msra.mxu0 %v2140
    %3216 = vmatprep.subr.mxu0 %v2138
    %3217 = vmatpush1.msra.mxu0 %v2137
    %3218 = vmatprep.subr.mxu0 %v2135
    %3219 = vmatpush1.msra.mxu0 %v2134
    %3220 = vmatprep.subr.mxu0 0.0
    %3221 = vmatpush2.msra.mxu0 0.0
    %3222 = vmatprep.subr.mxu0 0.0
    %3223 = vmatpush2.msra.mxu0 0.0
    %3224 = vmatprep.subr.mxu0 0.0
    %3225 = vmatpush2.msra.mxu0 0.0
    %3226 = vmatprep.subr.mxu0 0.0
    %3227 = vmatpush2.msra.mxu0 0.0
    %3228 = vmatprep.subr.mxu0 0.0
    %3229 = vmatpush2.msra.mxu0 0.0
    %3230 = vmatprep.subr.mxu0 0.0
    %3231 = vmatpush2.msra.mxu0 0.0
    %3232 = vmatprep.subr.mxu0 0.0
    %3233 = vmatpush2.msra.mxu0 0.0
    %3234 = vmatprep.subr.mxu0 0.0
    %3235 = vmatpush2.msra.mxu0 0.0
    %3236 = vmatprep.subr.mxu0 0.0
    %3237 = vmatpush2.msra.mxu0 0.0
    %3238 = vmatprep.subr.mxu0 0.0
    %3239 = vmatpush2.msra.mxu0 0.0
    %3240 = vmatprep.subr.mxu0 0.0
    %3241 = vmatpush2.msra.mxu0 0.0
    %3242 = vmatprep.subr.mxu0 0.0
    %3243 = vmatpush2.msra.mxu0 0.0
    %3244 = vmatprep.subr.mxu0 0.0
    %3245 = vmatpush2.msra.mxu0 0.0
    %3246 = vmatprep.subr.mxu0 0.0
    %3247 = vmatpush2.msra.mxu0 0.0
    %3248 = vmatprep.subr.mxu0 0.0
    %3249 = vmatpush2.msra.mxu0 0.0
    %3250 = vmatprep.subr.mxu0 0.0
    %3251 = vmatpush2.msra.mxu0 0.0
    %3252 = vmatprep.mubr.f32.mxu0 0.0
    %3253 = vmatmul.mubr.f32.gmra.mxu0 %v3184
    %v3254 = vpop.f32.mrf.mxu0
    %v3255 = vadd.f32 0.0, %v3254
    %v3256 = vpop.f32.mrf.mxu0
    %v3257 = vadd.f32 0.0, %v3256
    %3258 = vdwg.mxu0
    %3259 = vmatprep.subr.mxu0 0.0
    %3260 = vmatpush1.msra.mxu0 %v2181
    %3261 = vmatprep.subr.mxu0 0.0
    %3262 = vmatpush1.msra.mxu0 %v2178
    %3263 = vmatprep.subr.mxu0 0.0
    %3264 = vmatpush1.msra.mxu0 %v2175
    %3265 = vmatprep.subr.mxu0 0.0
    %3266 = vmatpush1.msra.mxu0 %v2172
    %3267 = vmatprep.subr.mxu0 0.0
    %3268 = vmatpush1.msra.mxu0 %v2169
    %3269 = vmatprep.subr.mxu0 0.0
    %3270 = vmatpush1.msra.mxu0 %v2166
    %3271 = vmatprep.subr.mxu0 0.0
    %3272 = vmatpush1.msra.mxu0 %v2163
    %3273 = vmatprep.subr.mxu0 0.0
    %3274 = vmatpush1.msra.mxu0 %v2160
    %3275 = vmatprep.subr.mxu0 0.0
    %3276 = vmatpush1.msra.mxu0 %v2157
    %3277 = vmatprep.subr.mxu0 0.0
    %3278 = vmatpush1.msra.mxu0 %v2154
    %3279 = vmatprep.subr.mxu0 0.0
    %3280 = vmatpush1.msra.mxu0 %v2151
    %3281 = vmatprep.subr.mxu0 0.0
    %3282 = vmatpush1.msra.mxu0 %v2148
    %3283 = vmatprep.subr.mxu0 0.0
    %3284 = vmatpush1.msra.mxu0 %v2145
    %3285 = vmatprep.subr.mxu0 0.0
    %3286 = vmatpush1.msra.mxu0 %v2142
    %3287 = vmatprep.subr.mxu0 0.0
    %3288 = vmatpush1.msra.mxu0 %v2139
    %3289 = vmatprep.subr.mxu0 0.0
    %3290 = vmatpush1.msra.mxu0 %v2136
    %3291 = vmatprep.subr.mxu0 0.0
    %3292 = vmatpush2.msra.mxu0 0.0
    %3293 = vmatprep.subr.mxu0 0.0
    %3294 = vmatpush2.msra.mxu0 0.0
    %3295 = vmatprep.subr.mxu0 0.0
    %3296 = vmatpush2.msra.mxu0 0.0
    %3297 = vmatprep.subr.mxu0 0.0
    %3298 = vmatpush2.msra.mxu0 0.0
    %3299 = vmatprep.subr.mxu0 0.0
    %3300 = vmatpush2.msra.mxu0 0.0
    %3301 = vmatprep.subr.mxu0 0.0
    %3302 = vmatpush2.msra.mxu0 0.0
    %3303 = vmatprep.subr.mxu0 0.0
    %3304 = vmatpush2.msra.mxu0 0.0
    %3305 = vmatprep.subr.mxu0 0.0
    %3306 = vmatpush2.msra.mxu0 0.0
    %3307 = vmatprep.subr.mxu0 0.0
    %3308 = vmatpush2.msra.mxu0 0.0
    %3309 = vmatprep.subr.mxu0 0.0
    %3310 = vmatpush2.msra.mxu0 0.0
    %3311 = vmatprep.subr.mxu0 0.0
    %3312 = vmatpush2.msra.mxu0 0.0
    %3313 = vmatprep.subr.mxu0 0.0
    %3314 = vmatpush2.msra.mxu0 0.0
    %3315 = vmatprep.subr.mxu0 0.0
    %3316 = vmatpush2.msra.mxu0 0.0
    %3317 = vmatprep.subr.mxu0 0.0
    %3318 = vmatpush2.msra.mxu0 0.0
    %3319 = vmatprep.subr.mxu0 0.0
    %3320 = vmatpush2.msra.mxu0 0.0
    %3321 = vmatprep.subr.mxu0 0.0
    %3322 = vmatpush2.msra.mxu0 0.0
    %3323 = vmatprep.mubr.f32.mxu0 0.0
    %3324 = vmatmul.mubr.f32.gmra.mxu0 %v3184
    %v3325 = vpop.f32.mrf.mxu0
    %v3326 = vadd.f32 0.0, %v3325
    %v3327 = vpop.f32.mrf.mxu0
    %3328 = vdwg.mxu0
    %v3329 = vadd.f32 %v3185, %v3255
    %v3330 = vxor.u32 %v3329, 2147483648
    %v3331 = vmul.f32 %v3330, 1.442695
    %v3332 = vpow.pop %v3331
    %v3333 = vadd.f32 %v3332, 1.0
    %v3334 = vrcp.pop %v3333
    %v3335 = vmul.f32 1.0, %v3334
    %v3336 = vadd.f32 %v3186, %v3257
    %v3337 = vxor.u32 %v3336, 2147483648
    %v3338 = vmul.f32 %v3337, 1.442695
    %v3339 = vpow.pop %v3338
    %v3340 = vadd.f32 %v3339, 1.0
    %v3341 = vrcp.pop %v3340
    %v3342 = vmul.f32 1.0, %v3341
    %v3343 = vadd.f32 %v3326, %v2187
    %v3344 = vmul.f32 %v3335, %v3343
    %v3345 = vadd.f32 %v3187, %v3344
    %v3346 = vtanh.pop %v3345
    %v3347 = vsub.f32 1.0, %v3342
    %v3348 = vmul.f32 %v3347, %v3346
    %v3349 = vmul.f32 %v3342, %v3184
    %v3350 = vadd.f32 %v3348, %v3349
    %v3351 = vld [vmem:[%s1650] sm:$0xff]
    %v3352 = vld [vmem:[%s1650 + $0x8] sm:$0xff]
    %v3353 = vld [vmem:[%s1650 + $0x10] sm:$0xff]
    %3354 = vmatprep.subr.mxu0 %v2180
    %3355 = vmatpush1.msra.mxu0 %v2179
    %3356 = vmatprep.subr.mxu0 %v2177
    %3357 = vmatpush1.msra.mxu0 %v2176
    %3358 = vmatprep.subr.mxu0 %v2174
    %3359 = vmatpush1.msra.mxu0 %v2173
    %3360 = vmatprep.subr.mxu0 %v2171
    %3361 = vmatpush1.msra.mxu0 %v2170
    %3362 = vmatprep.subr.mxu0 %v2168
    %3363 = vmatpush1.msra.mxu0 %v2167
    %3364 = vmatprep.subr.mxu0 %v2165
    %3365 = vmatpush1.msra.mxu0 %v2164
    %3366 = vmatprep.subr.mxu0 %v2162
    %3367 = vmatpush1.msra.mxu0 %v2161
    %3368 = vmatprep.subr.mxu0 %v2159
    %3369 = vmatpush1.msra.mxu0 %v2158
    %3370 = vmatprep.subr.mxu0 %v2156
    %3371 = vmatpush1.msra.mxu0 %v2155
    %3372 = vmatprep.subr.mxu0 %v2153
    %3373 = vmatpush1.msra.mxu0 %v2152
    %3374 = vmatprep.subr.mxu0 %v2150
    %3375 = vmatpush1.msra.mxu0 %v2149
    %3376 = vmatprep.subr.mxu0 %v2147
    %3377 = vmatpush1.msra.mxu0 %v2146
    %3378 = vmatprep.subr.mxu0 %v2144
    %3379 = vmatpush1.msra.mxu0 %v2143
    %3380 = vmatprep.subr.mxu0 %v2141
    %3381 = vmatpush1.msra.mxu0 %v2140
    %3382 = vmatprep.subr.mxu0 %v2138
    %3383 = vmatpush1.msra.mxu0 %v2137
    %3384 = vmatprep.subr.mxu0 %v2135
    %3385 = vmatpush1.msra.mxu0 %v2134
    %3386 = vmatprep.subr.mxu0 0.0
    %3387 = vmatpush2.msra.mxu0 0.0
    %3388 = vmatprep.subr.mxu0 0.0
    %3389 = vmatpush2.msra.mxu0 0.0
    %3390 = vmatprep.subr.mxu0 0.0
    %3391 = vmatpush2.msra.mxu0 0.0
    %3392 = vmatprep.subr.mxu0 0.0
    %3393 = vmatpush2.msra.mxu0 0.0
    %3394 = vmatprep.subr.mxu0 0.0
    %3395 = vmatpush2.msra.mxu0 0.0
    %3396 = vmatprep.subr.mxu0 0.0
    %3397 = vmatpush2.msra.mxu0 0.0
    %3398 = vmatprep.subr.mxu0 0.0
    %3399 = vmatpush2.msra.mxu0 0.0
    %3400 = vmatprep.subr.mxu0 0.0
    %3401 = vmatpush2.msra.mxu0 0.0
    %3402 = vmatprep.subr.mxu0 0.0
    %3403 = vmatpush2.msra.mxu0 0.0
    %3404 = vmatprep.subr.mxu0 0.0
    %3405 = vmatpush2.msra.mxu0 0.0
    %3406 = vmatprep.subr.mxu0 0.0
    %3407 = vmatpush2.msra.mxu0 0.0
    %3408 = vmatprep.subr.mxu0 0.0
    %3409 = vmatpush2.msra.mxu0 0.0
    %3410 = vmatprep.subr.mxu0 0.0
    %3411 = vmatpush2.msra.mxu0 0.0
    %3412 = vmatprep.subr.mxu0 0.0
    %3413 = vmatpush2.msra.mxu0 0.0
    %3414 = vmatprep.subr.mxu0 0.0
    %3415 = vmatpush2.msra.mxu0 0.0
    %3416 = vmatprep.subr.mxu0 0.0
    %3417 = vmatpush2.msra.mxu0 0.0
    %3418 = vmatprep.mubr.f32.mxu0 0.0
    %3419 = vmatmul.mubr.f32.gmra.mxu0 %v3350
    %v3420 = vpop.f32.mrf.mxu0
    %v3421 = vadd.f32 0.0, %v3420
    %v3422 = vpop.f32.mrf.mxu0
    %v3423 = vadd.f32 0.0, %v3422
    %3424 = vdwg.mxu0
    %3425 = vmatprep.subr.mxu0 0.0
    %3426 = vmatpush1.msra.mxu0 %v2181
    %3427 = vmatprep.subr.mxu0 0.0
    %3428 = vmatpush1.msra.mxu0 %v2178
    %3429 = vmatprep.subr.mxu0 0.0
    %3430 = vmatpush1.msra.mxu0 %v2175
    %3431 = vmatprep.subr.mxu0 0.0
    %3432 = vmatpush1.msra.mxu0 %v2172
    %3433 = vmatprep.subr.mxu0 0.0
    %3434 = vmatpush1.msra.mxu0 %v2169
    %3435 = vmatprep.subr.mxu0 0.0
    %3436 = vmatpush1.msra.mxu0 %v2166
    %3437 = vmatprep.subr.mxu0 0.0
    %3438 = vmatpush1.msra.mxu0 %v2163
    %3439 = vmatprep.subr.mxu0 0.0
    %3440 = vmatpush1.msra.mxu0 %v2160
    %3441 = vmatprep.subr.mxu0 0.0
    %3442 = vmatpush1.msra.mxu0 %v2157
    %3443 = vmatprep.subr.mxu0 0.0
    %3444 = vmatpush1.msra.mxu0 %v2154
    %3445 = vmatprep.subr.mxu0 0.0
    %3446 = vmatpush1.msra.mxu0 %v2151
    %3447 = vmatprep.subr.mxu0 0.0
    %3448 = vmatpush1.msra.mxu0 %v2148
    %3449 = vmatprep.subr.mxu0 0.0
    %3450 = vmatpush1.msra.mxu0 %v2145
    %3451 = vmatprep.subr.mxu0 0.0
    %3452 = vmatpush1.msra.mxu0 %v2142
    %3453 = vmatprep.subr.mxu0 0.0
    %3454 = vmatpush1.msra.mxu0 %v2139
    %3455 = vmatprep.subr.mxu0 0.0
    %3456 = vmatpush1.msra.mxu0 %v2136
    %3457 = vmatprep.subr.mxu0 0.0
    %3458 = vmatpush2.msra.mxu0 0.0
    %3459 = vmatprep.subr.mxu0 0.0
    %3460 = vmatpush2.msra.mxu0 0.0
    %3461 = vmatprep.subr.mxu0 0.0
    %3462 = vmatpush2.msra.mxu0 0.0
    %3463 = vmatprep.subr.mxu0 0.0
    %3464 = vmatpush2.msra.mxu0 0.0
    %3465 = vmatprep.subr.mxu0 0.0
    %3466 = vmatpush2.msra.mxu0 0.0
    %3467 = vmatprep.subr.mxu0 0.0
    %3468 = vmatpush2.msra.mxu0 0.0
    %3469 = vmatprep.subr.mxu0 0.0
    %3470 = vmatpush2.msra.mxu0 0.0
    %3471 = vmatprep.subr.mxu0 0.0
    %3472 = vmatpush2.msra.mxu0 0.0
    %3473 = vmatprep.subr.mxu0 0.0
    %3474 = vmatpush2.msra.mxu0 0.0
    %3475 = vmatprep.subr.mxu0 0.0
    %3476 = vmatpush2.msra.mxu0 0.0
    %3477 = vmatprep.subr.mxu0 0.0
    %3478 = vmatpush2.msra.mxu0 0.0
    %3479 = vmatprep.subr.mxu0 0.0
    %3480 = vmatpush2.msra.mxu0 0.0
    %3481 = vmatprep.subr.mxu0 0.0
    %3482 = vmatpush2.msra.mxu0 0.0
    %3483 = vmatprep.subr.mxu0 0.0
    %3484 = vmatpush2.msra.mxu0 0.0
    %3485 = vmatprep.subr.mxu0 0.0
    %3486 = vmatpush2.msra.mxu0 0.0
    %3487 = vmatprep.subr.mxu0 0.0
    %3488 = vmatpush2.msra.mxu0 0.0
    %3489 = vmatprep.mubr.f32.mxu0 0.0
    %3490 = vmatmul.mubr.f32.gmra.mxu0 %v3350
    %v3491 = vpop.f32.mrf.mxu0
    %v3492 = vadd.f32 0.0, %v3491
    %v3493 = vpop.f32.mrf.mxu0
    %3494 = vdwg.mxu0
    %v3495 = vadd.f32 %v3351, %v3421
    %v3496 = vxor.u32 %v3495, 2147483648
    %v3497 = vmul.f32 %v3496, 1.442695
    %v3498 = vpow.pop %v3497
    %v3499 = vadd.f32 %v3498, 1.0
    %v3500 = vrcp.pop %v3499
    %v3501 = vmul.f32 1.0, %v3500
    %v3502 = vadd.f32 %v3352, %v3423
    %v3503 = vxor.u32 %v3502, 2147483648
    %v3504 = vmul.f32 %v3503, 1.442695
    %v3505 = vpow.pop %v3504
    %v3506 = vadd.f32 %v3505, 1.0
    %v3507 = vrcp.pop %v3506
    %v3508 = vmul.f32 1.0, %v3507
    %v3509 = vadd.f32 %v3492, %v2187
    %v3510 = vmul.f32 %v3501, %v3509
    %v3511 = vadd.f32 %v3353, %v3510
    %v3512 = vtanh.pop %v3511
    %v3513 = vsub.f32 1.0, %v3508
    %v3514 = vmul.f32 %v3513, %v3512
    %v3515 = vmul.f32 %v3508, %v3350
    %v3516 = vadd.f32 %v3514, %v3515
    %v3517 = vld [vmem:[#allocation13] sm:$0xff]
    %v3518 = vld [vmem:[#allocation13 + $0x8] sm:$0xff]
    %v3519 = vld [vmem:[#allocation13 + $0x10] sm:$0xff]
    %v3520 = vld [vmem:[#allocation13 + $0x18] sm:$0xff]
    %v3521 = vld [vmem:[#allocation13 + $0x20] sm:$0xff]
    %v3522 = vld [vmem:[#allocation13 + $0x28] sm:$0xff]
    %v3523 = vld [vmem:[#allocation13 + $0x30] sm:$0xff]
    %v3524 = vld [vmem:[#allocation13 + $0x38] sm:$0xff]
    %v3525 = vld [vmem:[#allocation13 + $0x40] sm:$0xff]
    %v3526 = vld [vmem:[#allocation13 + $0x48] sm:$0xff]
    %v3527 = vld [vmem:[#allocation13 + $0x50] sm:$0xff]
    %v3528 = vld [vmem:[#allocation13 + $0x58] sm:$0xff]
    %v3529 = vld [vmem:[#allocation13 + $0x60] sm:$0xff]
    %v3530 = vld [vmem:[#allocation13 + $0x68] sm:$0xff]
    %v3531 = vld [vmem:[#allocation13 + $0x70] sm:$0xff]
    %v3532 = vld [vmem:[#allocation13 + $0x78] sm:$0xff]
    %v3533 = vld [vmem:[%s10] sm:$0x1]
    %v3535 = vlaneseq
    %v3536 = vshrl.u32 %v3535, 7
    %v3537 = vsub.s32 0, %v3536
    %v3538 = vrot.slane %v3533, %v3537
    %3540 = vmatprep.subr.mxu0 0.0
    %3541 = vmatpush1.msra.mxu0 %v3532
    %3542 = vmatprep.subr.mxu0 0.0
    %3543 = vmatpush1.msra.mxu0 %v3531
    %3544 = vmatprep.subr.mxu0 0.0
    %3545 = vmatpush1.msra.mxu0 %v3530
    %3546 = vmatprep.subr.mxu0 0.0
    %3547 = vmatpush1.msra.mxu0 %v3529
    %3548 = vmatprep.subr.mxu0 0.0
    %3549 = vmatpush1.msra.mxu0 %v3528
    %3550 = vmatprep.subr.mxu0 0.0
    %3551 = vmatpush1.msra.mxu0 %v3527
    %3552 = vmatprep.subr.mxu0 0.0
    %3553 = vmatpush1.msra.mxu0 %v3526
    %3554 = vmatprep.subr.mxu0 0.0
    %3555 = vmatpush1.msra.mxu0 %v3525
    %3556 = vmatprep.subr.mxu0 0.0
    %3557 = vmatpush1.msra.mxu0 %v3524
    %3558 = vmatprep.subr.mxu0 0.0
    %3559 = vmatpush1.msra.mxu0 %v3523
    %3560 = vmatprep.subr.mxu0 0.0
    %3561 = vmatpush1.msra.mxu0 %v3522
    %3562 = vmatprep.subr.mxu0 0.0
    %3563 = vmatpush1.msra.mxu0 %v3521
    %3564 = vmatprep.subr.mxu0 0.0
    %3565 = vmatpush1.msra.mxu0 %v3520
    %3566 = vmatprep.subr.mxu0 0.0
    %3567 = vmatpush1.msra.mxu0 %v3519
    %3568 = vmatprep.subr.mxu0 0.0
    %3569 = vmatpush1.msra.mxu0 %v3518
    %3570 = vmatprep.subr.mxu0 0.0
    %3571 = vmatpush1.msra.mxu0 %v3517
    %3572 = vmatprep.subr.mxu0 0.0
    %3573 = vmatpush2.msra.mxu0 0.0
    %3574 = vmatprep.subr.mxu0 0.0
    %3575 = vmatpush2.msra.mxu0 0.0
    %3576 = vmatprep.subr.mxu0 0.0
    %3577 = vmatpush2.msra.mxu0 0.0
    %3578 = vmatprep.subr.mxu0 0.0
    %3579 = vmatpush2.msra.mxu0 0.0
    %3580 = vmatprep.subr.mxu0 0.0
    %3581 = vmatpush2.msra.mxu0 0.0
    %3582 = vmatprep.subr.mxu0 0.0
    %3583 = vmatpush2.msra.mxu0 0.0
    %3584 = vmatprep.subr.mxu0 0.0
    %3585 = vmatpush2.msra.mxu0 0.0
    %3586 = vmatprep.subr.mxu0 0.0
    %3587 = vmatpush2.msra.mxu0 0.0
    %3588 = vmatprep.subr.mxu0 0.0
    %3589 = vmatpush2.msra.mxu0 0.0
    %3590 = vmatprep.subr.mxu0 0.0
    %3591 = vmatpush2.msra.mxu0 0.0
    %3592 = vmatprep.subr.mxu0 0.0
    %3593 = vmatpush2.msra.mxu0 0.0
    %3594 = vmatprep.subr.mxu0 0.0
    %3595 = vmatpush2.msra.mxu0 0.0
    %3596 = vmatprep.subr.mxu0 0.0
    %3597 = vmatpush2.msra.mxu0 0.0
    %3598 = vmatprep.subr.mxu0 0.0
    %3599 = vmatpush2.msra.mxu0 0.0
    %3600 = vmatprep.subr.mxu0 0.0
    %3601 = vmatpush2.msra.mxu0 0.0
    %3602 = vmatprep.subr.mxu0 0.0
    %3603 = vmatpush2.msra.mxu0 0.0
    %3604 = vmatprep.mubr.f32.mxu0 0.0
    %3605 = vmatmul.mubr.f32.gmra.mxu0 %v3516
    %v3606 = vpop.f32.mrf.mxu0
    %v3607 = vadd.f32 %v3538, %v3606
    %v3608 = vpop.f32.mrf.mxu0
    %3609 = vdwg.mxu0
    %3610 = vst [vmem:[#allocation15] sm:$0xff] %v3607
    // Predicated region
    $region70: #{tpu_custom_call.1} parent=1 // pred_check
      _
    $region71: #{tpu_custom_call.1} parent=1 // pred_check_branch
      %3612 = sbr.rel (0) target = $region73
    $region72: #{tpu_custom_call.1} parent=1 // pred_region
      %s3614 = ssub.s32 128, 128
      %3615 = vsyncadd [#allocation6], %s3614
      %s3617 = sshll.u32 [#allocation15], 4
      %s3618 = int_to_ptr.vmem [resolvable:$true] %s3617
      %3620 = dma.vmem_to_hbm [thread:$0]  %s3618, 128, %s11, [#allocation6]
    $region73: #{tpu_custom_call.1} parent=1 // pred_fallthru
      _
    // Predicated region
    $region74: #{tpu_custom_call.1} parent=1 // pred_check
      _
    $region75: #{tpu_custom_call.1} parent=1 // pred_check_branch
      %3622 = sbr.rel (0) target = $region77
    $region76: #{tpu_custom_call.1} parent=1 // pred_region
      %3623 = dma.done [#allocation6], 128
    $region77: #{tpu_custom_call.1} parent=1 // pred_fallthru
      _
    %3624 = vsyncpa [#allocation5], 1
    %3625 = vsyncpa [#allocation8], 1
    %3626 = vsyncpa [#allocation11], 1
    %3627 = vsyncpa [#allocation14], 1
    %3628 = vsyncpa [#allocation6], 1

</llo_original>
